<compile_context>
chip_gen: v6e
topology: v6e:2x2x1
jax: 0.10.0
libtpu: 0.0.40
codegen_flags: <defaults>
</compile_context>

<pallas_src>
import functools

import jax
import jax.numpy as jnp
from jax.experimental import pallas as pl
from jax.experimental.pallas import tpu as pltpu


# --------------------------------------------------------------------------------------
# Row tiling for the flattened (N*H*W) dimension.
# --------------------------------------------------------------------------------------
def _round_up(x, m):
    return ((x + m - 1) // m) * m


def _row_tiling(m):
    """Row tile, padded extent and per-core step count for the flattened row dim."""
    if m >= 2048:
        tm = 512
    elif m >= 256:
        tm = 128
    else:
        tm = max(8, _round_up(-(-m // 2), 8))     # ceil(m/2), rounded up to sublane
    m_pad = _round_up(m, 2 * tm)
    return tm, m_pad, m_pad // (2 * tm)


# --------------------------------------------------------------------------------------
# Kernel 1: per-channel complex-BN statistics for norm1 (reduction over N*H*W).
#   Per-core partial sums: output (2, 5, C) with rows [sum_r, sum_i, s_rr, s_ii, s_ri].
#   Pad rows of the input are zero -> contribute 0 to every sum.
# --------------------------------------------------------------------------------------
def _complex_bn_stats_kernel(x_ref, st_ref, *, cin):
    @pl.when(pl.program_id(1) == 0)
    def _():
        st_ref[...] = jnp.zeros_like(st_ref)

    x = x_ref[...]
    xr = x[:, :cin]
    xi = x[:, cin:]
    part = jnp.concatenate(
        [jnp.sum(xr, axis=0, keepdims=True),
         jnp.sum(xi, axis=0, keepdims=True),
         jnp.sum(xr * xr, axis=0, keepdims=True),
         jnp.sum(xi * xi, axis=0, keepdims=True),
         jnp.sum(xr * xi, axis=0, keepdims=True)], axis=0)
    st_ref[...] += part.reshape(1, 5, cin)


def complex_bn_stats(x_pack, cin, tm, steps):
    m_pad, two_cin = x_pack.shape
    kern = functools.partial(_complex_bn_stats_kernel, cin=cin)
    return pl.pallas_call(
        kern,
        out_shape=jax.ShapeDtypeStruct((2, 5, cin), jnp.float32),
        grid=(2, steps),
        in_specs=[pl.BlockSpec((tm, two_cin), lambda c, i: (c * steps + i, 0))],
        out_specs=pl.BlockSpec((1, 5, cin), lambda c, i: (c, 0, 0)),
        compiler_params=pltpu.CompilerParams(
            dimension_semantics=("parallel", "arbitrary"),
            vmem_limit_bytes=32 * 1024 * 1024),
    )(x_pack)


# --------------------------------------------------------------------------------------
# Glue: fold whitening (2x2 per-channel) + complex-BN affine into one per-channel
# affine transform.  Accepts per-core partial stats (2, 5, C) or plain (5, C).
# Returns params (8, C): [mu_r, mu_i, a_rr, a_ri, a_ir, a_ii, b_r, b_i].
# --------------------------------------------------------------------------------------
def bn_affine_params(stats, n, gamma, beta, eps=1e-5):
    if stats.ndim == 3:                      # sum the per-core partials (v7x megacore)
        stats = jnp.sum(stats, axis=0)
    s_r, s_i, s_rr, s_ii, s_ri = stats[0], stats[1], stats[2], stats[3], stats[4]
    mu_r = s_r / n
    mu_i = s_i / n
    crr = s_rr / n - mu_r * mu_r + eps
    cii = s_ii / n - mu_i * mu_i + eps
    cri = s_ri / n - mu_r * mu_i
    det = jnp.maximum(crr * cii - cri * cri, 1e-12)          # clamp: near-singular cov
    s = jnp.sqrt(det)
    t = jnp.sqrt(jnp.maximum(crr + cii + 2.0 * s, 1e-12))
    inv_st = 1.0 / (s * t)
    r_rr = (cii + s) * inv_st
    r_ii = (crr + s) * inv_st
    r_ri = -cri * inv_st
    g_rr, g_ii, g_ri = gamma[0], gamma[1], gamma[2]
    a_rr = g_rr * r_rr + g_ri * r_ri
    a_ri = g_rr * r_ri + g_ri * r_ii
    a_ir = g_ri * r_rr + g_ii * r_ri
    a_ii = g_ri * r_ri + g_ii * r_ii
    return jnp.stack([mu_r, mu_i, a_rr, a_ri, a_ir, a_ii, beta[0], beta[1]], axis=0)


def _complex_block_weight(wr, wi):
    # [hr | hi] @ [[Wr, Wi], [-Wi, Wr]] = [hr@Wr - hi@Wi | hr@Wi + hi@Wr]
    return jnp.concatenate(
        [jnp.concatenate([wr, wi], axis=1),
         jnp.concatenate([-wi, wr], axis=1)], axis=0)


# --------------------------------------------------------------------------------------
# Kernel 2: fused ComplexBN-apply + Cardioid + 1x1 complex conv (one block-complex
# matmul) + fused norm2 statistics (per-core accumulator output).  Pad rows are
# zeroed (mask folded into the cardioid scale) so they contribute 0 to the stats.
# --------------------------------------------------------------------------------------
def _bn_card_conv1x1_kernel(x_ref, p_ref, w_ref, y_ref, st_ref, *,
                            cin, cmid, tm, steps, m_valid, compute_dtype):
    @pl.when(pl.program_id(1) == 0)
    def _():
        st_ref[...] = jnp.zeros_like(st_ref)

    x = x_ref[...]
    xr = x[:, :cin]
    xi = x[:, cin:]
    cr = xr - p_ref[0:1, :]
    ci = xi - p_ref[1:2, :]
    hr = p_ref[2:3, :] * cr + p_ref[3:4, :] * ci + p_ref[6:7, :]
    hi = p_ref[4:5, :] * cr + p_ref[5:6, :] * ci + p_ref[7:8, :]
    # Cardioid: z * 0.5 * (1 + cos(angle z)) == z * (0.5 + 0.5 * re(z) / |z|)
    scale = 0.5 + 0.5 * hr * jax.lax.rsqrt(hr * hr + hi * hi + 1e-12)
    # Zero the M-padding rows (keeps y and the fused norm2 statistics exact).
    row0 = (pl.program_id(0) * steps + pl.program_id(1)) * tm
    rows = jax.lax.broadcasted_iota(jnp.int32, (tm, 1), 0)
    scale = scale * (rows + row0 < m_valid).astype(jnp.float32)
    hr = scale * hr
    hi = scale * hi

    # block-complex matmul: one MXU contraction, K = 2*Cin, N = 2*Cmid
    h = jnp.concatenate([hr, hi], axis=-1).astype(compute_dtype)
    y = jnp.dot(h, w_ref[...], preferred_element_type=jnp.float32)
    y_ref[...] = y.astype(y_ref.dtype)

    # fused norm2 statistics (f32 accumulation on the f32 conv1 output)
    yr = y[:, :cmid]
    yi = y[:, cmid:]
    part = jnp.concatenate(
        [jnp.sum(yr, axis=0, keepdims=True),
         jnp.sum(yi, axis=0, keepdims=True),
         jnp.sum(yr * yr, axis=0, keepdims=True),
         jnp.sum(yi * yi, axis=0, keepdims=True),
         jnp.sum(yr * yi, axis=0, keepdims=True)], axis=0)
    st_ref[...] += part.reshape(1, 5, cmid)


def bn_cardioid_conv1x1(x_pack, p1, w_block, cin, cmid, tm, steps, m_valid,
                        compute_dtype):
    m_pad, two_cin = x_pack.shape
    two_cmid = w_block.shape[1]
    kern = functools.partial(_bn_card_conv1x1_kernel, cin=cin, cmid=cmid, tm=tm,
                             steps=steps, m_valid=m_valid,
                             compute_dtype=compute_dtype)
    return pl.pallas_call(
        kern,
        out_shape=(jax.ShapeDtypeStruct((m_pad, two_cmid), compute_dtype),
                   jax.ShapeDtypeStruct((2, 5, cmid), jnp.float32)),
        grid=(2, steps),
        in_specs=[pl.BlockSpec((tm, two_cin), lambda c, i: (c * steps + i, 0)),
                  pl.BlockSpec((8, cin), lambda c, i: (0, 0)),
                  pl.BlockSpec((2 * cin, two_cmid), lambda c, i: (0, 0))],
        out_specs=(pl.BlockSpec((tm, two_cmid), lambda c, i: (c * steps + i, 0)),
                   pl.BlockSpec((1, 5, cmid), lambda c, i: (c, 0, 0))),
        compiler_params=pltpu.CompilerParams(
            dimension_semantics=("parallel", "arbitrary"),
            vmem_limit_bytes=32 * 1024 * 1024),
    )(x_pack, p1, w_block)


# --------------------------------------------------------------------------------------
# Kernel 3: fused ComplexBN-apply + Cardioid + 3x3 complex conv (padding=1, stride=1).
# Grid over the batch dim ("parallel" -> both TensorCores on v7x).  The unpadded
# conv1 block is normalized + activated, padded in-register (halo exactly zero, so
# no interior mask), then the 9 taps are 9 accumulated MXU matmuls (K = 2*Cmid each)
# into a single f32 accumulator — no 9x im2col patch.
# --------------------------------------------------------------------------------------
def _bn_card_conv3x3_kernel(y_ref, p_ref, w_ref, o_ref, *, H, W, cmid, cout,
                            compute_dtype):
    y = y_ref[0].astype(jnp.float32)          # (H, W, 2*cmid), unpadded
    yr = y[..., :cmid]
    yi = y[..., cmid:]

    def prow(k):
        return p_ref[k:k + 1, :].reshape(1, 1, cmid)

    cr = yr - prow(0)
    ci = yi - prow(1)
    hr = prow(2) * cr + prow(3) * ci + prow(6)
    hi = prow(4) * cr + prow(5) * ci + prow(7)
    scale = 0.5 + 0.5 * hr * jax.lax.rsqrt(hr * hr + hi * hi + 1e-12)
    hr = scale * hr
    hi = scale * hi
    h = jnp.concatenate([hr, hi], axis=-1)                      # (H, W, 2*cmid), f32

    # in-register zero padding (padding happens AFTER the nonlinearity -> halo == 0)
    zcol = jnp.zeros((H, 1, 2 * cmid), jnp.float32)
    zrow = jnp.zeros((1, W + 2, 2 * cmid), jnp.float32)
    h_pad = jnp.concatenate(
        [zrow, jnp.concatenate([zcol, h, zcol], axis=1), zrow],
        axis=0).astype(compute_dtype)                           # (H+2, W+2, 2*cmid)

    # 9 accumulated MXU matmuls instead of one giant im2col patch
    acc = jnp.zeros((H * W, 2 * cout), jnp.float32)
    for t in range(9):
        dy, dx = t // 3, t % 3
        tap = h_pad[dy:dy + H, dx:dx + W, :].reshape(H * W, 2 * cmid)
        acc = acc + jnp.dot(tap, w_ref[t], preferred_element_type=jnp.float32)
    o_ref[...] = acc.reshape(1, H, W, 2 * cout)


def bn_cardioid_conv3x3(y4, p2, w_block, H, W, cmid, cout, compute_dtype):
    N = y4.shape[0]
    two_cmid = 2 * cmid
    kern = functools.partial(_bn_card_conv3x3_kernel, H=H, W=W, cmid=cmid,
                             cout=cout, compute_dtype=compute_dtype)
    return pl.pallas_call(
        kern,
        out_shape=jax.ShapeDtypeStruct((N, H, W, 2 * cout), jnp.float32),
        grid=(N,),
        in_specs=[pl.BlockSpec((1, H, W, two_cmid), lambda n: (n, 0, 0, 0)),
                  pl.BlockSpec((8, cmid), lambda n: (0, 0)),
                  pl.BlockSpec((9, two_cmid, 2 * cout), lambda n: (0, 0, 0))],
        out_specs=pl.BlockSpec((1, H, W, 2 * cout), lambda n: (n, 0, 0, 0)),
        compiler_params=pltpu.CompilerParams(
            # images are independent -> megacore on v7x, pipelined block DMA
            dimension_semantics=("parallel",),
            # ~20 MiB realistic working set (9-tap version) + headroom; < v7x 64 MiB
            vmem_limit_bytes=40 * 1024 * 1024),
    )(y4, p2, w_block)


# --------------------------------------------------------------------------------------
# _DenseLayer forward (drop_rate = 0.0, memory_efficient=False)
# --------------------------------------------------------------------------------------
@functools.partial(jax.jit, static_argnames=("compute_dtype",))
def dense_layer_forward(x, params, compute_dtype=jnp.float32):
    # x: complex64 NCHW (N, Cin, H, W) — same convention as the PyTorch module.
    N, Cin, H, W = x.shape
    M = N * H * W
    tm, m_pad, steps = _row_tiling(M)

    xr = jnp.real(x).astype(jnp.float32)
    xi = jnp.imag(x).astype(jnp.float32)
    # pack [real | imag] channel-last -> one lane-dense (M, 2*Cin) activation stream
    x_pack = jnp.concatenate(
        [jnp.transpose(xr, (0, 2, 3, 1)).reshape(M, Cin),
         jnp.transpose(xi, (0, 2, 3, 1)).reshape(M, Cin)], axis=-1)
    if m_pad > M:
        x_pack = jnp.pad(x_pack, ((0, m_pad - M), (0, 0)))

    # norm1 stats (per-core partial sums) -> folded affine
    stats1 = complex_bn_stats(x_pack, Cin, tm, steps)
    p1 = bn_affine_params(stats1, M, params["bn1_gamma"], params["bn1_beta"])

    # norm1-apply + cardioid1 + conv1 (1x1) as one block-complex matmul,
    # with norm2 statistics accumulated on the fly.
    Cmid = params["w1_r"].shape[1]
    w1_block = _complex_block_weight(params["w1_r"], params["w1_i"]).astype(compute_dtype)
    y_packed, stats2 = bn_cardioid_conv1x1(x_pack, p1, w1_block, Cin, Cmid,
                                           tm, steps, M, compute_dtype)
    p2 = bn_affine_params(stats2, M, params["bn2_gamma"], params["bn2_beta"])

    # drop pad rows; kernel 3 reads the UNPADDED block and pads in-register
    y4 = y_packed[:M].reshape(N, H, W, 2 * Cmid)

    Cout = params["w2_r"].shape[-1]
    w2_block = jnp.stack(
        [_complex_block_weight(params["w2_r"][dy, dx], params["w2_i"][dy, dx])
         for dy in range(3) for dx in range(3)], axis=0).astype(compute_dtype)

    out = bn_cardioid_conv3x3(y4, p2, w2_block, H, W, Cmid, Cout, compute_dtype)

    # drop_rate == 0.0 -> dropout branch not taken (matches the PyTorch module).
    out_r = jnp.transpose(out[..., :Cout], (0, 3, 1, 2))
    out_i = jnp.transpose(out[..., Cout:], (0, 3, 1, 2))
    return (out_r + 1j * out_i).astype(jnp.complex64)


# --------------------------------------------------------------------------------------
# Pure-JAX reference (for correctness check)
# --------------------------------------------------------------------------------------
def ref_forward(x, params):
    N, Cin, H, W = x.shape
    xr = jnp.transpose(jnp.real(x), (0, 2, 3, 1)).astype(jnp.float32)
    xi = jnp.transpose(jnp.imag(x), (0, 2, 3, 1)).astype(jnp.float32)
    n = N * H * W

    def bn_card(ar, ai, gamma, beta):
        C = ar.shape[-1]
        arf = ar.reshape(-1, C)
        aif = ai.reshape(-1, C)
        st = jnp.stack([arf.sum(0), aif.sum(0), (arf * arf).sum(0),
                        (aif * aif).sum(0), (arf * aif).sum(0)], axis=0)
        p = bn_affine_params(st, n, gamma, beta)
        cr = ar - p[0]
        ci = ai - p[1]
        hr = p[2] * cr + p[3] * ci + p[6]
        hi = p[4] * cr + p[5] * ci + p[7]
        s = 0.5 + 0.5 * hr * jax.lax.rsqrt(hr * hr + hi * hi + 1e-12)
        return s * hr, s * hi

    def cconv(hr, hi, wr, wi, pad):
        dn = ("NHWC", "HWIO", "NHWC")
        conv = lambda a, w: jax.lax.conv_general_dilated(a, w, (1, 1), pad,
                                                         dimension_numbers=dn)
        return conv(hr, wr) - conv(hi, wi), conv(hr, wi) + conv(hi, wr)

    hr, hi = bn_card(xr, xi, params["bn1_gamma"], params["bn1_beta"])
    yr, yi = cconv(hr, hi, params["w1_r"][None, None], params["w1_i"][None, None], "VALID")
    hr2, hi2 = bn_card(yr, yi, params["bn2_gamma"], params["bn2_beta"])
    or_, oi_ = cconv(hr2, hi2, params["w2_r"], params["w2_i"], "SAME")
    out = jnp.transpose(or_, (0, 3, 1, 2)) + 1j * jnp.transpose(oi_, (0, 3, 1, 2))
    return out.astype(jnp.complex64)


# --------------------------------------------------------------------------------------
if __name__ == "__main__":
    key = jax.random.PRNGKey(0)
    ks = jax.random.split(key, 12)

    # _DenseLayer(num_input_features=16, growth_rate=8, bn_size=4, drop_rate=0.0)
    N, Cin, H, W = 2, 16, 8, 8
    growth_rate, bn_size = 8, 4
    Cmid = bn_size * growth_rate   # conv1 output / norm2 channels = 32
    Cout = growth_rate             # conv2 output channels = 8

    xr = jax.random.normal(ks[0], (N, Cin, H, W), jnp.float32)
    xi = jax.random.normal(ks[1], (N, Cin, H, W), jnp.float32)
    x = (xr + 1j * xi).astype(jnp.complex64)

    inv_sqrt2 = 1.0 / jnp.sqrt(2.0)
    params = {
        # ComplexBatchNorm2d affine params: gamma rows = (g_rr, g_ii, g_ri), beta rows = (b_r, b_i)
        "bn1_gamma": jnp.stack([
            inv_sqrt2 + 0.05 * jax.random.normal(ks[2], (Cin,), jnp.float32),
            inv_sqrt2 + 0.05 * jax.random.normal(ks[3], (Cin,), jnp.float32),
            0.05 * jax.random.normal(ks[4], (Cin,), jnp.float32)], axis=0),
        "bn1_beta": 0.05 * jax.random.normal(ks[5], (2, Cin), jnp.float32),
        "bn2_gamma": jnp.stack([
            inv_sqrt2 + 0.05 * jax.random.normal(ks[6], (Cmid,), jnp.float32),
            inv_sqrt2 + 0.05 * jax.random.normal(ks[7], (Cmid,), jnp.float32),
            0.05 * jax.random.normal(ks[8], (Cmid,), jnp.float32)], axis=0),
        "bn2_beta": 0.05 * jax.random.normal(ks[9], (2, Cmid), jnp.float32),
        # Conv2dDFT weights (complex, no bias). conv1: 1x1 (Cin -> Cmid); conv2: 3x3 (Cmid -> Cout)
        "w1_r": jax.random.normal(ks[10], (Cin, Cmid), jnp.float32) / jnp.sqrt(2.0 * Cin),
        "w1_i": jax.random.normal(ks[11], (Cin, Cmid), jnp.float32) / jnp.sqrt(2.0 * Cin),
        "w2_r": jax.random.normal(jax.random.fold_in(key, 100), (3, 3, Cmid, Cout),
                                  jnp.float32) / jnp.sqrt(2.0 * 9.0 * Cmid),
        "w2_i": jax.random.normal(jax.random.fold_in(key, 101), (3, 3, Cmid, Cout),
                                  jnp.float32) / jnp.sqrt(2.0 * 9.0 * Cmid),
    }

    ref = jax.block_until_ready(ref_forward(x, params))

    # f32 MXU path: tight correctness check
    out_f32 = jax.block_until_ready(
        dense_layer_forward(x, params, compute_dtype=jnp.float32))
    # bf16 path (MXU operands + the conv1 intermediate in bf16; elementwise math and
    # accumulation stay f32 — required on v5e which has no bf16 VPU/EUP).
    out_bf16 = jax.block_until_ready(
        dense_layer_forward(x, params, compute_dtype=jnp.bfloat16))

    assert out_f32.shape == (N, Cout, H, W), out_f32.shape
    assert out_bf16.shape == (N, Cout, H, W), out_bf16.shape

    err32 = float(jnp.max(jnp.abs(out_f32 - ref)))
    errbf = float(jnp.max(jnp.abs(out_bf16 - ref)))
    if not err32 < 5e-3:
        raise SystemExit(f"f32 mismatch vs reference: max abs err = {err32}")
    if not errbf < 5e-2:
        raise SystemExit(f"bf16 mismatch vs reference: max abs err = {errbf}")
    print("KERNEL_OK")
</pallas_src>

<mosaic_0001>
module attributes {stable_mosaic.version = 11 : i64} {
  func.func @_complex_bn_stats_kernel(%arg0: i32, %arg1: i32, %arg2: memref<64x32xf32, #tpu.memory_space<vmem>>, %arg3: memref<1x5x16xf32, #tpu.memory_space<vmem>>) attributes {dimension_semantics = [#tpu.dimension_semantics<parallel>, #tpu.dimension_semantics<arbitrary>], iteration_bounds = array<i64: 2, 1>, scalar_prefetch = 0 : i64, scratch_operands = 0 : i64, tpu.core_type = #tpu.core_type<tc>, window_params = [{transform_indices = @transform_0, window_bounds = array<i64: 64, 32>}, {transform_indices = @transform_1, window_bounds = array<i64: 1, 5, 16>}]} {
    %c0_i32 = arith.constant 0 : i32
    %0 = arith.cmpi eq, %arg1, %c0_i32 : i32
    %1 = arith.extui %0 : i1 to i32
    %c0_i32_0 = arith.constant 0 : i32
    %2 = arith.cmpi ne, %1, %c0_i32_0 : i32
    scf.if %2 {
      %cst_12 = arith.constant 0.000000e+00 : f32
      %24 = vector.broadcast %cst_12 : f32 to vector<1x5x16xf32>
      %c0_13 = arith.constant 0 : index
      %c0_14 = arith.constant 0 : index
      %c0_15 = arith.constant 0 : index
      %25 = vector.load %arg3[%c0_13, %c0_14, %c0_15] : memref<1x5x16xf32, #tpu.memory_space<vmem>>, vector<1x5x16xf32>
      tpu.vector_store %arg3[%c0_13, %c0_14, %c0_15], %24 {strides = array<i32>} : memref<1x5x16xf32, #tpu.memory_space<vmem>>, vector<1x5x16xf32>,
    } else {
    }
    %c0 = arith.constant 0 : index
    %c0_1 = arith.constant 0 : index
    %3 = vector.load %arg2[%c0, %c0_1] : memref<64x32xf32, #tpu.memory_space<vmem>>, vector<64x32xf32>
    %4 = vector.extract_strided_slice %3 {offsets = [0, 0], sizes = [64, 16], strides = [1, 1]} : vector<64x32xf32> to vector<64x16xf32>
    %5 = vector.extract_strided_slice %3 {offsets = [0, 16], sizes = [64, 16], strides = [1, 1]} : vector<64x32xf32> to vector<64x16xf32>
    %cst = arith.constant dense<0.000000e+00> : vector<16xf32>
    %6 = vector.multi_reduction <add>, %4, %cst [0] : vector<64x16xf32> to vector<16xf32>
    %7 = vector.shape_cast %6 : vector<16xf32> to vector<1x16xf32>
    %cst_2 = arith.constant dense<0.000000e+00> : vector<16xf32>
    %8 = vector.multi_reduction <add>, %5, %cst_2 [0] : vector<64x16xf32> to vector<16xf32>
    %9 = vector.shape_cast %8 : vector<16xf32> to vector<1x16xf32>
    %10 = arith.mulf %4, %4 : vector<64x16xf32>
    %cst_3 = arith.constant dense<0.000000e+00> : vector<16xf32>
    %11 = vector.multi_reduction <add>, %10, %cst_3 [0] : vector<64x16xf32> to vector<16xf32>
    %12 = vector.shape_cast %11 : vector<16xf32> to vector<1x16xf32>
    %13 = arith.mulf %5, %5 : vector<64x16xf32>
    %cst_4 = arith.constant dense<0.000000e+00> : vector<16xf32>
    %14 = vector.multi_reduction <add>, %13, %cst_4 [0] : vector<64x16xf32> to vector<16xf32>
    %15 = vector.shape_cast %14 : vector<16xf32> to vector<1x16xf32>
    %16 = arith.mulf %4, %5 : vector<64x16xf32>
    %cst_5 = arith.constant dense<0.000000e+00> : vector<16xf32>
    %17 = vector.multi_reduction <add>, %16, %cst_5 [0] : vector<64x16xf32> to vector<16xf32>
    %18 = vector.shape_cast %17 : vector<16xf32> to vector<1x16xf32>
    %19 = tpu.concatenate %7, %9, %12, %15, %18 in 0 : vector<1x16xf32>, vector<1x16xf32>, vector<1x16xf32>, vector<1x16xf32>, vector<1x16xf32> -> vector<5x16xf32>
    %c0_6 = arith.constant 0 : index
    %c0_7 = arith.constant 0 : index
    %c0_8 = arith.constant 0 : index
    %20 = vector.load %arg3[%c0_6, %c0_7, %c0_8] : memref<1x5x16xf32, #tpu.memory_space<vmem>>, vector<1x5x16xf32>
    %21 = vector.shape_cast %19 : vector<5x16xf32> to vector<1x5x16xf32>
    %22 = arith.addf %20, %21 : vector<1x5x16xf32>
    %c0_9 = arith.constant 0 : index
    %c0_10 = arith.constant 0 : index
    %c0_11 = arith.constant 0 : index
    %23 = vector.load %arg3[%c0_9, %c0_10, %c0_11] : memref<1x5x16xf32, #tpu.memory_space<vmem>>, vector<1x5x16xf32>
    tpu.vector_store %arg3[%c0_9, %c0_10, %c0_11], %22 {strides = array<i32>} : memref<1x5x16xf32, #tpu.memory_space<vmem>>, vector<1x5x16xf32>,
    return
  }
  func.func @transform_0(%arg0: i32, %arg1: i32) -> (i32, i32) {
    %c1_i32 = arith.constant 1 : i32
    %0 = arith.muli %arg0, %c1_i32 : i32
    %1 = arith.addi %0, %arg1 : i32
    %c0_i32 = arith.constant 0 : i32
    %c0_i32_0 = arith.constant 0 : i32
    return %1, %c0_i32 : i32, i32
  }
  func.func @transform_1(%arg0: i32, %arg1: i32) -> (i32, i32, i32) {
    %c0_i32 = arith.constant 0 : i32
    %c0_i32_0 = arith.constant 0 : i32
    %c0_i32_1 = arith.constant 0 : i32
    return %arg0, %c0_i32, %c0_i32_0 : i32, i32, i32
  }
}

module attributes {stable_mosaic.version = 11 : i64} {
  func.func @_bn_card_conv1x1_kernel(%arg0: i32, %arg1: i32, %arg2: memref<64x32xf32, #tpu.memory_space<vmem>>, %arg3: memref<8x16xf32, #tpu.memory_space<vmem>>, %arg4: memref<32x64xf32, #tpu.memory_space<vmem>>, %arg5: memref<64x64xf32, #tpu.memory_space<vmem>>, %arg6: memref<1x5x32xf32, #tpu.memory_space<vmem>>) attributes {dimension_semantics = [#tpu.dimension_semantics<parallel>, #tpu.dimension_semantics<arbitrary>], iteration_bounds = array<i64: 2, 1>, scalar_prefetch = 0 : i64, scratch_operands = 0 : i64, tpu.core_type = #tpu.core_type<tc>, window_params = [{transform_indices = @transform_0, window_bounds = array<i64: 64, 32>}, {pipeline_mode = #tpu.pipeline_mode<synchronous>, transform_indices = @transform_1, window_bounds = array<i64: 8, 16>}, {pipeline_mode = #tpu.pipeline_mode<synchronous>, transform_indices = @transform_2, window_bounds = array<i64: 32, 64>}, {transform_indices = @transform_3, window_bounds = array<i64: 64, 64>}, {transform_indices = @transform_4, window_bounds = array<i64: 1, 5, 32>}]} {
    %c0_i32 = arith.constant 0 : i32
    %0 = arith.cmpi eq, %arg1, %c0_i32 : i32
    %1 = arith.extui %0 : i1 to i32
    %c0_i32_0 = arith.constant 0 : i32
    %2 = arith.cmpi ne, %1, %c0_i32_0 : i32
    scf.if %2 {
      %cst_29 = arith.constant 0.000000e+00 : f32
      %81 = vector.broadcast %cst_29 : f32 to vector<1x5x32xf32>
      %c0_30 = arith.constant 0 : index
      %c0_31 = arith.constant 0 : index
      %c0_32 = arith.constant 0 : index
      %82 = vector.load %arg6[%c0_30, %c0_31, %c0_32] : memref<1x5x32xf32, #tpu.memory_space<vmem>>, vector<1x5x32xf32>
      tpu.vector_store %arg6[%c0_30, %c0_31, %c0_32], %81 {strides = array<i32>} : memref<1x5x32xf32, #tpu.memory_space<vmem>>, vector<1x5x32xf32>,
    } else {
    }
    %c0 = arith.constant 0 : index
    %c0_1 = arith.constant 0 : index
    %3 = vector.load %arg2[%c0, %c0_1] : memref<64x32xf32, #tpu.memory_space<vmem>>, vector<64x32xf32>
    %4 = vector.extract_strided_slice %3 {offsets = [0, 0], sizes = [64, 16], strides = [1, 1]} : vector<64x32xf32> to vector<64x16xf32>
    %5 = vector.extract_strided_slice %3 {offsets = [0, 16], sizes = [64, 16], strides = [1, 1]} : vector<64x32xf32> to vector<64x16xf32>
    %c0_2 = arith.constant 0 : index
    %c0_3 = arith.constant 0 : index
    %6 = vector.load %arg3[%c0_2, %c0_3] : memref<8x16xf32, #tpu.memory_space<vmem>>, vector<1x16xf32>
    %7 = vector.broadcast %6 : vector<1x16xf32> to vector<64x16xf32>
    %8 = arith.subf %4, %7 : vector<64x16xf32>
    %c1 = arith.constant 1 : index
    %c0_4 = arith.constant 0 : index
    %9 = vector.load %arg3[%c1, %c0_4] : memref<8x16xf32, #tpu.memory_space<vmem>>, vector<1x16xf32>
    %10 = vector.broadcast %9 : vector<1x16xf32> to vector<64x16xf32>
    %11 = arith.subf %5, %10 : vector<64x16xf32>
    %c2 = arith.constant 2 : index
    %c0_5 = arith.constant 0 : index
    %12 = vector.load %arg3[%c2, %c0_5] : memref<8x16xf32, #tpu.memory_space<vmem>>, vector<1x16xf32>
    %13 = vector.broadcast %12 : vector<1x16xf32> to vector<64x16xf32>
    %14 = arith.mulf %13, %8 : vector<64x16xf32>
    %c3 = arith.constant 3 : index
    %c0_6 = arith.constant 0 : index
    %15 = vector.load %arg3[%c3, %c0_6] : memref<8x16xf32, #tpu.memory_space<vmem>>, vector<1x16xf32>
    %16 = vector.broadcast %15 : vector<1x16xf32> to vector<64x16xf32>
    %17 = arith.mulf %16, %11 : vector<64x16xf32>
    %18 = arith.addf %14, %17 : vector<64x16xf32>
    %c6 = arith.constant 6 : index
    %c0_7 = arith.constant 0 : index
    %19 = vector.load %arg3[%c6, %c0_7] : memref<8x16xf32, #tpu.memory_space<vmem>>, vector<1x16xf32>
    %20 = vector.broadcast %19 : vector<1x16xf32> to vector<64x16xf32>
    %21 = arith.addf %18, %20 : vector<64x16xf32>
    %c4 = arith.constant 4 : index
    %c0_8 = arith.constant 0 : index
    %22 = vector.load %arg3[%c4, %c0_8] : memref<8x16xf32, #tpu.memory_space<vmem>>, vector<1x16xf32>
    %23 = vector.broadcast %22 : vector<1x16xf32> to vector<64x16xf32>
    %24 = arith.mulf %23, %8 : vector<64x16xf32>
    %c5 = arith.constant 5 : index
    %c0_9 = arith.constant 0 : index
    %25 = vector.load %arg3[%c5, %c0_9] : memref<8x16xf32, #tpu.memory_space<vmem>>, vector<1x16xf32>
    %26 = vector.broadcast %25 : vector<1x16xf32> to vector<64x16xf32>
    %27 = arith.mulf %26, %11 : vector<64x16xf32>
    %28 = arith.addf %24, %27 : vector<64x16xf32>
    %c7 = arith.constant 7 : index
    %c0_10 = arith.constant 0 : index
    %29 = vector.load %arg3[%c7, %c0_10] : memref<8x16xf32, #tpu.memory_space<vmem>>, vector<1x16xf32>
    %30 = vector.broadcast %29 : vector<1x16xf32> to vector<64x16xf32>
    %31 = arith.addf %28, %30 : vector<64x16xf32>
    %cst = arith.constant 5.000000e-01 : f32
    %32 = vector.broadcast %cst : f32 to vector<64x16xf32>
    %33 = arith.mulf %32, %21 : vector<64x16xf32>
    %34 = arith.mulf %21, %21 : vector<64x16xf32>
    %35 = arith.mulf %31, %31 : vector<64x16xf32>
    %36 = arith.addf %34, %35 : vector<64x16xf32>
    %cst_11 = arith.constant 9.99999996E-13 : f32
    %37 = vector.broadcast %cst_11 : f32 to vector<64x16xf32>
    %38 = arith.addf %36, %37 : vector<64x16xf32>
    %39 = math.rsqrt %38 : vector<64x16xf32>
    %40 = arith.mulf %33, %39 : vector<64x16xf32>
    %cst_12 = arith.constant 5.000000e-01 : f32
    %41 = vector.broadcast %cst_12 : f32 to vector<64x16xf32>
    %42 = arith.addf %41, %40 : vector<64x16xf32>
    %c1_i32 = arith.constant 1 : i32
    %43 = arith.muli %arg0, %c1_i32 : i32
    %44 = arith.addi %43, %arg1 : i32
    %c64_i32 = arith.constant 64 : i32
    %45 = arith.muli %44, %c64_i32 : i32
    %46 = tpu.iota {dimensions = array<i32: 0>} : vector<64x1xi32>
    %47 = vector.broadcast %45 : i32 to vector<64x1xi32>
    %48 = arith.addi %46, %47 : vector<64x1xi32>
    %c128_i32 = arith.constant 128 : i32
    %49 = vector.broadcast %c128_i32 : i32 to vector<64x1xi32>
    %50 = arith.cmpi slt, %48, %49 : vector<64x1xi32>
    %51 = arith.extui %50 : vector<64x1xi1> to vector<64x1xi32>
    %52 = arith.sitofp %51 : vector<64x1xi32> to vector<64x1xf32>
    %53 = vector.broadcast %52 : vector<64x1xf32> to vector<64x16xf32>
    %54 = arith.mulf %42, %53 : vector<64x16xf32>
    %55 = arith.mulf %54, %21 : vector<64x16xf32>
    %56 = arith.mulf %54, %31 : vector<64x16xf32>
    %57 = tpu.concatenate %55, %56 in 1 : vector<64x16xf32>, vector<64x16xf32> -> vector<64x32xf32>
    %c0_13 = arith.constant 0 : index
    %c0_14 = arith.constant 0 : index
    %58 = vector.load %arg4[%c0_13, %c0_14] : memref<32x64xf32, #tpu.memory_space<vmem>>, vector<32x64xf32>
    %cst_15 = arith.constant dense<0.000000e+00> : vector<64x64xf32>
    %59 = tpu.matmul %57, %58, %cst_15 {dimension_numbers = #tpu.dot_dimension_numbers<[1], [0], [0], [1], [0, 0, 1, 1], [], []>} : vector<64x32xf32>, vector<32x64xf32>, vector<64x64xf32> -> vector<64x64xf32>
    %c0_16 = arith.constant 0 : index
    %c0_17 = arith.constant 0 : index
    %60 = vector.load %arg5[%c0_16, %c0_17] : memref<64x64xf32, #tpu.memory_space<vmem>>, vector<64x64xf32>
    tpu.vector_store %arg5[%c0_16, %c0_17], %59 {strides = array<i32>} : memref<64x64xf32, #tpu.memory_space<vmem>>, vector<64x64xf32>,
    %61 = vector.extract_strided_slice %59 {offsets = [0, 0], sizes = [64, 32], strides = [1, 1]} : vector<64x64xf32> to vector<64x32xf32>
    %62 = vector.extract_strided_slice %59 {offsets = [0, 32], sizes = [64, 32], strides = [1, 1]} : vector<64x64xf32> to vector<64x32xf32>
    %cst_18 = arith.constant dense<0.000000e+00> : vector<32xf32>
    %63 = vector.multi_reduction <add>, %61, %cst_18 [0] : vector<64x32xf32> to vector<32xf32>
    %64 = vector.shape_cast %63 : vector<32xf32> to vector<1x32xf32>
    %cst_19 = arith.constant dense<0.000000e+00> : vector<32xf32>
    %65 = vector.multi_reduction <add>, %62, %cst_19 [0] : vector<64x32xf32> to vector<32xf32>
    %66 = vector.shape_cast %65 : vector<32xf32> to vector<1x32xf32>
    %67 = arith.mulf %61, %61 : vector<64x32xf32>
    %cst_20 = arith.constant dense<0.000000e+00> : vector<32xf32>
    %68 = vector.multi_reduction <add>, %67, %cst_20 [0] : vector<64x32xf32> to vector<32xf32>
    %69 = vector.shape_cast %68 : vector<32xf32> to vector<1x32xf32>
    %70 = arith.mulf %62, %62 : vector<64x32xf32>
    %cst_21 = arith.constant dense<0.000000e+00> : vector<32xf32>
    %71 = vector.multi_reduction <add>, %70, %cst_21 [0] : vector<64x32xf32> to vector<32xf32>
    %72 = vector.shape_cast %71 : vector<32xf32> to vector<1x32xf32>
    %73 = arith.mulf %61, %62 : vector<64x32xf32>
    %cst_22 = arith.constant dense<0.000000e+00> : vector<32xf32>
    %74 = vector.multi_reduction <add>, %73, %cst_22 [0] : vector<64x32xf32> to vector<32xf32>
    %75 = vector.shape_cast %74 : vector<32xf32> to vector<1x32xf32>
    %76 = tpu.concatenate %64, %66, %69, %72, %75 in 0 : vector<1x32xf32>, vector<1x32xf32>, vector<1x32xf32>, vector<1x32xf32>, vector<1x32xf32> -> vector<5x32xf32>
    %c0_23 = arith.constant 0 : index
    %c0_24 = arith.constant 0 : index
    %c0_25 = arith.constant 0 : index
    %77 = vector.load %arg6[%c0_23, %c0_24, %c0_25] : memref<1x5x32xf32, #tpu.memory_space<vmem>>, vector<1x5x32xf32>
    %78 = vector.shape_cast %76 : vector<5x32xf32> to vector<1x5x32xf32>
    %79 = arith.addf %77, %78 : vector<1x5x32xf32>
    %c0_26 = arith.constant 0 : index
    %c0_27 = arith.constant 0 : index
    %c0_28 = arith.constant 0 : index
    %80 = vector.load %arg6[%c0_26, %c0_27, %c0_28] : memref<1x5x32xf32, #tpu.memory_space<vmem>>, vector<1x5x32xf32>
    tpu.vector_store %arg6[%c0_26, %c0_27, %c0_28], %79 {strides = array<i32>} : memref<1x5x32xf32, #tpu.memory_space<vmem>>, vector<1x5x32xf32>,
    return
  }
  func.func @transform_0(%arg0: i32, %arg1: i32) -> (i32, i32) {
    %c1_i32 = arith.constant 1 : i32
    %0 = arith.muli %arg0, %c1_i32 : i32
    %1 = arith.addi %0, %arg1 : i32
    %c0_i32 = arith.constant 0 : i32
    %c0_i32_0 = arith.constant 0 : i32
    return %1, %c0_i32 : i32, i32
  }
  func.func @transform_1(%arg0: i32, %arg1: i32) -> (i32, i32) {
    %c0_i32 = arith.constant 0 : i32
    %c0_i32_0 = arith.constant 0 : i32
    %c0_i32_1 = arith.constant 0 : i32
    return %c0_i32, %c0_i32_0 : i32, i32
  }
  func.func @transform_2(%arg0: i32, %arg1: i32) -> (i32, i32) {
    %c0_i32 = arith.constant 0 : i32
    %c0_i32_0 = arith.constant 0 : i32
    %c0_i32_1 = arith.constant 0 : i32
    return %c0_i32, %c0_i32_0 : i32, i32
  }
  func.func @transform_3(%arg0: i32, %arg1: i32) -> (i32, i32) {
    %c1_i32 = arith.constant 1 : i32
    %0 = arith.muli %arg0, %c1_i32 : i32
    %1 = arith.addi %0, %arg1 : i32
    %c0_i32 = arith.constant 0 : i32
    %c0_i32_0 = arith.constant 0 : i32
    return %1, %c0_i32 : i32, i32
  }
  func.func @transform_4(%arg0: i32, %arg1: i32) -> (i32, i32, i32) {
    %c0_i32 = arith.constant 0 : i32
    %c0_i32_0 = arith.constant 0 : i32
    %c0_i32_1 = arith.constant 0 : i32
    return %arg0, %c0_i32, %c0_i32_0 : i32, i32, i32
  }
}

module attributes {stable_mosaic.version = 11 : i64} {
  func.func @_bn_card_conv3x3_kernel(%arg0: i32, %arg1: memref<1x8x8x64xf32, #tpu.memory_space<vmem>>, %arg2: memref<8x32xf32, #tpu.memory_space<vmem>>, %arg3: memref<9x64x16xf32, #tpu.memory_space<vmem>>, %arg4: memref<1x8x8x16xf32, #tpu.memory_space<vmem>>) attributes {dimension_semantics = [#tpu.dimension_semantics<parallel>], iteration_bounds = array<i64: 2>, scalar_prefetch = 0 : i64, scratch_operands = 0 : i64, tpu.core_type = #tpu.core_type<tc>, window_params = [{transform_indices = @transform_0, window_bounds = array<i64: 1, 8, 8, 64>}, {pipeline_mode = #tpu.pipeline_mode<synchronous>, transform_indices = @transform_1, window_bounds = array<i64: 8, 32>}, {pipeline_mode = #tpu.pipeline_mode<synchronous>, transform_indices = @transform_2, window_bounds = array<i64: 9, 64, 16>}, {transform_indices = @transform_3, window_bounds = array<i64: 1, 8, 8, 16>}]} {
    %c0 = arith.constant 0 : index
    %c0_0 = arith.constant 0 : index
    %c0_1 = arith.constant 0 : index
    %c0_2 = arith.constant 0 : index
    %0 = vector.load %arg1[%c0, %c0_0, %c0_1, %c0_2] : memref<1x8x8x64xf32, #tpu.memory_space<vmem>>, vector<1x8x8x64xf32>
    %1 = vector.shape_cast %0 : vector<1x8x8x64xf32> to vector<8x8x64xf32>
    %2 = vector.extract_strided_slice %1 {offsets = [0, 0, 0], sizes = [8, 8, 32], strides = [1, 1, 1]} : vector<8x8x64xf32> to vector<8x8x32xf32>
    %3 = vector.extract_strided_slice %1 {offsets = [0, 0, 32], sizes = [8, 8, 32], strides = [1, 1, 1]} : vector<8x8x64xf32> to vector<8x8x32xf32>
    %c0_3 = arith.constant 0 : index
    %c0_4 = arith.constant 0 : index
    %4 = vector.load %arg2[%c0_3, %c0_4] : memref<8x32xf32, #tpu.memory_space<vmem>>, vector<1x32xf32>
    %5 = vector.shape_cast %4 : vector<1x32xf32> to vector<1x1x32xf32>
    %6 = vector.broadcast %5 : vector<1x1x32xf32> to vector<8x8x32xf32>
    %7 = arith.subf %2, %6 : vector<8x8x32xf32>
    %c1 = arith.constant 1 : index
    %c0_5 = arith.constant 0 : index
    %8 = vector.load %arg2[%c1, %c0_5] : memref<8x32xf32, #tpu.memory_space<vmem>>, vector<1x32xf32>
    %9 = vector.shape_cast %8 : vector<1x32xf32> to vector<1x1x32xf32>
    %10 = vector.broadcast %9 : vector<1x1x32xf32> to vector<8x8x32xf32>
    %11 = arith.subf %3, %10 : vector<8x8x32xf32>
    %c2 = arith.constant 2 : index
    %c0_6 = arith.constant 0 : index
    %12 = vector.load %arg2[%c2, %c0_6] : memref<8x32xf32, #tpu.memory_space<vmem>>, vector<1x32xf32>
    %13 = vector.shape_cast %12 : vector<1x32xf32> to vector<1x1x32xf32>
    %14 = vector.broadcast %13 : vector<1x1x32xf32> to vector<8x8x32xf32>
    %15 = arith.mulf %14, %7 : vector<8x8x32xf32>
    %c3 = arith.constant 3 : index
    %c0_7 = arith.constant 0 : index
    %16 = vector.load %arg2[%c3, %c0_7] : memref<8x32xf32, #tpu.memory_space<vmem>>, vector<1x32xf32>
    %17 = vector.shape_cast %16 : vector<1x32xf32> to vector<1x1x32xf32>
    %18 = vector.broadcast %17 : vector<1x1x32xf32> to vector<8x8x32xf32>
    %19 = arith.mulf %18, %11 : vector<8x8x32xf32>
    %20 = arith.addf %15, %19 : vector<8x8x32xf32>
    %c6 = arith.constant 6 : index
    %c0_8 = arith.constant 0 : index
    %21 = vector.load %arg2[%c6, %c0_8] : memref<8x32xf32, #tpu.memory_space<vmem>>, vector<1x32xf32>
    %22 = vector.shape_cast %21 : vector<1x32xf32> to vector<1x1x32xf32>
    %23 = vector.broadcast %22 : vector<1x1x32xf32> to vector<8x8x32xf32>
    %24 = arith.addf %20, %23 : vector<8x8x32xf32>
    %c4 = arith.constant 4 : index
    %c0_9 = arith.constant 0 : index
    %25 = vector.load %arg2[%c4, %c0_9] : memref<8x32xf32, #tpu.memory_space<vmem>>, vector<1x32xf32>
    %26 = vector.shape_cast %25 : vector<1x32xf32> to vector<1x1x32xf32>
    %27 = vector.broadcast %26 : vector<1x1x32xf32> to vector<8x8x32xf32>
    %28 = arith.mulf %27, %7 : vector<8x8x32xf32>
    %c5 = arith.constant 5 : index
    %c0_10 = arith.constant 0 : index
    %29 = vector.load %arg2[%c5, %c0_10] : memref<8x32xf32, #tpu.memory_space<vmem>>, vector<1x32xf32>
    %30 = vector.shape_cast %29 : vector<1x32xf32> to vector<1x1x32xf32>
    %31 = vector.broadcast %30 : vector<1x1x32xf32> to vector<8x8x32xf32>
    %32 = arith.mulf %31, %11 : vector<8x8x32xf32>
    %33 = arith.addf %28, %32 : vector<8x8x32xf32>
    %c7 = arith.constant 7 : index
    %c0_11 = arith.constant 0 : index
    %34 = vector.load %arg2[%c7, %c0_11] : memref<8x32xf32, #tpu.memory_space<vmem>>, vector<1x32xf32>
    %35 = vector.shape_cast %34 : vector<1x32xf32> to vector<1x1x32xf32>
    %36 = vector.broadcast %35 : vector<1x1x32xf32> to vector<8x8x32xf32>
    %37 = arith.addf %33, %36 : vector<8x8x32xf32>
    %cst = arith.constant 5.000000e-01 : f32
    %38 = vector.broadcast %cst : f32 to vector<8x8x32xf32>
    %39 = arith.mulf %38, %24 : vector<8x8x32xf32>
    %40 = arith.mulf %24, %24 : vector<8x8x32xf32>
    %41 = arith.mulf %37, %37 : vector<8x8x32xf32>
    %42 = arith.addf %40, %41 : vector<8x8x32xf32>
    %cst_12 = arith.constant 9.99999996E-13 : f32
    %43 = vector.broadcast %cst_12 : f32 to vector<8x8x32xf32>
    %44 = arith.addf %42, %43 : vector<8x8x32xf32>
    %45 = math.rsqrt %44 : vector<8x8x32xf32>
    %46 = arith.mulf %39, %45 : vector<8x8x32xf32>
    %cst_13 = arith.constant 5.000000e-01 : f32
    %47 = vector.broadcast %cst_13 : f32 to vector<8x8x32xf32>
    %48 = arith.addf %47, %46 : vector<8x8x32xf32>
    %49 = arith.mulf %48, %24 : vector<8x8x32xf32>
    %50 = arith.mulf %48, %37 : vector<8x8x32xf32>
    %51 = tpu.concatenate %49, %50 in 2 : vector<8x8x32xf32>, vector<8x8x32xf32> -> vector<8x8x64xf32>
    %cst_14 = arith.constant 0.000000e+00 : f32
    %52 = vector.broadcast %cst_14 : f32 to vector<8x1x64xf32>
    %cst_15 = arith.constant 0.000000e+00 : f32
    %53 = vector.broadcast %cst_15 : f32 to vector<1x10x64xf32>
    %54 = tpu.concatenate %52, %51, %52 in 1 : vector<8x1x64xf32>, vector<8x8x64xf32>, vector<8x1x64xf32> -> vector<8x10x64xf32>
    %55 = tpu.concatenate %53, %54, %53 in 0 : vector<1x10x64xf32>, vector<8x10x64xf32>, vector<1x10x64xf32> -> vector<10x10x64xf32>
    %cst_16 = arith.constant 0.000000e+00 : f32
    %56 = vector.broadcast %cst_16 : f32 to vector<64x16xf32>
    %57 = vector.extract_strided_slice %55 {offsets = [0, 0, 0], sizes = [8, 8, 64], strides = [1, 1, 1]} : vector<10x10x64xf32> to vector<8x8x64xf32>
    %58 = vector.shape_cast %57 : vector<8x8x64xf32> to vector<64x64xf32>
    %c0_17 = arith.constant 0 : index
    %c0_18 = arith.constant 0 : index
    %c0_19 = arith.constant 0 : index
    %59 = vector.load %arg3[%c0_17, %c0_18, %c0_19] : memref<9x64x16xf32, #tpu.memory_space<vmem>>, vector<1x64x16xf32>
    %60 = vector.shape_cast %59 : vector<1x64x16xf32> to vector<64x16xf32>
    %cst_20 = arith.constant dense<0.000000e+00> : vector<64x16xf32>
    %61 = tpu.matmul %58, %60, %cst_20 {dimension_numbers = #tpu.dot_dimension_numbers<[1], [0], [0], [1], [0, 0, 1, 1], [], []>} : vector<64x64xf32>, vector<64x16xf32>, vector<64x16xf32> -> vector<64x16xf32>
    %62 = arith.addf %56, %61 : vector<64x16xf32>
    %63 = vector.extract_strided_slice %55 {offsets = [0, 1, 0], sizes = [8, 8, 64], strides = [1, 1, 1]} : vector<10x10x64xf32> to vector<8x8x64xf32>
    %64 = vector.shape_cast %63 : vector<8x8x64xf32> to vector<64x64xf32>
    %c1_21 = arith.constant 1 : index
    %c0_22 = arith.constant 0 : index
    %c0_23 = arith.constant 0 : index
    %65 = vector.load %arg3[%c1_21, %c0_22, %c0_23] : memref<9x64x16xf32, #tpu.memory_space<vmem>>, vector<1x64x16xf32>
    %66 = vector.shape_cast %65 : vector<1x64x16xf32> to vector<64x16xf32>
    %cst_24 = arith.constant dense<0.000000e+00> : vector<64x16xf32>
    %67 = tpu.matmul %64, %66, %cst_24 {dimension_numbers = #tpu.dot_dimension_numbers<[1], [0], [0], [1], [0, 0, 1, 1], [], []>} : vector<64x64xf32>, vector<64x16xf32>, vector<64x16xf32> -> vector<64x16xf32>
    %68 = arith.addf %62, %67 : vector<64x16xf32>
    %69 = vector.extract_strided_slice %55 {offsets = [0, 2, 0], sizes = [8, 8, 64], strides = [1, 1, 1]} : vector<10x10x64xf32> to vector<8x8x64xf32>
    %70 = vector.shape_cast %69 : vector<8x8x64xf32> to vector<64x64xf32>
    %c2_25 = arith.constant 2 : index
    %c0_26 = arith.constant 0 : index
    %c0_27 = arith.constant 0 : index
    %71 = vector.load %arg3[%c2_25, %c0_26, %c0_27] : memref<9x64x16xf32, #tpu.memory_space<vmem>>, vector<1x64x16xf32>
    %72 = vector.shape_cast %71 : vector<1x64x16xf32> to vector<64x16xf32>
    %cst_28 = arith.constant dense<0.000000e+00> : vector<64x16xf32>
    %73 = tpu.matmul %70, %72, %cst_28 {dimension_numbers = #tpu.dot_dimension_numbers<[1], [0], [0], [1], [0, 0, 1, 1], [], []>} : vector<64x64xf32>, vector<64x16xf32>, vector<64x16xf32> -> vector<64x16xf32>
    %74 = arith.addf %68, %73 : vector<64x16xf32>
    %75 = vector.extract_strided_slice %55 {offsets = [1, 0, 0], sizes = [8, 8, 64], strides = [1, 1, 1]} : vector<10x10x64xf32> to vector<8x8x64xf32>
    %76 = vector.shape_cast %75 : vector<8x8x64xf32> to vector<64x64xf32>
    %c3_29 = arith.constant 3 : index
    %c0_30 = arith.constant 0 : index
    %c0_31 = arith.constant 0 : index
    %77 = vector.load %arg3[%c3_29, %c0_30, %c0_31] : memref<9x64x16xf32, #tpu.memory_space<vmem>>, vector<1x64x16xf32>
    %78 = vector.shape_cast %77 : vector<1x64x16xf32> to vector<64x16xf32>
    %cst_32 = arith.constant dense<0.000000e+00> : vector<64x16xf32>
    %79 = tpu.matmul %76, %78, %cst_32 {dimension_numbers = #tpu.dot_dimension_numbers<[1], [0], [0], [1], [0, 0, 1, 1], [], []>} : vector<64x64xf32>, vector<64x16xf32>, vector<64x16xf32> -> vector<64x16xf32>
    %80 = arith.addf %74, %79 : vector<64x16xf32>
    %81 = vector.extract_strided_slice %55 {offsets = [1, 1, 0], sizes = [8, 8, 64], strides = [1, 1, 1]} : vector<10x10x64xf32> to vector<8x8x64xf32>
    %82 = vector.shape_cast %81 : vector<8x8x64xf32> to vector<64x64xf32>
    %c4_33 = arith.constant 4 : index
    %c0_34 = arith.constant 0 : index
    %c0_35 = arith.constant 0 : index
    %83 = vector.load %arg3[%c4_33, %c0_34, %c0_35] : memref<9x64x16xf32, #tpu.memory_space<vmem>>, vector<1x64x16xf32>
    %84 = vector.shape_cast %83 : vector<1x64x16xf32> to vector<64x16xf32>
    %cst_36 = arith.constant dense<0.000000e+00> : vector<64x16xf32>
    %85 = tpu.matmul %82, %84, %cst_36 {dimension_numbers = #tpu.dot_dimension_numbers<[1], [0], [0], [1], [0, 0, 1, 1], [], []>} : vector<64x64xf32>, vector<64x16xf32>, vector<64x16xf32> -> vector<64x16xf32>
    %86 = arith.addf %80, %85 : vector<64x16xf32>
    %87 = vector.extract_strided_slice %55 {offsets = [1, 2, 0], sizes = [8, 8, 64], strides = [1, 1, 1]} : vector<10x10x64xf32> to vector<8x8x64xf32>
    %88 = vector.shape_cast %87 : vector<8x8x64xf32> to vector<64x64xf32>
    %c5_37 = arith.constant 5 : index
    %c0_38 = arith.constant 0 : index
    %c0_39 = arith.constant 0 : index
    %89 = vector.load %arg3[%c5_37, %c0_38, %c0_39] : memref<9x64x16xf32, #tpu.memory_space<vmem>>, vector<1x64x16xf32>
    %90 = vector.shape_cast %89 : vector<1x64x16xf32> to vector<64x16xf32>
    %cst_40 = arith.constant dense<0.000000e+00> : vector<64x16xf32>
    %91 = tpu.matmul %88, %90, %cst_40 {dimension_numbers = #tpu.dot_dimension_numbers<[1], [0], [0], [1], [0, 0, 1, 1], [], []>} : vector<64x64xf32>, vector<64x16xf32>, vector<64x16xf32> -> vector<64x16xf32>
    %92 = arith.addf %86, %91 : vector<64x16xf32>
    %93 = vector.extract_strided_slice %55 {offsets = [2, 0, 0], sizes = [8, 8, 64], strides = [1, 1, 1]} : vector<10x10x64xf32> to vector<8x8x64xf32>
    %94 = vector.shape_cast %93 : vector<8x8x64xf32> to vector<64x64xf32>
    %c6_41 = arith.constant 6 : index
    %c0_42 = arith.constant 0 : index
    %c0_43 = arith.constant 0 : index
    %95 = vector.load %arg3[%c6_41, %c0_42, %c0_43] : memref<9x64x16xf32, #tpu.memory_space<vmem>>, vector<1x64x16xf32>
    %96 = vector.shape_cast %95 : vector<1x64x16xf32> to vector<64x16xf32>
    %cst_44 = arith.constant dense<0.000000e+00> : vector<64x16xf32>
    %97 = tpu.matmul %94, %96, %cst_44 {dimension_numbers = #tpu.dot_dimension_numbers<[1], [0], [0], [1], [0, 0, 1, 1], [], []>} : vector<64x64xf32>, vector<64x16xf32>, vector<64x16xf32> -> vector<64x16xf32>
    %98 = arith.addf %92, %97 : vector<64x16xf32>
    %99 = vector.extract_strided_slice %55 {offsets = [2, 1, 0], sizes = [8, 8, 64], strides = [1, 1, 1]} : vector<10x10x64xf32> to vector<8x8x64xf32>
    %100 = vector.shape_cast %99 : vector<8x8x64xf32> to vector<64x64xf32>
    %c7_45 = arith.constant 7 : index
    %c0_46 = arith.constant 0 : index
    %c0_47 = arith.constant 0 : index
    %101 = vector.load %arg3[%c7_45, %c0_46, %c0_47] : memref<9x64x16xf32, #tpu.memory_space<vmem>>, vector<1x64x16xf32>
    %102 = vector.shape_cast %101 : vector<1x64x16xf32> to vector<64x16xf32>
    %cst_48 = arith.constant dense<0.000000e+00> : vector<64x16xf32>
    %103 = tpu.matmul %100, %102, %cst_48 {dimension_numbers = #tpu.dot_dimension_numbers<[1], [0], [0], [1], [0, 0, 1, 1], [], []>} : vector<64x64xf32>, vector<64x16xf32>, vector<64x16xf32> -> vector<64x16xf32>
    %104 = arith.addf %98, %103 : vector<64x16xf32>
    %105 = vector.extract_strided_slice %55 {offsets = [2, 2, 0], sizes = [8, 8, 64], strides = [1, 1, 1]} : vector<10x10x64xf32> to vector<8x8x64xf32>
    %106 = vector.shape_cast %105 : vector<8x8x64xf32> to vector<64x64xf32>
    %c8 = arith.constant 8 : index
    %c0_49 = arith.constant 0 : index
    %c0_50 = arith.constant 0 : index
    %107 = vector.load %arg3[%c8, %c0_49, %c0_50] : memref<9x64x16xf32, #tpu.memory_space<vmem>>, vector<1x64x16xf32>
    %108 = vector.shape_cast %107 : vector<1x64x16xf32> to vector<64x16xf32>
    %cst_51 = arith.constant dense<0.000000e+00> : vector<64x16xf32>
    %109 = tpu.matmul %106, %108, %cst_51 {dimension_numbers = #tpu.dot_dimension_numbers<[1], [0], [0], [1], [0, 0, 1, 1], [], []>} : vector<64x64xf32>, vector<64x16xf32>, vector<64x16xf32> -> vector<64x16xf32>
    %110 = arith.addf %104, %109 : vector<64x16xf32>
    %111 = vector.shape_cast %110 : vector<64x16xf32> to vector<1x8x8x16xf32>
    %c0_52 = arith.constant 0 : index
    %c0_53 = arith.constant 0 : index
    %c0_54 = arith.constant 0 : index
    %c0_55 = arith.constant 0 : index
    %112 = vector.load %arg4[%c0_52, %c0_53, %c0_54, %c0_55] : memref<1x8x8x16xf32, #tpu.memory_space<vmem>>, vector<1x8x8x16xf32>
    tpu.vector_store %arg4[%c0_52, %c0_53, %c0_54, %c0_55], %111 {strides = array<i32>} : memref<1x8x8x16xf32, #tpu.memory_space<vmem>>, vector<1x8x8x16xf32>,
    return
  }
  func.func @transform_0(%arg0: i32) -> (i32, i32, i32, i32) {
    %c0_i32 = arith.constant 0 : i32
    %c0_i32_0 = arith.constant 0 : i32
    %c0_i32_1 = arith.constant 0 : i32
    %c0_i32_2 = arith.constant 0 : i32
    return %arg0, %c0_i32, %c0_i32_0, %c0_i32_1 : i32, i32, i32, i32
  }
  func.func @transform_1(%arg0: i32) -> (i32, i32) {
    %c0_i32 = arith.constant 0 : i32
    %c0_i32_0 = arith.constant 0 : i32
    %c0_i32_1 = arith.constant 0 : i32
    return %c0_i32, %c0_i32_0 : i32, i32
  }
  func.func @transform_2(%arg0: i32) -> (i32, i32, i32) {
    %c0_i32 = arith.constant 0 : i32
    %c0_i32_0 = arith.constant 0 : i32
    %c0_i32_1 = arith.constant 0 : i32
    %c0_i32_2 = arith.constant 0 : i32
    return %c0_i32, %c0_i32_0, %c0_i32_1 : i32, i32, i32
  }
  func.func @transform_3(%arg0: i32) -> (i32, i32, i32, i32) {
    %c0_i32 = arith.constant 0 : i32
    %c0_i32_0 = arith.constant 0 : i32
    %c0_i32_1 = arith.constant 0 : i32
    %c0_i32_2 = arith.constant 0 : i32
    return %arg0, %c0_i32, %c0_i32_0, %c0_i32_1 : i32, i32, i32, i32
  }
}

</mosaic_0001>

<llo_original>
// kernel: custom-call.1
$region0: #{custom-call.1}
  %s0 = inlined_call_operand.hbm [shape: c64[2,16,8,8], index: 0, kind: input, shape index: {}]
  %s1 = inlined_call_operand.vmem [shape: f32[2,16,8,8], index: 1, kind: output, shape index: {}]
  %s2 = scalar_lea.hbm %s0, 2048
  $region1: #{custom-call.1} parent=0
    #allocation0 [shape = 's32[1]{0}', space=sflag, size = 0x4, scoped, tag = 'scoped memory for custom-call.1']
    %3 = vsyncpa [#allocation0], 0
    %s4 = sshll.u32 %s1, 4
    %s5 = int_to_ptr.vmem [resolvable:$true] %s4
    %7 = dma.hbm_to_vmem [thread:$0]  %s2, 2048, %s5, [#allocation0]
    %8 = dma.done [#allocation0], 2048
    %9 = vsyncpa [#allocation0], 1

// kernel: neg.13
$region0: #{neg.13}
  #allocation2 [shape = 's32[1]{0}', space=sflag, size = 0x4, scoped, tag = 'scoped memory for neg.13']
  %s0 = inlined_call_operand.hbm [shape: f32[16,32], index: 0, kind: input, shape index: {}]
  %s1 = inlined_call_operand.vmem [shape: f32[16,32], index: 1, kind: output, shape index: {}]
  $region1: #{neg.13} parent=0
    #allocation0 [shape = 'u8[8192]{0}', space=vmem, size = 0x2000, scoped, tag = 'operand span for operand 0']
    #allocation1 [shape = 's32[1]{0}', space=sflag, size = 0x4, scoped, tag = 'scoped memory for neg.13']
    %2 = vsyncpa [#allocation1], 0
    %s4 = ssub.s32 256, 256
    %5 = vsyncadd [#allocation1], %s4
    %s6 = sshll.u32 [#allocation0], 4
    %s7 = int_to_ptr.vmem [resolvable:$true] %s6
    %12 = dma.hbm_to_vmem [thread:$0]  %s0, 256, %s7, [#allocation1], 128, 128, 8
    %13 = dma.done [#allocation1], 256
    %v14 = vld [vmem:[#allocation0] sm:$0xff]
    %15 = xla_tuple %v14
    %16 = xla_tuple %15
    %v17 = vxor.u32 %v14, 2147483648
    %18 = xla_tuple %v17
    %19 = vst [vmem:[%s1] sm:$0xff] %v17
    %s20 = scalar_lea.vmem [#allocation0], 8
    %v21 = vld [vmem:[%s20] sm:$0xff]
    %22 = xla_tuple %v21
    %23 = xla_tuple %22
    %v24 = vxor.u32 %v21, 2147483648
    %25 = xla_tuple %v24
    %s26 = scalar_lea.vmem %s1, 8
    %27 = vst [vmem:[%s26] sm:$0xff] %v24
    %28 = vsyncpa [#allocation1], 1

// kernel: custom-call
$region0: #{custom-call}
  %s0 = inlined_call_operand.hbm [shape: c64[2,16,8,8], index: 0, kind: input, shape index: {}]
  %s1 = inlined_call_operand.vmem [shape: f32[2,16,8,8], index: 1, kind: output, shape index: {}]
  $region1: #{custom-call} parent=0
    #allocation0 [shape = 's32[1]{0}', space=sflag, size = 0x4, scoped, tag = 'scoped memory for custom-call']
    %2 = vsyncpa [#allocation0], 0
    %s3 = sshll.u32 %s1, 4
    %s4 = int_to_ptr.vmem [resolvable:$true] %s3
    %6 = dma.hbm_to_vmem [thread:$0]  %s0, 2048, %s4, [#allocation0]
    %7 = dma.done [#allocation0], 2048
    %8 = vsyncpa [#allocation0], 1

// kernel: dense_layer_forward.3
$region0: #{dense_layer_forward.3}
  #allocation0 [shape = 'u32[]', space=smem, size = 0x4, offset = 0x4, fixed_abs, tag = 'smem constant byte address 0x4 - core index']
  #allocation1 [shape = 'u32[144,128]{1,0:T(1,128)}', space=vmem, size = 0x12000, scoped, tag = 'internal scratch']
  %s0 = inlined_call_operand.vmem [shape: f32[128,32], index: 0, kind: input, shape index: {}]
  %s1 = inlined_call_operand.vmem [shape: f32[2,5,16], index: 1, kind: output, shape index: {}]
  %s2 = sld [smem:[#allocation0]]
  $region41: #{dense_layer_forward.3} parent=0
    _
  %s4 = ssub.s32 1, %s2
  %s5 = scalar_select 0, %s4, %s2
  loop: start=0, step=1, limit=4
  $region2: #{dense_layer_forward.3} parent=0 // loop_pre_header
    _
  $region3: #{dense_layer_forward.3} parent=0 // loop_header
    %s7 = sphi 0, %s11
    %p8 = scmp.ge.s32.totalorder %s7, 4
    %s14 = sphi 0, %s26
    %s15 = sphi 0, %s22
    %s16 = sphi 0, %s14
    %s17 = sphi 0, %s15
    %s18 = sphi 0, %s16
    %s19 = sphi 0, %s17
    %s31 = sphi 0, %s33
    %s34 = sphi 0, %s31
    %s35 = sphi 0, %s34
    %s51 = sphi 0, %s35
    %s57 = sphi 0, %s59
    %s60 = sphi 0, %s57
    %s61 = sphi 0, %s60
    %s77 = sphi 0, %s61
  $region4: #{dense_layer_forward.3} parent=0 // loop_header_branch
    %10 = sbr.rel (%p8) target = $region8
  $region5: #{dense_layer_forward.3} parent=0 // loop_body
    %s12 = ssub.s32 %s7, 1
    %s13 = ssub.s32 %s7, 2
    %s20 = sadd.s32 1, %s15
    %p21 = scmp.ge.s32.totalorder %s20, 1
    %s22 = scalar_select %p21, 0, %s20
    %s23 = sadd.s32 1, %s14
    %s24 = scalar_select %p21, %s23, %s14
    %p25 = scmp.ge.s32.totalorder %s24, 2
    %s26 = scalar_select %p25, 0, %s24
    %s27 = sadd.s32 %s14, %s15
    %s28 = sadd.s32 %s26, %s22
    %s29 = ssub.s32 %s27, %s28
    %p30 = scmp.eq.s32.totalorder %s29, 0
    %s32 = sadd.s32 %s31, 1
    %s33 = scalar_select %p30, %s31, %s32
    %p36 = pneg %p30
    %p37 = scmp.eq.s32.totalorder %s7, 1
    %p38 = por %p36, %p37
    %p39 = scmp.ne.s32.totalorder %s31, %s34
    %p40 = scmp.eq.s32.totalorder %s7, 0
    %p41 = por %p39, %p40
    %p42 = scmp.ne.s32.totalorder %s31, %s34
    %p43 = scmp.eq.s32.totalorder %s12, 1
    %p44 = por %p42, %p43
    %p45 = scmp.ne.s32.totalorder %s34, %s35
    %p46 = scmp.eq.s32.totalorder %s12, 0
    %p47 = por %p45, %p46
    %p48 = scmp.ne.s32.totalorder %s34, %s35
    %p49 = scmp.eq.s32.totalorder %s13, 1
    %p50 = por %p48, %p49
    %p52 = scmp.ne.s32.totalorder %s35, %s51
    %p53 = scmp.eq.s32.totalorder %s13, 0
    %p54 = por %p52, %p53
    %s55 = ssub.s32 %s14, %s26
    %p56 = scmp.eq.s32.totalorder %s55, 0
    %s58 = sadd.s32 %s57, 1
    %s59 = scalar_select %p56, %s57, %s58
    %p62 = pneg %p56
    %p63 = scmp.eq.s32.totalorder %s7, 1
    %p64 = por %p62, %p63
    %p65 = scmp.ne.s32.totalorder %s57, %s60
    %p66 = scmp.eq.s32.totalorder %s7, 0
    %p67 = por %p65, %p66
    %p68 = scmp.ne.s32.totalorder %s57, %s60
    %p69 = scmp.eq.s32.totalorder %s12, 1
    %p70 = por %p68, %p69
    %p71 = scmp.ne.s32.totalorder %s60, %s61
    %p72 = scmp.eq.s32.totalorder %s12, 0
    %p73 = por %p71, %p72
    %p74 = scmp.ne.s32.totalorder %s60, %s61
    %p75 = scmp.eq.s32.totalorder %s13, 1
    %p76 = por %p74, %p75
    %p78 = scmp.ne.s32.totalorder %s61, %s77
    %p79 = scmp.eq.s32.totalorder %s13, 0
    %p80 = por %p78, %p79
    %p81 = scmp.le.s32.totalorder 1, %s7
    %p82 = scmp.lt.s32.totalorder %s7, 3
    %p83 = pnand %p81, %p82
    %p84 = pneg %p83
    // Predicated region
    $region9: #{dense_layer_forward.3} parent=5 // pred_check
      _
    $region10: #{dense_layer_forward.3} parent=5 // pred_check_branch
      %86 = sbr.rel (%p83) target = $region12
    $region11: #{dense_layer_forward.3} parent=5 // pred_region
      %s87 = ssub.s32 %s7, 1
    $region12: #{dense_layer_forward.3} parent=5 // pred_fallthru
      _
    %p88 = scmp.lt.s32.totalorder %s7, 2
    // Predicated region
    $region13: #{dense_layer_forward.3} parent=5 // pred_check
      %p89 = pneg %p88
    $region14: #{dense_layer_forward.3} parent=5 // pred_check_branch
      %91 = sbr.rel (%p89) target = $region16
    $region15: #{dense_layer_forward.3} parent=5 // pred_region
      // Predicated region
      $region17: #{dense_layer_forward.3} parent=15 // pred_check
        %p92 = pneg %p41
      $region18: #{dense_layer_forward.3} parent=15 // pred_check_branch
        %94 = sbr.rel (%p92) target = $region20
      $region19: #{dense_layer_forward.3} parent=15 // pred_region
        %s95 = sadd.s32 %s14, %s15
        %s96 = smul.u32 8, %s95
        %p97 = scmp.lt.s32.totalorder %s96, 15
        %s98 = scalar_select %p97, %s96, 15
        %s99 = smul.addr %s98, 8
        %s100 = scalar_lea.vmem %s0, %s99
        %s101 = sadd.s32 %s14, %s15
        %s102 = smul.u32 8, %s101
      $region20: #{dense_layer_forward.3} parent=15 // pred_fallthru
        _
    $region16: #{dense_layer_forward.3} parent=5 // pred_fallthru
      _
    %p103 = scmp.le.s32.totalorder 1, %s7
    %p104 = scmp.lt.s32.totalorder %s7, 3
    %p105 = pnand %p103, %p104
    %p106 = pneg %p105
    // Predicated region
    $region21: #{dense_layer_forward.3} parent=5 // pred_check
      _
    $region22: #{dense_layer_forward.3} parent=5 // pred_check_branch
      %108 = sbr.rel (%p105) target = $region24
    $region23: #{dense_layer_forward.3} parent=5 // pred_region
      %s109 = ssub.s32 %s7, 1
      %s110 = sadd.s32 %s16, %s17
      %s111 = smul.u32 8, %s110
      %p112 = scmp.lt.s32.totalorder %s111, 15
      %s113 = scalar_select %p112, %s111, 15
      %s114 = smul.addr %s113, 8
      %s115 = scalar_lea.vmem %s0, %s114
      %p116 = pneg %p47
      %p117 = pneg %p44
      %p118 = pneg %p73
      %p119 = pneg %p70
      %p120 = scmp.lt.s32.totalorder %s16, 1
      %s121 = scalar_select %p120, %s16, 1
      %s122 = smul.addr %s121, 8
      %s123 = scalar_lea.vmem %s1, %s122
      %s124 = sadd.s32 %s16, %s17
      %s125 = smul.u32 8, %s124
      %p126 = scmp.lt.s32.totalorder %s125, 15
      %s127 = scalar_select %p126, %s125, 15
      %s128 = smul.addr %s127, 8
      %s129 = scalar_lea.vmem %s0, %s128
      %s130 = sadd.s32 %s16, %s17
      %s131 = smul.u32 8, %s130
      %p132 = scmp.lt.s32.totalorder %s16, 1
      %s133 = scalar_select %p132, %s16, 1
      %s134 = smul.addr %s133, 8
      %s135 = scalar_lea.vmem %s1, %s134
      %p136 = scmp.eq.s32.totalorder %s17, 0
      // Predicated region
      $region25: #{dense_layer_forward.3} parent=23 // pred_check
        %p137 = pneg %p136
      $region26: #{dense_layer_forward.3} parent=23 // pred_check_branch
        %139 = sbr.rel (%p137) target = $region28
      $region27: #{dense_layer_forward.3} parent=23 // pred_region
        %vm140 = vcmask 126976
        %141 = vst.msk [vmem:[%s135] sm:$0x1f] %vm140, 0.0
      $region28: #{dense_layer_forward.3} parent=23 // pred_fallthru
        _
      %v142 = vld [vmem:[%s129] sm:$0xff]
      %v143 = vld [vmem:[%s129 + $0x8] sm:$0xff]
      %v144 = vld [vmem:[%s129 + $0x10] sm:$0xff]
      %v145 = vld [vmem:[%s129 + $0x18] sm:$0xff]
      %v146 = vld [vmem:[%s129 + $0x20] sm:$0xff]
      %v147 = vld [vmem:[%s129 + $0x28] sm:$0xff]
      %v148 = vld [vmem:[%s129 + $0x30] sm:$0xff]
      %v149 = vld [vmem:[%s129 + $0x38] sm:$0xff]
      %vm150 = vcmask 130048
      %v151 = vsel %vm150, %v142, 0.0
      %v152 = vsel %vm150, %v143, 0.0
      %v153 = vadd.f32 %v151, %v152
      %v154 = vsel %vm150, %v144, 0.0
      %v155 = vadd.f32 %v153, %v154
      %v156 = vsel %vm150, %v145, 0.0
      %v157 = vadd.f32 %v155, %v156
      %v158 = vsel %vm150, %v146, 0.0
      %v159 = vadd.f32 %v157, %v158
      %v160 = vsel %vm150, %v147, 0.0
      %v161 = vadd.f32 %v159, %v160
      %v162 = vsel %vm150, %v148, 0.0
      %v163 = vadd.f32 %v161, %v162
      %v164 = vsel %vm150, %v149, 0.0
      %v165 = vadd.f32 %v163, %v164
      %v166 = vrot.slane %v165, 4
      %v167 = vadd.f32 %v165, %v166
      %v168 = vrot.slane %v167, 2
      %v169 = vadd.f32 %v167, %v168
      %v170 = vrot.slane %v169, 1
      %v171 = vadd.f32 %v169, %v170
      %vm172 = vcmask 261248
      %v173 = vsel %vm172, %v142, 0.0
      %v174 = vsel %vm172, %v143, 0.0
      %v175 = vadd.f32 %v173, %v174
      %v176 = vsel %vm172, %v144, 0.0
      %v177 = vadd.f32 %v175, %v176
      %v178 = vsel %vm172, %v145, 0.0
      %v179 = vadd.f32 %v177, %v178
      %v180 = vsel %vm172, %v146, 0.0
      %v181 = vadd.f32 %v179, %v180
      %v182 = vsel %vm172, %v147, 0.0
      %v183 = vadd.f32 %v181, %v182
      %v184 = vsel %vm172, %v148, 0.0
      %v185 = vadd.f32 %v183, %v184
      %v186 = vsel %vm172, %v149, 0.0
      %v187 = vadd.f32 %v185, %v186
      %v188 = vrot.slane %v187, 4
      %v189 = vadd.f32 %v187, %v188
      %v190 = vrot.slane %v189, 2
      %v191 = vadd.f32 %v189, %v190
      %v192 = vrot.slane %v191, 1
      %v193 = vadd.f32 %v191, %v192
      %v194 = vmul.f32 %v142, %v142
      %v195 = vmul.f32 %v143, %v143
      %v196 = vmul.f32 %v144, %v144
      %v197 = vmul.f32 %v145, %v145
      %v198 = vmul.f32 %v146, %v146
      %v199 = vmul.f32 %v147, %v147
      %v200 = vmul.f32 %v148, %v148
      %v201 = vmul.f32 %v149, %v149
      %v202 = vsel %vm150, %v194, 0.0
      %v203 = vsel %vm150, %v195, 0.0
      %v204 = vadd.f32 %v202, %v203
      %v205 = vsel %vm150, %v196, 0.0
      %v206 = vadd.f32 %v204, %v205
      %v207 = vsel %vm150, %v197, 0.0
      %v208 = vadd.f32 %v206, %v207
      %v209 = vsel %vm150, %v198, 0.0
      %v210 = vadd.f32 %v208, %v209
      %v211 = vsel %vm150, %v199, 0.0
      %v212 = vadd.f32 %v210, %v211
      %v213 = vsel %vm150, %v200, 0.0
      %v214 = vadd.f32 %v212, %v213
      %v215 = vsel %vm150, %v201, 0.0
      %v216 = vadd.f32 %v214, %v215
      %v217 = vrot.slane %v216, 4
      %v218 = vadd.f32 %v216, %v217
      %v219 = vrot.slane %v218, 2
      %v220 = vadd.f32 %v218, %v219
      %v221 = vrot.slane %v220, 1
      %v222 = vadd.f32 %v220, %v221
      %v223 = vsel %vm172, %v194, 0.0
      %v224 = vsel %vm172, %v195, 0.0
      %v225 = vadd.f32 %v223, %v224
      %v226 = vsel %vm172, %v196, 0.0
      %v227 = vadd.f32 %v225, %v226
      %v228 = vsel %vm172, %v197, 0.0
      %v229 = vadd.f32 %v227, %v228
      %v230 = vsel %vm172, %v198, 0.0
      %v231 = vadd.f32 %v229, %v230
      %v232 = vsel %vm172, %v199, 0.0
      %v233 = vadd.f32 %v231, %v232
      %v234 = vsel %vm172, %v200, 0.0
      %v235 = vadd.f32 %v233, %v234
      %v236 = vsel %vm172, %v201, 0.0
      %v237 = vadd.f32 %v235, %v236
      %v238 = vrot.slane %v237, 4
      %v239 = vadd.f32 %v237, %v238
      %v240 = vrot.slane %v239, 2
      %v241 = vadd.f32 %v239, %v240
      %v242 = vrot.slane %v241, 1
      %v243 = vadd.f32 %v241, %v242
      %252 = vrot.lane.b32.xlu0 %v142, 112
      %v253 = vpop.permute.xlu0 %252
      %254 = vrot.lane.b32.xlu0 %v143, 112
      %v255 = vpop.permute.xlu0 %254
      %256 = vrot.lane.b32.xlu0 %v144, 112
      %v257 = vpop.permute.xlu0 %256
      %258 = vrot.lane.b32.xlu0 %v145, 112
      %v259 = vpop.permute.xlu0 %258
      %260 = vrot.lane.b32.xlu0 %v146, 112
      %v261 = vpop.permute.xlu0 %260
      %262 = vrot.lane.b32.xlu0 %v147, 112
      %v263 = vpop.permute.xlu0 %262
      %264 = vrot.lane.b32.xlu0 %v148, 112
      %v265 = vpop.permute.xlu0 %264
      %266 = vrot.lane.b32.xlu0 %v149, 112
      %v267 = vpop.permute.xlu0 %266
      %v276 = vmul.f32 %v142, %v253
      %v277 = vmul.f32 %v143, %v255
      %v278 = vmul.f32 %v144, %v257
      %v279 = vmul.f32 %v145, %v259
      %v280 = vmul.f32 %v146, %v261
      %v281 = vmul.f32 %v147, %v263
      %v282 = vmul.f32 %v148, %v265
      %v283 = vmul.f32 %v149, %v267
      %v284 = vsel %vm150, %v276, 0.0
      %v285 = vsel %vm150, %v277, 0.0
      %v286 = vadd.f32 %v284, %v285
      %v287 = vsel %vm150, %v278, 0.0
      %v288 = vadd.f32 %v286, %v287
      %v289 = vsel %vm150, %v279, 0.0
      %v290 = vadd.f32 %v288, %v289
      %v291 = vsel %vm150, %v280, 0.0
      %v292 = vadd.f32 %v290, %v291
      %v293 = vsel %vm150, %v281, 0.0
      %v294 = vadd.f32 %v292, %v293
      %v295 = vsel %vm150, %v282, 0.0
      %v296 = vadd.f32 %v294, %v295
      %v297 = vsel %vm150, %v283, 0.0
      %v298 = vadd.f32 %v296, %v297
      %v299 = vrot.slane %v298, 4
      %v300 = vadd.f32 %v298, %v299
      %v301 = vrot.slane %v300, 2
      %v302 = vadd.f32 %v300, %v301
      %v303 = vrot.slane %v302, 1
      %v304 = vadd.f32 %v302, %v303
      %306 = vrot.lane.b32.xlu0 %v193, 112
      %v307 = vpop.permute.xlu0 %306
      %310 = vrot.lane.b32.xlu0 %v243, 112
      %v311 = vpop.permute.xlu0 %310
      %vm313 = vcmask 1040384
      %v314 = vsel %vm313, %v171, %v307
      %vm315 = vcmask 1041408
      %v316 = vsel %vm315, %v314, %v222
      %vm317 = vcmask 1042432
      %v318 = vsel %vm317, %v316, %v311
      %vm319 = vcmask 1043456
      %v320 = vsel %vm319, %v318, %v304
      %v321 = vld [vmem:[%s135] sm:$0x1f]
      %v322 = vadd.f32 %v321, %v320
      %vm323 = vcmask 126976
      %324 = vst.msk [vmem:[%s135] sm:$0x1f] %vm323, %v322
      %p325 = scmp.lt.s32.totalorder %s16, 1
      %s326 = scalar_select %p325, %s16, 1
      %s327 = smul.addr %s326, 8
      %s328 = scalar_lea.vmem %s1, %s327
      // Predicated region
      $region29: #{dense_layer_forward.3} parent=23 // pred_check
        %p329 = pneg %p70
      $region30: #{dense_layer_forward.3} parent=23 // pred_check_branch
        %331 = sbr.rel (%p329) target = $region32
      $region31: #{dense_layer_forward.3} parent=23 // pred_region
        _
      $region32: #{dense_layer_forward.3} parent=23 // pred_fallthru
        _
    $region24: #{dense_layer_forward.3} parent=5 // pred_fallthru
      _
    %p332 = scmp.le.s32.totalorder 2, %s7
    // Predicated region
    $region33: #{dense_layer_forward.3} parent=5 // pred_check
      %p333 = pneg %p332
    $region34: #{dense_layer_forward.3} parent=5 // pred_check_branch
      %335 = sbr.rel (%p333) target = $region36
    $region35: #{dense_layer_forward.3} parent=5 // pred_region
      %s336 = ssub.s32 %s7, 2
      // Predicated region
      $region37: #{dense_layer_forward.3} parent=35 // pred_check
        %p337 = pneg %p76
      $region38: #{dense_layer_forward.3} parent=35 // pred_check_branch
        %339 = sbr.rel (%p337) target = $region40
      $region39: #{dense_layer_forward.3} parent=35 // pred_region
        %p340 = scmp.lt.s32.totalorder %s18, 1
        %s341 = scalar_select %p340, %s18, 1
        %s342 = smul.addr %s341, 8
        %s343 = scalar_lea.vmem %s1, %s342
      $region40: #{dense_layer_forward.3} parent=35 // pred_fallthru
        _
    $region36: #{dense_layer_forward.3} parent=5 // pred_fallthru
      _
  $region6: #{dense_layer_forward.3} parent=0 // loop_footer
    %s11 = sadd.s32 1, %s7
  $region7: #{dense_layer_forward.3} parent=0 // loop_footer_branch
    %6 = sbr.rel target = $region3
  $region8: #{dense_layer_forward.3} parent=0 // loop_exit
    _

// kernel: custom-call.2
$region0: #{custom-call.2}
  %s0 = inlined_call_operand.vmem [shape: f32[2,8,8,8], index: 0, kind: input, shape index: {}]
  %s1 = inlined_call_operand.vmem [shape: f32[2,8,8,8], index: 1, kind: input, shape index: {}]
  %s2 = inlined_call_operand.vmem [shape: c64[2,8,8,8], index: 2, kind: output, shape index: {}]
  %s4 = scalar_lea.vmem %s2, 128
  %v5 = vld [vmem:[%s0] sm:$0xff]
  %6 = vst [vmem:[%s2] sm:$0xff] %v5
  %s7 = scalar_lea.vmem %s2, 8
  %s8 = scalar_lea.vmem %s0, 8
  %v9 = vld [vmem:[%s8] sm:$0xff]
  %10 = vst [vmem:[%s7] sm:$0xff] %v9
  %s11 = scalar_lea.vmem %s2, 16
  %s12 = scalar_lea.vmem %s0, 16
  %v13 = vld [vmem:[%s12] sm:$0xff]
  %14 = vst [vmem:[%s11] sm:$0xff] %v13
  %s15 = scalar_lea.vmem %s2, 24
  %s16 = scalar_lea.vmem %s0, 24
  %v17 = vld [vmem:[%s16] sm:$0xff]
  %18 = vst [vmem:[%s15] sm:$0xff] %v17
  %s19 = scalar_lea.vmem %s2, 32
  %s20 = scalar_lea.vmem %s0, 32
  %v21 = vld [vmem:[%s20] sm:$0xff]
  %22 = vst [vmem:[%s19] sm:$0xff] %v21
  %s23 = scalar_lea.vmem %s2, 40
  %s24 = scalar_lea.vmem %s0, 40
  %v25 = vld [vmem:[%s24] sm:$0xff]
  %26 = vst [vmem:[%s23] sm:$0xff] %v25
  %s27 = scalar_lea.vmem %s2, 48
  %s28 = scalar_lea.vmem %s0, 48
  %v29 = vld [vmem:[%s28] sm:$0xff]
  %30 = vst [vmem:[%s27] sm:$0xff] %v29
  %s31 = scalar_lea.vmem %s2, 56
  %s32 = scalar_lea.vmem %s0, 56
  %v33 = vld [vmem:[%s32] sm:$0xff]
  %34 = vst [vmem:[%s31] sm:$0xff] %v33
  %s35 = scalar_lea.vmem %s2, 64
  %s36 = scalar_lea.vmem %s0, 64
  %v37 = vld [vmem:[%s36] sm:$0xff]
  %38 = vst [vmem:[%s35] sm:$0xff] %v37
  %s39 = scalar_lea.vmem %s2, 72
  %s40 = scalar_lea.vmem %s0, 72
  %v41 = vld [vmem:[%s40] sm:$0xff]
  %42 = vst [vmem:[%s39] sm:$0xff] %v41
  %s43 = scalar_lea.vmem %s2, 80
  %s44 = scalar_lea.vmem %s0, 80
  %v45 = vld [vmem:[%s44] sm:$0xff]
  %46 = vst [vmem:[%s43] sm:$0xff] %v45
  %s47 = scalar_lea.vmem %s2, 88
  %s48 = scalar_lea.vmem %s0, 88
  %v49 = vld [vmem:[%s48] sm:$0xff]
  %50 = vst [vmem:[%s47] sm:$0xff] %v49
  %s51 = scalar_lea.vmem %s2, 96
  %s52 = scalar_lea.vmem %s0, 96
  %v53 = vld [vmem:[%s52] sm:$0xff]
  %54 = vst [vmem:[%s51] sm:$0xff] %v53
  %s55 = scalar_lea.vmem %s2, 104
  %s56 = scalar_lea.vmem %s0, 104
  %v57 = vld [vmem:[%s56] sm:$0xff]
  %58 = vst [vmem:[%s55] sm:$0xff] %v57
  %s59 = scalar_lea.vmem %s2, 112
  %s60 = scalar_lea.vmem %s0, 112
  %v61 = vld [vmem:[%s60] sm:$0xff]
  %62 = vst [vmem:[%s59] sm:$0xff] %v61
  %s63 = scalar_lea.vmem %s2, 120
  %s64 = scalar_lea.vmem %s0, 120
  %v65 = vld [vmem:[%s64] sm:$0xff]
  %66 = vst [vmem:[%s63] sm:$0xff] %v65
  %v67 = vld [vmem:[%s1] sm:$0xff]
  %68 = vst [vmem:[%s4] sm:$0xff] %v67
  %s69 = scalar_lea.vmem %s4, 8
  %s70 = scalar_lea.vmem %s1, 8
  %v71 = vld [vmem:[%s70] sm:$0xff]
  %72 = vst [vmem:[%s69] sm:$0xff] %v71
  %s73 = scalar_lea.vmem %s4, 16
  %s74 = scalar_lea.vmem %s1, 16
  %v75 = vld [vmem:[%s74] sm:$0xff]
  %76 = vst [vmem:[%s73] sm:$0xff] %v75
  %s77 = scalar_lea.vmem %s4, 24
  %s78 = scalar_lea.vmem %s1, 24
  %v79 = vld [vmem:[%s78] sm:$0xff]
  %80 = vst [vmem:[%s77] sm:$0xff] %v79
  %s81 = scalar_lea.vmem %s4, 32
  %s82 = scalar_lea.vmem %s1, 32
  %v83 = vld [vmem:[%s82] sm:$0xff]
  %84 = vst [vmem:[%s81] sm:$0xff] %v83
  %s85 = scalar_lea.vmem %s4, 40
  %s86 = scalar_lea.vmem %s1, 40
  %v87 = vld [vmem:[%s86] sm:$0xff]
  %88 = vst [vmem:[%s85] sm:$0xff] %v87
  %s89 = scalar_lea.vmem %s4, 48
  %s90 = scalar_lea.vmem %s1, 48
  %v91 = vld [vmem:[%s90] sm:$0xff]
  %92 = vst [vmem:[%s89] sm:$0xff] %v91
  %s93 = scalar_lea.vmem %s4, 56
  %s94 = scalar_lea.vmem %s1, 56
  %v95 = vld [vmem:[%s94] sm:$0xff]
  %96 = vst [vmem:[%s93] sm:$0xff] %v95
  %s97 = scalar_lea.vmem %s4, 64
  %s98 = scalar_lea.vmem %s1, 64
  %v99 = vld [vmem:[%s98] sm:$0xff]
  %100 = vst [vmem:[%s97] sm:$0xff] %v99
  %s101 = scalar_lea.vmem %s4, 72
  %s102 = scalar_lea.vmem %s1, 72
  %v103 = vld [vmem:[%s102] sm:$0xff]
  %104 = vst [vmem:[%s101] sm:$0xff] %v103
  %s105 = scalar_lea.vmem %s4, 80
  %s106 = scalar_lea.vmem %s1, 80
  %v107 = vld [vmem:[%s106] sm:$0xff]
  %108 = vst [vmem:[%s105] sm:$0xff] %v107
  %s109 = scalar_lea.vmem %s4, 88
  %s110 = scalar_lea.vmem %s1, 88
  %v111 = vld [vmem:[%s110] sm:$0xff]
  %112 = vst [vmem:[%s109] sm:$0xff] %v111
  %s113 = scalar_lea.vmem %s4, 96
  %s114 = scalar_lea.vmem %s1, 96
  %v115 = vld [vmem:[%s114] sm:$0xff]
  %116 = vst [vmem:[%s113] sm:$0xff] %v115
  %s117 = scalar_lea.vmem %s4, 104
  %s118 = scalar_lea.vmem %s1, 104
  %v119 = vld [vmem:[%s118] sm:$0xff]
  %120 = vst [vmem:[%s117] sm:$0xff] %v119
  %s121 = scalar_lea.vmem %s4, 112
  %s122 = scalar_lea.vmem %s1, 112
  %v123 = vld [vmem:[%s122] sm:$0xff]
  %124 = vst [vmem:[%s121] sm:$0xff] %v123
  %s125 = scalar_lea.vmem %s4, 120
  %s126 = scalar_lea.vmem %s1, 120
  %v127 = vld [vmem:[%s126] sm:$0xff]
  %128 = vst [vmem:[%s125] sm:$0xff] %v127

// kernel: dense_layer_forward.4
$region0: #{dense_layer_forward.4}
  #allocation0 [shape = 'u32[]', space=smem, size = 0x4, offset = 0x4, fixed_abs, tag = 'smem constant byte address 0x4 - core index']
  #allocation1 [shape = 'u32[144,128]{1,0:T(1,128)}', space=vmem, size = 0x12000, scoped, tag = 'internal scratch']
  %s0 = inlined_call_operand.vmem [shape: f32[128,32], index: 0, kind: input, shape index: {}]
  %s1 = inlined_call_operand.vmem [shape: f32[8,16], index: 1, kind: input, shape index: {}]
  %s2 = inlined_call_operand.vmem [shape: f32[32,64], index: 2, kind: input, shape index: {}]
  %s3 = inlined_call_operand.vmem [shape: f32[128,64], index: 3, kind: output, shape index: {0}]
  %s4 = inlined_call_operand.vmem [shape: f32[2,5,32], index: 4, kind: output, shape index: {1}]
  %5 = xla_tuple %s3, %s4
  %s6 = sld [smem:[#allocation0]]
  $region57: #{dense_layer_forward.4} parent=0
    _
  %s8 = ssub.s32 1, %s6
  %s9 = scalar_select 0, %s8, %s6
  loop: start=0, step=1, limit=4
  $region2: #{dense_layer_forward.4} parent=0 // loop_pre_header
    _
  $region3: #{dense_layer_forward.4} parent=0 // loop_header
    %s11 = sphi 0, %s15
    %p12 = scmp.ge.s32.totalorder %s11, 4
    %s18 = sphi 0, %s30
    %s19 = sphi 0, %s26
    %s20 = sphi 0, %s18
    %s21 = sphi 0, %s19
    %s22 = sphi 0, %s20
    %s23 = sphi 0, %s21
    %s35 = sphi 0, %s37
    %s38 = sphi 0, %s35
    %s39 = sphi 0, %s38
    %s55 = sphi 0, %s39
    %s59 = sphi 0, %s59
    %s61 = sphi 0, %s59
    %s62 = sphi 0, %s61
    %s76 = sphi 0, %s62
    %s80 = sphi 0, %s80
    %s82 = sphi 0, %s80
    %s83 = sphi 0, %s82
    %s97 = sphi 0, %s83
    %s105 = sphi 0, %s107
    %s108 = sphi 0, %s105
    %s109 = sphi 0, %s108
    %s125 = sphi 0, %s109
    %s131 = sphi 0, %s133
    %s134 = sphi 0, %s131
    %s135 = sphi 0, %s134
    %s151 = sphi 0, %s135
  $region4: #{dense_layer_forward.4} parent=0 // loop_header_branch
    %14 = sbr.rel (%p12) target = $region8
  $region5: #{dense_layer_forward.4} parent=0 // loop_body
    %s16 = ssub.s32 %s11, 1
    %s17 = ssub.s32 %s11, 2
    %s24 = sadd.s32 1, %s19
    %p25 = scmp.ge.s32.totalorder %s24, 1
    %s26 = scalar_select %p25, 0, %s24
    %s27 = sadd.s32 1, %s18
    %s28 = scalar_select %p25, %s27, %s18
    %p29 = scmp.ge.s32.totalorder %s28, 2
    %s30 = scalar_select %p29, 0, %s28
    %s31 = sadd.s32 %s18, %s19
    %s32 = sadd.s32 %s30, %s26
    %s33 = ssub.s32 %s31, %s32
    %p34 = scmp.eq.s32.totalorder %s33, 0
    %s36 = sadd.s32 %s35, 1
    %s37 = scalar_select %p34, %s35, %s36
    %p40 = pneg %p34
    %p41 = scmp.eq.s32.totalorder %s11, 1
    %p42 = por %p40, %p41
    %p43 = scmp.ne.s32.totalorder %s35, %s38
    %p44 = scmp.eq.s32.totalorder %s11, 0
    %p45 = por %p43, %p44
    %p46 = scmp.ne.s32.totalorder %s35, %s38
    %p47 = scmp.eq.s32.totalorder %s16, 1
    %p48 = por %p46, %p47
    %p49 = scmp.ne.s32.totalorder %s38, %s39
    %p50 = scmp.eq.s32.totalorder %s16, 0
    %p51 = por %p49, %p50
    %p52 = scmp.ne.s32.totalorder %s38, %s39
    %p53 = scmp.eq.s32.totalorder %s17, 1
    %p54 = por %p52, %p53
    %p56 = scmp.ne.s32.totalorder %s39, %s55
    %p57 = scmp.eq.s32.totalorder %s17, 0
    %p58 = por %p56, %p57
    %s60 = sadd.s32 %s59, 1
    %p63 = scmp.eq.s32.totalorder %s11, 1
    %p64 = scmp.ne.s32.totalorder %s59, %s61
    %p65 = scmp.eq.s32.totalorder %s11, 0
    %p66 = por %p64, %p65
    %p67 = scmp.ne.s32.totalorder %s59, %s61
    %p68 = scmp.eq.s32.totalorder %s16, 1
    %p69 = por %p67, %p68
    %p70 = scmp.ne.s32.totalorder %s61, %s62
    %p71 = scmp.eq.s32.totalorder %s16, 0
    %p72 = por %p70, %p71
    %p73 = scmp.ne.s32.totalorder %s61, %s62
    %p74 = scmp.eq.s32.totalorder %s17, 1
    %p75 = por %p73, %p74
    %p77 = scmp.ne.s32.totalorder %s62, %s76
    %p78 = scmp.eq.s32.totalorder %s17, 0
    %p79 = por %p77, %p78
    %s81 = sadd.s32 %s80, 1
    %p84 = scmp.eq.s32.totalorder %s11, 1
    %p85 = scmp.ne.s32.totalorder %s80, %s82
    %p86 = scmp.eq.s32.totalorder %s11, 0
    %p87 = por %p85, %p86
    %p88 = scmp.ne.s32.totalorder %s80, %s82
    %p89 = scmp.eq.s32.totalorder %s16, 1
    %p90 = por %p88, %p89
    %p91 = scmp.ne.s32.totalorder %s82, %s83
    %p92 = scmp.eq.s32.totalorder %s16, 0
    %p93 = por %p91, %p92
    %p94 = scmp.ne.s32.totalorder %s82, %s83
    %p95 = scmp.eq.s32.totalorder %s17, 1
    %p96 = por %p94, %p95
    %p98 = scmp.ne.s32.totalorder %s83, %s97
    %p99 = scmp.eq.s32.totalorder %s17, 0
    %p100 = por %p98, %p99
    %s101 = sadd.s32 %s18, %s19
    %s102 = sadd.s32 %s30, %s26
    %s103 = ssub.s32 %s101, %s102
    %p104 = scmp.eq.s32.totalorder %s103, 0
    %s106 = sadd.s32 %s105, 1
    %s107 = scalar_select %p104, %s105, %s106
    %p110 = pneg %p104
    %p111 = scmp.eq.s32.totalorder %s11, 1
    %p112 = por %p110, %p111
    %p113 = scmp.ne.s32.totalorder %s105, %s108
    %p114 = scmp.eq.s32.totalorder %s11, 0
    %p115 = por %p113, %p114
    %p116 = scmp.ne.s32.totalorder %s105, %s108
    %p117 = scmp.eq.s32.totalorder %s16, 1
    %p118 = por %p116, %p117
    %p119 = scmp.ne.s32.totalorder %s108, %s109
    %p120 = scmp.eq.s32.totalorder %s16, 0
    %p121 = por %p119, %p120
    %p122 = scmp.ne.s32.totalorder %s108, %s109
    %p123 = scmp.eq.s32.totalorder %s17, 1
    %p124 = por %p122, %p123
    %p126 = scmp.ne.s32.totalorder %s109, %s125
    %p127 = scmp.eq.s32.totalorder %s17, 0
    %p128 = por %p126, %p127
    %s129 = ssub.s32 %s18, %s30
    %p130 = scmp.eq.s32.totalorder %s129, 0
    %s132 = sadd.s32 %s131, 1
    %s133 = scalar_select %p130, %s131, %s132
    %p136 = pneg %p130
    %p137 = scmp.eq.s32.totalorder %s11, 1
    %p138 = por %p136, %p137
    %p139 = scmp.ne.s32.totalorder %s131, %s134
    %p140 = scmp.eq.s32.totalorder %s11, 0
    %p141 = por %p139, %p140
    %p142 = scmp.ne.s32.totalorder %s131, %s134
    %p143 = scmp.eq.s32.totalorder %s16, 1
    %p144 = por %p142, %p143
    %p145 = scmp.ne.s32.totalorder %s134, %s135
    %p146 = scmp.eq.s32.totalorder %s16, 0
    %p147 = por %p145, %p146
    %p148 = scmp.ne.s32.totalorder %s134, %s135
    %p149 = scmp.eq.s32.totalorder %s17, 1
    %p150 = por %p148, %p149
    %p152 = scmp.ne.s32.totalorder %s135, %s151
    %p153 = scmp.eq.s32.totalorder %s17, 0
    %p154 = por %p152, %p153
    %p155 = scmp.le.s32.totalorder 1, %s11
    %p156 = scmp.lt.s32.totalorder %s11, 3
    %p157 = pnand %p155, %p156
    %p158 = pneg %p157
    // Predicated region
    $region9: #{dense_layer_forward.4} parent=5 // pred_check
      _
    $region10: #{dense_layer_forward.4} parent=5 // pred_check_branch
      %160 = sbr.rel (%p157) target = $region12
    $region11: #{dense_layer_forward.4} parent=5 // pred_region
      %s161 = ssub.s32 %s11, 1
      // Predicated region
      $region13: #{dense_layer_forward.4} parent=11 // pred_check
        %p162 = pneg %p72
      $region14: #{dense_layer_forward.4} parent=11 // pred_check_branch
        %164 = sbr.rel (%p162) target = $region16
      $region15: #{dense_layer_forward.4} parent=11 // pred_region
        _
      $region16: #{dense_layer_forward.4} parent=11 // pred_fallthru
        _
      // Predicated region
      $region17: #{dense_layer_forward.4} parent=11 // pred_check
        %p165 = pneg %p93
      $region18: #{dense_layer_forward.4} parent=11 // pred_check_branch
        %167 = sbr.rel (%p165) target = $region20
      $region19: #{dense_layer_forward.4} parent=11 // pred_region
        _
      $region20: #{dense_layer_forward.4} parent=11 // pred_fallthru
        _
    $region12: #{dense_layer_forward.4} parent=5 // pred_fallthru
      _
    %p168 = scmp.lt.s32.totalorder %s11, 2
    // Predicated region
    $region21: #{dense_layer_forward.4} parent=5 // pred_check
      %p169 = pneg %p168
    $region22: #{dense_layer_forward.4} parent=5 // pred_check_branch
      %171 = sbr.rel (%p169) target = $region24
    $region23: #{dense_layer_forward.4} parent=5 // pred_region
      // Predicated region
      $region25: #{dense_layer_forward.4} parent=23 // pred_check
        %p172 = pneg %p45
      $region26: #{dense_layer_forward.4} parent=23 // pred_check_branch
        %174 = sbr.rel (%p172) target = $region28
      $region27: #{dense_layer_forward.4} parent=23 // pred_region
        %s175 = sadd.s32 %s18, %s19
        %s176 = smul.u32 8, %s175
        %p177 = scmp.lt.s32.totalorder %s176, 15
        %s178 = scalar_select %p177, %s176, 15
        %s179 = smul.addr %s178, 8
        %s180 = scalar_lea.vmem %s0, %s179
        %s181 = sadd.s32 %s18, %s19
        %s182 = smul.u32 8, %s181
      $region28: #{dense_layer_forward.4} parent=23 // pred_fallthru
        _
    $region24: #{dense_layer_forward.4} parent=5 // pred_fallthru
      _
    %p183 = scmp.le.s32.totalorder 1, %s11
    %p184 = scmp.lt.s32.totalorder %s11, 3
    %p185 = pnand %p183, %p184
    %p186 = pneg %p185
    // Predicated region
    $region29: #{dense_layer_forward.4} parent=5 // pred_check
      _
    $region30: #{dense_layer_forward.4} parent=5 // pred_check_branch
      %188 = sbr.rel (%p185) target = $region32
    $region31: #{dense_layer_forward.4} parent=5 // pred_region
      %s189 = ssub.s32 %s11, 1
      %s190 = sadd.s32 %s20, %s21
      %s191 = smul.u32 8, %s190
      %p192 = scmp.lt.s32.totalorder %s191, 15
      %s193 = scalar_select %p192, %s191, 15
      %s194 = smul.addr %s193, 8
      %s195 = scalar_lea.vmem %s0, %s194
      %p196 = pneg %p51
      %p197 = pneg %p48
      %p198 = pneg %p72
      %p199 = pneg %p69
      %p200 = pneg %p93
      %p201 = pneg %p90
      %p202 = pneg %p121
      %p203 = pneg %p118
      %s204 = sadd.s32 %s20, %s21
      %s205 = smul.u32 8, %s204
      %p206 = scmp.lt.s32.totalorder %s205, 15
      %s207 = scalar_select %p206, %s205, 15
      %s208 = smul.addr %s207, 8
      %s209 = scalar_lea.vmem %s3, %s208
      %p210 = pneg %p147
      %p211 = pneg %p144
      %p212 = scmp.lt.s32.totalorder %s20, 1
      %s213 = scalar_select %p212, %s20, 1
      %s214 = smul.addr %s213, 8
      %s215 = scalar_lea.vmem %s4, %s214
      %s216 = sadd.s32 %s20, %s21
      %s217 = smul.u32 8, %s216
      %p218 = scmp.lt.s32.totalorder %s217, 15
      %s219 = scalar_select %p218, %s217, 15
      %s220 = smul.addr %s219, 8
      %s221 = scalar_lea.vmem %s0, %s220
      %s222 = sadd.s32 %s20, %s21
      %s223 = smul.u32 8, %s222
      %s224 = sadd.s32 %s20, %s21
      %s225 = smul.u32 8, %s224
      %p226 = scmp.lt.s32.totalorder %s225, 15
      %s227 = scalar_select %p226, %s225, 15
      %s228 = smul.addr %s227, 8
      %s229 = scalar_lea.vmem %s3, %s228
      %s230 = sadd.s32 %s20, %s21
      %s231 = smul.u32 8, %s230
      %p232 = scmp.lt.s32.totalorder %s20, 1
      %s233 = scalar_select %p232, %s20, 1
      %s234 = smul.addr %s233, 8
      %s235 = scalar_lea.vmem %s4, %s234
      %p236 = scmp.eq.s32.totalorder %s21, 0
      // Predicated region
      $region33: #{dense_layer_forward.4} parent=31 // pred_check
        %p237 = pneg %p236
      $region34: #{dense_layer_forward.4} parent=31 // pred_check_branch
        %239 = sbr.rel (%p237) target = $region36
      $region35: #{dense_layer_forward.4} parent=31 // pred_region
        %vm240 = vcmask 258048
        %241 = vst.msk [vmem:[%s235] sm:$0x1f] %vm240, 0.0
      $region36: #{dense_layer_forward.4} parent=31 // pred_fallthru
        _
      %v242 = vld [vmem:[%s221] sm:$0xff]
      %v243 = vld [vmem:[%s221 + $0x8] sm:$0xff]
      %v244 = vld [vmem:[%s221 + $0x10] sm:$0xff]
      %v245 = vld [vmem:[%s221 + $0x18] sm:$0xff]
      %v246 = vld [vmem:[%s221 + $0x20] sm:$0xff]
      %v247 = vld [vmem:[%s221 + $0x28] sm:$0xff]
      %v248 = vld [vmem:[%s221 + $0x30] sm:$0xff]
      %v249 = vld [vmem:[%s221 + $0x38] sm:$0xff]
      %v250 = vld [vmem:[%s1] sm:$0x1]
      %v251 = vlaneseq
      %v252 = vshrl.u32 %v251, 7
      %v253 = vsub.s32 0, %v252
      %v254 = vrot.slane %v250, %v253
      %v255 = vsub.f32 %v242, %v254
      %v256 = vsub.f32 %v243, %v254
      %v257 = vsub.f32 %v244, %v254
      %v258 = vsub.f32 %v245, %v254
      %v259 = vsub.f32 %v246, %v254
      %v260 = vsub.f32 %v247, %v254
      %v261 = vsub.f32 %v248, %v254
      %v262 = vsub.f32 %v249, %v254
      %v263 = vld [vmem:[%s1 + $0x1] sm:$0x1]
      %v264 = vlaneseq
      %v265 = vshrl.u32 %v264, 7
      %v266 = vsub.s32 0, %v265
      %v267 = vrot.slane %v263, %v266
      %269 = vrot.lane.b32.xlu0 %v267, 16
      %v270 = vpop.permute.xlu0 %269
      %v272 = vsub.f32 %v242, %v270
      %v273 = vsub.f32 %v243, %v270
      %v274 = vsub.f32 %v244, %v270
      %v275 = vsub.f32 %v245, %v270
      %v276 = vsub.f32 %v246, %v270
      %v277 = vsub.f32 %v247, %v270
      %v278 = vsub.f32 %v248, %v270
      %v279 = vsub.f32 %v249, %v270
      %v280 = vld [vmem:[%s1 + $0x2] sm:$0x1]
      %v281 = vlaneseq
      %v282 = vshrl.u32 %v281, 7
      %v283 = vsub.s32 0, %v282
      %v284 = vrot.slane %v280, %v283
      %v285 = vmul.f32 %v284, %v255
      %v286 = vmul.f32 %v284, %v256
      %v287 = vmul.f32 %v284, %v257
      %v288 = vmul.f32 %v284, %v258
      %v289 = vmul.f32 %v284, %v259
      %v290 = vmul.f32 %v284, %v260
      %v291 = vmul.f32 %v284, %v261
      %v292 = vmul.f32 %v284, %v262
      %v293 = vld [vmem:[%s1 + $0x3] sm:$0x1]
      %v294 = vlaneseq
      %v295 = vshrl.u32 %v294, 7
      %v296 = vsub.s32 0, %v295
      %v297 = vrot.slane %v293, %v296
      %306 = vrot.lane.b32.xlu0 %v272, 112
      %v307 = vpop.permute.xlu0 %306
      %308 = vrot.lane.b32.xlu0 %v273, 112
      %v309 = vpop.permute.xlu0 %308
      %310 = vrot.lane.b32.xlu0 %v274, 112
      %v311 = vpop.permute.xlu0 %310
      %312 = vrot.lane.b32.xlu0 %v275, 112
      %v313 = vpop.permute.xlu0 %312
      %314 = vrot.lane.b32.xlu0 %v276, 112
      %v315 = vpop.permute.xlu0 %314
      %316 = vrot.lane.b32.xlu0 %v277, 112
      %v317 = vpop.permute.xlu0 %316
      %318 = vrot.lane.b32.xlu0 %v278, 112
      %v319 = vpop.permute.xlu0 %318
      %320 = vrot.lane.b32.xlu0 %v279, 112
      %v321 = vpop.permute.xlu0 %320
      %v330 = vmul.f32 %v297, %v307
      %v331 = vmul.f32 %v297, %v309
      %v332 = vmul.f32 %v297, %v311
      %v333 = vmul.f32 %v297, %v313
      %v334 = vmul.f32 %v297, %v315
      %v335 = vmul.f32 %v297, %v317
      %v336 = vmul.f32 %v297, %v319
      %v337 = vmul.f32 %v297, %v321
      %v338 = vadd.f32 %v285, %v330
      %v339 = vadd.f32 %v286, %v331
      %v340 = vadd.f32 %v287, %v332
      %v341 = vadd.f32 %v288, %v333
      %v342 = vadd.f32 %v289, %v334
      %v343 = vadd.f32 %v290, %v335
      %v344 = vadd.f32 %v291, %v336
      %v345 = vadd.f32 %v292, %v337
      %v346 = vld [vmem:[%s1 + $0x6] sm:$0x1]
      %v347 = vlaneseq
      %v348 = vshrl.u32 %v347, 7
      %v349 = vsub.s32 0, %v348
      %v350 = vrot.slane %v346, %v349
      %v351 = vadd.f32 %v338, %v350
      %v352 = vadd.f32 %v339, %v350
      %v353 = vadd.f32 %v340, %v350
      %v354 = vadd.f32 %v341, %v350
      %v355 = vadd.f32 %v342, %v350
      %v356 = vadd.f32 %v343, %v350
      %v357 = vadd.f32 %v344, %v350
      %v358 = vadd.f32 %v345, %v350
      %v359 = vld [vmem:[%s1 + $0x4] sm:$0x1]
      %v360 = vlaneseq
      %v361 = vshrl.u32 %v360, 7
      %v362 = vsub.s32 0, %v361
      %v363 = vrot.slane %v359, %v362
      %v364 = vmul.f32 %v363, %v255
      %v365 = vmul.f32 %v363, %v256
      %v366 = vmul.f32 %v363, %v257
      %v367 = vmul.f32 %v363, %v258
      %v368 = vmul.f32 %v363, %v259
      %v369 = vmul.f32 %v363, %v260
      %v370 = vmul.f32 %v363, %v261
      %v371 = vmul.f32 %v363, %v262
      %v372 = vld [vmem:[%s1 + $0x5] sm:$0x1]
      %v373 = vlaneseq
      %v374 = vshrl.u32 %v373, 7
      %v375 = vsub.s32 0, %v374
      %v376 = vrot.slane %v372, %v375
      %v377 = vmul.f32 %v376, %v307
      %v378 = vmul.f32 %v376, %v309
      %v379 = vmul.f32 %v376, %v311
      %v380 = vmul.f32 %v376, %v313
      %v381 = vmul.f32 %v376, %v315
      %v382 = vmul.f32 %v376, %v317
      %v383 = vmul.f32 %v376, %v319
      %v384 = vmul.f32 %v376, %v321
      %v385 = vadd.f32 %v364, %v377
      %v386 = vadd.f32 %v365, %v378
      %v387 = vadd.f32 %v366, %v379
      %v388 = vadd.f32 %v367, %v380
      %v389 = vadd.f32 %v368, %v381
      %v390 = vadd.f32 %v369, %v382
      %v391 = vadd.f32 %v370, %v383
      %v392 = vadd.f32 %v371, %v384
      %v393 = vld [vmem:[%s1 + $0x7] sm:$0x1]
      %v394 = vlaneseq
      %v395 = vshrl.u32 %v394, 7
      %v396 = vsub.s32 0, %v395
      %v397 = vrot.slane %v393, %v396
      %v398 = vadd.f32 %v385, %v397
      %v399 = vadd.f32 %v386, %v397
      %v400 = vadd.f32 %v387, %v397
      %v401 = vadd.f32 %v388, %v397
      %v402 = vadd.f32 %v389, %v397
      %v403 = vadd.f32 %v390, %v397
      %v404 = vadd.f32 %v391, %v397
      %v405 = vadd.f32 %v392, %v397
      %v406 = vmul.f32 %v351, 0.5
      %v407 = vmul.f32 %v352, 0.5
      %v408 = vmul.f32 %v353, 0.5
      %v409 = vmul.f32 %v354, 0.5
      %v410 = vmul.f32 %v355, 0.5
      %v411 = vmul.f32 %v356, 0.5
      %v412 = vmul.f32 %v357, 0.5
      %v413 = vmul.f32 %v358, 0.5
      %v414 = vmul.f32 %v351, %v351
      %v415 = vmul.f32 %v352, %v352
      %v416 = vmul.f32 %v353, %v353
      %v417 = vmul.f32 %v354, %v354
      %v418 = vmul.f32 %v355, %v355
      %v419 = vmul.f32 %v356, %v356
      %v420 = vmul.f32 %v357, %v357
      %v421 = vmul.f32 %v358, %v358
      %v422 = vmul.f32 %v398, %v398
      %v423 = vmul.f32 %v399, %v399
      %v424 = vmul.f32 %v400, %v400
      %v425 = vmul.f32 %v401, %v401
      %v426 = vmul.f32 %v402, %v402
      %v427 = vmul.f32 %v403, %v403
      %v428 = vmul.f32 %v404, %v404
      %v429 = vmul.f32 %v405, %v405
      %v430 = vadd.f32 %v414, %v422
      %v431 = vadd.f32 %v415, %v423
      %v432 = vadd.f32 %v416, %v424
      %v433 = vadd.f32 %v417, %v425
      %v434 = vadd.f32 %v418, %v426
      %v435 = vadd.f32 %v419, %v427
      %v436 = vadd.f32 %v420, %v428
      %v437 = vadd.f32 %v421, %v429
      %v438 = vadd.f32 %v430, 1e-12
      %v439 = vadd.f32 %v431, 1e-12
      %v440 = vadd.f32 %v432, 1e-12
      %v441 = vadd.f32 %v433, 1e-12
      %v442 = vadd.f32 %v434, 1e-12
      %v443 = vadd.f32 %v435, 1e-12
      %v444 = vadd.f32 %v436, 1e-12
      %v445 = vadd.f32 %v437, 1e-12
      %v446 = vrsqrt.pop %v438
      %v447 = vrsqrt.pop %v439
      %v448 = vrsqrt.pop %v440
      %v449 = vrsqrt.pop %v441
      %v450 = vrsqrt.pop %v442
      %v451 = vrsqrt.pop %v443
      %v452 = vrsqrt.pop %v444
      %v453 = vrsqrt.pop %v445
      %v454 = vmul.f32 %v406, %v446
      %v455 = vmul.f32 %v407, %v447
      %v456 = vmul.f32 %v408, %v448
      %v457 = vmul.f32 %v409, %v449
      %v458 = vmul.f32 %v410, %v450
      %v459 = vmul.f32 %v411, %v451
      %v460 = vmul.f32 %v412, %v452
      %v461 = vmul.f32 %v413, %v453
      %v462 = vadd.f32 %v454, 0.5
      %v463 = vadd.f32 %v455, 0.5
      %v464 = vadd.f32 %v456, 0.5
      %v465 = vadd.f32 %v457, 0.5
      %v466 = vadd.f32 %v458, 0.5
      %v467 = vadd.f32 %v459, 0.5
      %v468 = vadd.f32 %v460, 0.5
      %v469 = vadd.f32 %v461, 0.5
      %s470 = sadd.s32 %s20, %s21
      %s471 = smul.u32 %s470, 64
      %v472 = vlaneseq
      %v473 = vshrl.u32 %v472, 7
      %v474 = vadd.s32 %v473, 8
      %v475 = vadd.s32 %v473, 16
      %v476 = vadd.s32 %v473, 24
      %v477 = vadd.s32 %v473, 32
      %v478 = vadd.s32 %v473, 40
      %v479 = vadd.s32 %v473, 48
      %v480 = vadd.s32 %v473, 56
      %v481 = vstv %s471
      %v482 = vadd.s32 %v473, %v481
      %v483 = vadd.s32 %v474, %v481
      %v484 = vadd.s32 %v475, %v481
      %v485 = vadd.s32 %v476, %v481
      %v486 = vadd.s32 %v477, %v481
      %v487 = vadd.s32 %v478, %v481
      %v488 = vadd.s32 %v479, %v481
      %v489 = vadd.s32 %v480, %v481
      %vm490 = vcmp.lt.s32.totalorder %v482, 128
      %vm491 = vcmp.lt.s32.totalorder %v483, 128
      %vm492 = vcmp.lt.s32.totalorder %v484, 128
      %vm493 = vcmp.lt.s32.totalorder %v485, 128
      %vm494 = vcmp.lt.s32.totalorder %v486, 128
      %vm495 = vcmp.lt.s32.totalorder %v487, 128
      %vm496 = vcmp.lt.s32.totalorder %v488, 128
      %vm497 = vcmp.lt.s32.totalorder %v489, 128
      %v498 = vsel %vm490, 1, 0
      %v499 = vsel %vm491, 1, 0
      %v500 = vsel %vm492, 1, 0
      %v501 = vsel %vm493, 1, 0
      %v502 = vsel %vm494, 1, 0
      %v503 = vsel %vm495, 1, 0
      %v504 = vsel %vm496, 1, 0
      %v505 = vsel %vm497, 1, 0
      %v506 = vcvt.s32.f32 %v498
      %v507 = vcvt.s32.f32 %v499
      %v508 = vcvt.s32.f32 %v500
      %v509 = vcvt.s32.f32 %v501
      %v510 = vcvt.s32.f32 %v502
      %v511 = vcvt.s32.f32 %v503
      %v512 = vcvt.s32.f32 %v504
      %v513 = vcvt.s32.f32 %v505
      %v514 = vmul.f32 %v462, %v506
      %v515 = vmul.f32 %v463, %v507
      %v516 = vmul.f32 %v464, %v508
      %v517 = vmul.f32 %v465, %v509
      %v518 = vmul.f32 %v466, %v510
      %v519 = vmul.f32 %v467, %v511
      %v520 = vmul.f32 %v468, %v512
      %v521 = vmul.f32 %v469, %v513
      %v522 = vmul.f32 %v514, %v351
      %v523 = vmul.f32 %v515, %v352
      %v524 = vmul.f32 %v516, %v353
      %v525 = vmul.f32 %v517, %v354
      %v526 = vmul.f32 %v518, %v355
      %v527 = vmul.f32 %v519, %v356
      %v528 = vmul.f32 %v520, %v357
      %v529 = vmul.f32 %v521, %v358
      %v530 = vmul.f32 %v514, %v398
      %v531 = vmul.f32 %v515, %v399
      %v532 = vmul.f32 %v516, %v400
      %v533 = vmul.f32 %v517, %v401
      %v534 = vmul.f32 %v518, %v402
      %v535 = vmul.f32 %v519, %v403
      %v536 = vmul.f32 %v520, %v404
      %v537 = vmul.f32 %v521, %v405
      %546 = vrot.lane.b32.xlu0 %v530, 16
      %v547 = vpop.permute.xlu0 %546
      %548 = vrot.lane.b32.xlu0 %v531, 16
      %v549 = vpop.permute.xlu0 %548
      %550 = vrot.lane.b32.xlu0 %v532, 16
      %v551 = vpop.permute.xlu0 %550
      %552 = vrot.lane.b32.xlu0 %v533, 16
      %v553 = vpop.permute.xlu0 %552
      %554 = vrot.lane.b32.xlu0 %v534, 16
      %v555 = vpop.permute.xlu0 %554
      %556 = vrot.lane.b32.xlu0 %v535, 16
      %v557 = vpop.permute.xlu0 %556
      %558 = vrot.lane.b32.xlu0 %v536, 16
      %v559 = vpop.permute.xlu0 %558
      %560 = vrot.lane.b32.xlu0 %v537, 16
      %v561 = vpop.permute.xlu0 %560
      %vm570 = vcmask 130048
      %v571 = vsel %vm570, %v522, %v547
      %v572 = vsel %vm570, %v523, %v549
      %v573 = vsel %vm570, %v524, %v551
      %v574 = vsel %vm570, %v525, %v553
      %v575 = vsel %vm570, %v526, %v555
      %v576 = vsel %vm570, %v527, %v557
      %v577 = vsel %vm570, %v528, %v559
      %v578 = vsel %vm570, %v529, %v561
      %v579 = vld [vmem:[%s2] sm:$0xff]
      %v580 = vld [vmem:[%s2 + $0x8] sm:$0xff]
      %v581 = vld [vmem:[%s2 + $0x10] sm:$0xff]
      %v582 = vld [vmem:[%s2 + $0x18] sm:$0xff]
      %vm583 = vcmask 261120
      %v585 = vsel %vm583, %v571, 0
      %v588 = vsel %vm583, %v572, 0
      %v591 = vsel %vm583, %v573, 0
      %v594 = vsel %vm583, %v574, 0
      %v597 = vsel %vm583, %v575, 0
      %v600 = vsel %vm583, %v576, 0
      %v603 = vsel %vm583, %v577, 0
      %v606 = vsel %vm583, %v578, 0
      %608 = vmatprep.subr.mxu0 0.0
      %609 = vmatpush1.msra.mxu0 0.0
      %610 = vmatprep.subr.mxu0 0.0
      %611 = vmatpush1.msra.mxu0 0.0
      %612 = vmatprep.subr.mxu0 0.0
      %613 = vmatpush1.msra.mxu0 0.0
      %614 = vmatprep.subr.mxu0 0.0
      %615 = vmatpush1.msra.mxu0 0.0
      %616 = vmatprep.subr.mxu0 0.0
      %617 = vmatpush1.msra.mxu0 0.0
      %618 = vmatprep.subr.mxu0 0.0
      %619 = vmatpush1.msra.mxu0 0.0
      %620 = vmatprep.subr.mxu0 0.0
      %621 = vmatpush1.msra.mxu0 0.0
      %622 = vmatprep.subr.mxu0 0.0
      %623 = vmatpush1.msra.mxu0 0.0
      %624 = vmatprep.subr.mxu0 0.0
      %625 = vmatpush1.msra.mxu0 0.0
      %626 = vmatprep.subr.mxu0 0.0
      %627 = vmatpush1.msra.mxu0 0.0
      %628 = vmatprep.subr.mxu0 0.0
      %629 = vmatpush1.msra.mxu0 0.0
      %630 = vmatprep.subr.mxu0 0.0
      %631 = vmatpush1.msra.mxu0 0.0
      %632 = vmatprep.subr.mxu0 0.0
      %633 = vmatpush1.msra.mxu0 %v582
      %634 = vmatprep.subr.mxu0 0.0
      %635 = vmatpush1.msra.mxu0 %v581
      %636 = vmatprep.subr.mxu0 0.0
      %637 = vmatpush1.msra.mxu0 %v580
      %638 = vmatprep.subr.mxu0 0.0
      %639 = vmatpush1.msra.mxu0 %v579
      %640 = vmatprep.subr.mxu0 0.0
      %641 = vmatpush2.msra.mxu0 0.0
      %642 = vmatprep.subr.mxu0 0.0
      %643 = vmatpush2.msra.mxu0 0.0
      %644 = vmatprep.subr.mxu0 0.0
      %645 = vmatpush2.msra.mxu0 0.0
      %646 = vmatprep.subr.mxu0 0.0
      %647 = vmatpush2.msra.mxu0 0.0
      %648 = vmatprep.subr.mxu0 0.0
      %649 = vmatpush2.msra.mxu0 0.0
      %650 = vmatprep.subr.mxu0 0.0
      %651 = vmatpush2.msra.mxu0 0.0
      %652 = vmatprep.subr.mxu0 0.0
      %653 = vmatpush2.msra.mxu0 0.0
      %654 = vmatprep.subr.mxu0 0.0
      %655 = vmatpush2.msra.mxu0 0.0
      %656 = vmatprep.subr.mxu0 0.0
      %657 = vmatpush2.msra.mxu0 0.0
      %658 = vmatprep.subr.mxu0 0.0
      %659 = vmatpush2.msra.mxu0 0.0
      %660 = vmatprep.subr.mxu0 0.0
      %661 = vmatpush2.msra.mxu0 0.0
      %662 = vmatprep.subr.mxu0 0.0
      %663 = vmatpush2.msra.mxu0 0.0
      %664 = vmatprep.subr.mxu0 0.0
      %665 = vmatpush2.msra.mxu0 0.0
      %666 = vmatprep.subr.mxu0 0.0
      %667 = vmatpush2.msra.mxu0 0.0
      %668 = vmatprep.subr.mxu0 0.0
      %669 = vmatpush2.msra.mxu0 0.0
      %670 = vmatprep.subr.mxu0 0.0
      %671 = vmatpush2.msra.mxu0 0.0
      %672 = vmatprep.mubr.f32.mxu0 0.0
      %673 = vmatmul.mubr.f32.gmra.mxu0 %v585
      %v674 = vpop.f32.mrf.mxu0
      %v675 = vadd.f32 0.0, %v674
      %v676 = vpop.f32.mrf.mxu0
      %677 = vmatprep.mubr.f32.mxu0 0.0
      %678 = vmatmul.mubr.f32.gmra.mxu0 %v588
      %v679 = vpop.f32.mrf.mxu0
      %v680 = vadd.f32 0.0, %v679
      %v681 = vpop.f32.mrf.mxu0
      %682 = vmatprep.mubr.f32.mxu0 0.0
      %683 = vmatmul.mubr.f32.gmra.mxu0 %v591
      %v684 = vpop.f32.mrf.mxu0
      %v685 = vadd.f32 0.0, %v684
      %v686 = vpop.f32.mrf.mxu0
      %687 = vmatprep.mubr.f32.mxu0 0.0
      %688 = vmatmul.mubr.f32.gmra.mxu0 %v594
      %v689 = vpop.f32.mrf.mxu0
      %v690 = vadd.f32 0.0, %v689
      %v691 = vpop.f32.mrf.mxu0
      %692 = vmatprep.mubr.f32.mxu0 0.0
      %693 = vmatmul.mubr.f32.gmra.mxu0 %v597
      %v694 = vpop.f32.mrf.mxu0
      %v695 = vadd.f32 0.0, %v694
      %v696 = vpop.f32.mrf.mxu0
      %697 = vmatprep.mubr.f32.mxu0 0.0
      %698 = vmatmul.mubr.f32.gmra.mxu0 %v600
      %v699 = vpop.f32.mrf.mxu0
      %v700 = vadd.f32 0.0, %v699
      %v701 = vpop.f32.mrf.mxu0
      %702 = vmatprep.mubr.f32.mxu0 0.0
      %703 = vmatmul.mubr.f32.gmra.mxu0 %v603
      %v704 = vpop.f32.mrf.mxu0
      %v705 = vadd.f32 0.0, %v704
      %v706 = vpop.f32.mrf.mxu0
      %707 = vmatprep.mubr.f32.mxu0 0.0
      %708 = vmatmul.mubr.f32.gmra.mxu0 %v606
      %v709 = vpop.f32.mrf.mxu0
      %v710 = vadd.f32 0.0, %v709
      %v711 = vpop.f32.mrf.mxu0
      %712 = vdwg.mxu0
      %vm713 = vcmask 523264
      %714 = vst.msk [vmem:[%s229] sm:$0xff] %vm713, %v675
      %715 = vst.msk [vmem:[%s229 + $0x8] sm:$0xff] %vm713, %v680
      %716 = vst.msk [vmem:[%s229 + $0x10] sm:$0xff] %vm713, %v685
      %717 = vst.msk [vmem:[%s229 + $0x18] sm:$0xff] %vm713, %v690
      %718 = vst.msk [vmem:[%s229 + $0x20] sm:$0xff] %vm713, %v695
      %719 = vst.msk [vmem:[%s229 + $0x28] sm:$0xff] %vm713, %v700
      %720 = vst.msk [vmem:[%s229 + $0x30] sm:$0xff] %vm713, %v705
      %721 = vst.msk [vmem:[%s229 + $0x38] sm:$0xff] %vm713, %v710
      %v722 = vsel %vm583, %v675, 0.0
      %v723 = vsel %vm583, %v680, 0.0
      %v724 = vadd.f32 %v722, %v723
      %v725 = vsel %vm583, %v685, 0.0
      %v726 = vadd.f32 %v724, %v725
      %v727 = vsel %vm583, %v690, 0.0
      %v728 = vadd.f32 %v726, %v727
      %v729 = vsel %vm583, %v695, 0.0
      %v730 = vadd.f32 %v728, %v729
      %v731 = vsel %vm583, %v700, 0.0
      %v732 = vadd.f32 %v730, %v731
      %v733 = vsel %vm583, %v705, 0.0
      %v734 = vadd.f32 %v732, %v733
      %v735 = vsel %vm583, %v710, 0.0
      %v736 = vadd.f32 %v734, %v735
      %v737 = vrot.slane %v736, 4
      %v738 = vadd.f32 %v736, %v737
      %v739 = vrot.slane %v738, 2
      %v740 = vadd.f32 %v738, %v739
      %v741 = vrot.slane %v740, 1
      %v742 = vadd.f32 %v740, %v741
      %vm743 = vcmask 523520
      %v744 = vsel %vm743, %v675, 0.0
      %v745 = vsel %vm743, %v680, 0.0
      %v746 = vadd.f32 %v744, %v745
      %v747 = vsel %vm743, %v685, 0.0
      %v748 = vadd.f32 %v746, %v747
      %v749 = vsel %vm743, %v690, 0.0
      %v750 = vadd.f32 %v748, %v749
      %v751 = vsel %vm743, %v695, 0.0
      %v752 = vadd.f32 %v750, %v751
      %v753 = vsel %vm743, %v700, 0.0
      %v754 = vadd.f32 %v752, %v753
      %v755 = vsel %vm743, %v705, 0.0
      %v756 = vadd.f32 %v754, %v755
      %v757 = vsel %vm743, %v710, 0.0
      %v758 = vadd.f32 %v756, %v757
      %v759 = vrot.slane %v758, 4
      %v760 = vadd.f32 %v758, %v759
      %v761 = vrot.slane %v760, 2
      %v762 = vadd.f32 %v760, %v761
      %v763 = vrot.slane %v762, 1
      %v764 = vadd.f32 %v762, %v763
      %v765 = vmul.f32 %v675, %v675
      %v766 = vmul.f32 %v680, %v680
      %v767 = vmul.f32 %v685, %v685
      %v768 = vmul.f32 %v690, %v690
      %v769 = vmul.f32 %v695, %v695
      %v770 = vmul.f32 %v700, %v700
      %v771 = vmul.f32 %v705, %v705
      %v772 = vmul.f32 %v710, %v710
      %v773 = vsel %vm583, %v765, 0.0
      %v774 = vsel %vm583, %v766, 0.0
      %v775 = vadd.f32 %v773, %v774
      %v776 = vsel %vm583, %v767, 0.0
      %v777 = vadd.f32 %v775, %v776
      %v778 = vsel %vm583, %v768, 0.0
      %v779 = vadd.f32 %v777, %v778
      %v780 = vsel %vm583, %v769, 0.0
      %v781 = vadd.f32 %v779, %v780
      %v782 = vsel %vm583, %v770, 0.0
      %v783 = vadd.f32 %v781, %v782
      %v784 = vsel %vm583, %v771, 0.0
      %v785 = vadd.f32 %v783, %v784
      %v786 = vsel %vm583, %v772, 0.0
      %v787 = vadd.f32 %v785, %v786
      %v788 = vrot.slane %v787, 4
      %v789 = vadd.f32 %v787, %v788
      %v790 = vrot.slane %v789, 2
      %v791 = vadd.f32 %v789, %v790
      %v792 = vrot.slane %v791, 1
      %v793 = vadd.f32 %v791, %v792
      %v794 = vsel %vm743, %v765, 0.0
      %v795 = vsel %vm743, %v766, 0.0
      %v796 = vadd.f32 %v794, %v795
      %v797 = vsel %vm743, %v767, 0.0
      %v798 = vadd.f32 %v796, %v797
      %v799 = vsel %vm743, %v768, 0.0
      %v800 = vadd.f32 %v798, %v799
      %v801 = vsel %vm743, %v769, 0.0
      %v802 = vadd.f32 %v800, %v801
      %v803 = vsel %vm743, %v770, 0.0
      %v804 = vadd.f32 %v802, %v803
      %v805 = vsel %vm743, %v771, 0.0
      %v806 = vadd.f32 %v804, %v805
      %v807 = vsel %vm743, %v772, 0.0
      %v808 = vadd.f32 %v806, %v807
      %v809 = vrot.slane %v808, 4
      %v810 = vadd.f32 %v808, %v809
      %v811 = vrot.slane %v810, 2
      %v812 = vadd.f32 %v810, %v811
      %v813 = vrot.slane %v812, 1
      %v814 = vadd.f32 %v812, %v813
      %823 = vrot.lane.b32.xlu0 %v675, 96
      %v824 = vpop.permute.xlu0 %823
      %825 = vrot.lane.b32.xlu0 %v680, 96
      %v826 = vpop.permute.xlu0 %825
      %827 = vrot.lane.b32.xlu0 %v685, 96
      %v828 = vpop.permute.xlu0 %827
      %829 = vrot.lane.b32.xlu0 %v690, 96
      %v830 = vpop.permute.xlu0 %829
      %831 = vrot.lane.b32.xlu0 %v695, 96
      %v832 = vpop.permute.xlu0 %831
      %833 = vrot.lane.b32.xlu0 %v700, 96
      %v834 = vpop.permute.xlu0 %833
      %835 = vrot.lane.b32.xlu0 %v705, 96
      %v836 = vpop.permute.xlu0 %835
      %837 = vrot.lane.b32.xlu0 %v710, 96
      %v838 = vpop.permute.xlu0 %837
      %v847 = vmul.f32 %v675, %v824
      %v848 = vmul.f32 %v680, %v826
      %v849 = vmul.f32 %v685, %v828
      %v850 = vmul.f32 %v690, %v830
      %v851 = vmul.f32 %v695, %v832
      %v852 = vmul.f32 %v700, %v834
      %v853 = vmul.f32 %v705, %v836
      %v854 = vmul.f32 %v710, %v838
      %v855 = vsel %vm583, %v847, 0.0
      %v856 = vsel %vm583, %v848, 0.0
      %v857 = vadd.f32 %v855, %v856
      %v858 = vsel %vm583, %v849, 0.0
      %v859 = vadd.f32 %v857, %v858
      %v860 = vsel %vm583, %v850, 0.0
      %v861 = vadd.f32 %v859, %v860
      %v862 = vsel %vm583, %v851, 0.0
      %v863 = vadd.f32 %v861, %v862
      %v864 = vsel %vm583, %v852, 0.0
      %v865 = vadd.f32 %v863, %v864
      %v866 = vsel %vm583, %v853, 0.0
      %v867 = vadd.f32 %v865, %v866
      %v868 = vsel %vm583, %v854, 0.0
      %v869 = vadd.f32 %v867, %v868
      %v870 = vrot.slane %v869, 4
      %v871 = vadd.f32 %v869, %v870
      %v872 = vrot.slane %v871, 2
      %v873 = vadd.f32 %v871, %v872
      %v874 = vrot.slane %v873, 1
      %v875 = vadd.f32 %v873, %v874
      %877 = vrot.lane.b32.xlu0 %v764, 96
      %v878 = vpop.permute.xlu0 %877
      %881 = vrot.lane.b32.xlu0 %v814, 96
      %v882 = vpop.permute.xlu0 %881
      %vm884 = vcmask 1040384
      %v885 = vsel %vm884, %v742, %v878
      %vm886 = vcmask 1041408
      %v887 = vsel %vm886, %v885, %v793
      %vm888 = vcmask 1042432
      %v889 = vsel %vm888, %v887, %v882
      %vm890 = vcmask 1043456
      %v891 = vsel %vm890, %v889, %v875
      %v892 = vld [vmem:[%s235] sm:$0x1f]
      %v893 = vadd.f32 %v892, %v891
      %vm894 = vcmask 258048
      %895 = vst.msk [vmem:[%s235] sm:$0x1f] %vm894, %v893
      %s896 = sadd.s32 %s20, %s21
      %s897 = smul.u32 8, %s896
      %p898 = scmp.lt.s32.totalorder %s897, 15
      %s899 = scalar_select %p898, %s897, 15
      %s900 = smul.addr %s899, 8
      %s901 = scalar_lea.vmem %s3, %s900
      %p902 = scmp.lt.s32.totalorder %s20, 1
      %s903 = scalar_select %p902, %s20, 1
      %s904 = smul.addr %s903, 8
      %s905 = scalar_lea.vmem %s4, %s904
      // Predicated region
      $region37: #{dense_layer_forward.4} parent=31 // pred_check
        %p906 = pneg %p118
      $region38: #{dense_layer_forward.4} parent=31 // pred_check_branch
        %908 = sbr.rel (%p906) target = $region40
      $region39: #{dense_layer_forward.4} parent=31 // pred_region
        %s909 = sadd.s32 %s20, %s21
        %s910 = smul.u32 8, %s909
      $region40: #{dense_layer_forward.4} parent=31 // pred_fallthru
        _
      // Predicated region
      $region41: #{dense_layer_forward.4} parent=31 // pred_check
        %p911 = pneg %p144
      $region42: #{dense_layer_forward.4} parent=31 // pred_check_branch
        %913 = sbr.rel (%p911) target = $region44
      $region43: #{dense_layer_forward.4} parent=31 // pred_region
        _
      $region44: #{dense_layer_forward.4} parent=31 // pred_fallthru
        _
    $region32: #{dense_layer_forward.4} parent=5 // pred_fallthru
      _
    %p914 = scmp.le.s32.totalorder 2, %s11
    // Predicated region
    $region45: #{dense_layer_forward.4} parent=5 // pred_check
      %p915 = pneg %p914
    $region46: #{dense_layer_forward.4} parent=5 // pred_check_branch
      %917 = sbr.rel (%p915) target = $region48
    $region47: #{dense_layer_forward.4} parent=5 // pred_region
      %s918 = ssub.s32 %s11, 2
      // Predicated region
      $region49: #{dense_layer_forward.4} parent=47 // pred_check
        %p919 = pneg %p124
      $region50: #{dense_layer_forward.4} parent=47 // pred_check_branch
        %921 = sbr.rel (%p919) target = $region52
      $region51: #{dense_layer_forward.4} parent=47 // pred_region
        %s922 = sadd.s32 %s22, %s23
        %s923 = smul.u32 8, %s922
        %p924 = scmp.lt.s32.totalorder %s923, 15
        %s925 = scalar_select %p924, %s923, 15
        %s926 = smul.addr %s925, 8
        %s927 = scalar_lea.vmem %s3, %s926
      $region52: #{dense_layer_forward.4} parent=47 // pred_fallthru
        _
      // Predicated region
      $region53: #{dense_layer_forward.4} parent=47 // pred_check
        %p928 = pneg %p150
      $region54: #{dense_layer_forward.4} parent=47 // pred_check_branch
        %930 = sbr.rel (%p928) target = $region56
      $region55: #{dense_layer_forward.4} parent=47 // pred_region
        %p931 = scmp.lt.s32.totalorder %s22, 1
        %s932 = scalar_select %p931, %s22, 1
        %s933 = smul.addr %s932, 8
        %s934 = scalar_lea.vmem %s4, %s933
      $region56: #{dense_layer_forward.4} parent=47 // pred_fallthru
        _
    $region48: #{dense_layer_forward.4} parent=5 // pred_fallthru
      _
  $region6: #{dense_layer_forward.4} parent=0 // loop_footer
    %s15 = sadd.s32 1, %s11
  $region7: #{dense_layer_forward.4} parent=0 // loop_footer_branch
    %10 = sbr.rel target = $region3
  $region8: #{dense_layer_forward.4} parent=0 // loop_exit
    _

// kernel: dense_layer_forward.5
$region0: #{dense_layer_forward.5}
  #allocation0 [shape = 'u32[]', space=smem, size = 0x4, offset = 0x4, fixed_abs, tag = 'smem constant byte address 0x4 - core index']
  #allocation1 [shape = 'u32[144,128]{1,0:T(1,128)}', space=vmem, size = 0x12000, scoped, tag = 'internal scratch']
  %s0 = inlined_call_operand.vmem [shape: f32[2,8,8,64], index: 0, kind: input, shape index: {}]
  %s1 = inlined_call_operand.vmem [shape: f32[8,32], index: 1, kind: input, shape index: {}]
  %s2 = inlined_call_operand.vmem [shape: f32[9,64,16], index: 2, kind: input, shape index: {}]
  %s3 = inlined_call_operand.vmem [shape: f32[2,8,8,16], index: 3, kind: output, shape index: {}]
  %s4 = sld [smem:[#allocation0]]
  $region45: #{dense_layer_forward.5} parent=0
    _
  %s6 = ssub.s32 1, %s4
  %s7 = scalar_select 0, %s6, %s4
  loop: start=0, step=1, limit=4
  $region2: #{dense_layer_forward.5} parent=0 // loop_pre_header
    _
  $region3: #{dense_layer_forward.5} parent=0 // loop_header
    %s9 = sphi 0, %s13
    %p10 = scmp.ge.s32.totalorder %s9, 4
    %s19 = sphi 0, %s21
    %s22 = sphi 0, %s19
    %s23 = sphi 0, %s22
    %s39 = sphi 0, %s23
    %s43 = sphi 0, %s43
    %s45 = sphi 0, %s43
    %s46 = sphi 0, %s45
    %s60 = sphi 0, %s46
    %s64 = sphi 0, %s64
    %s66 = sphi 0, %s64
    %s67 = sphi 0, %s66
    %s81 = sphi 0, %s67
    %s87 = sphi 0, %s89
    %s90 = sphi 0, %s87
    %s91 = sphi 0, %s90
    %s107 = sphi 0, %s91
  $region4: #{dense_layer_forward.5} parent=0 // loop_header_branch
    %12 = sbr.rel (%p10) target = $region8
  $region5: #{dense_layer_forward.5} parent=0 // loop_body
    %s14 = ssub.s32 %s9, 1
    %s15 = ssub.s32 %s9, 2
    %s16 = sadd.s32 %s9, 1
    %s17 = ssub.s32 %s9, %s16
    %p18 = scmp.eq.s32.totalorder %s17, 0
    %s20 = sadd.s32 %s19, 1
    %s21 = scalar_select %p18, %s19, %s20
    %p24 = pneg %p18
    %p25 = scmp.eq.s32.totalorder %s9, 1
    %p26 = por %p24, %p25
    %p27 = scmp.ne.s32.totalorder %s19, %s22
    %p28 = scmp.eq.s32.totalorder %s9, 0
    %p29 = por %p27, %p28
    %p30 = scmp.ne.s32.totalorder %s19, %s22
    %p31 = scmp.eq.s32.totalorder %s14, 1
    %p32 = por %p30, %p31
    %p33 = scmp.ne.s32.totalorder %s22, %s23
    %p34 = scmp.eq.s32.totalorder %s14, 0
    %p35 = por %p33, %p34
    %p36 = scmp.ne.s32.totalorder %s22, %s23
    %p37 = scmp.eq.s32.totalorder %s15, 1
    %p38 = por %p36, %p37
    %p40 = scmp.ne.s32.totalorder %s23, %s39
    %p41 = scmp.eq.s32.totalorder %s15, 0
    %p42 = por %p40, %p41
    %s44 = sadd.s32 %s43, 1
    %p47 = scmp.eq.s32.totalorder %s9, 1
    %p48 = scmp.ne.s32.totalorder %s43, %s45
    %p49 = scmp.eq.s32.totalorder %s9, 0
    %p50 = por %p48, %p49
    %p51 = scmp.ne.s32.totalorder %s43, %s45
    %p52 = scmp.eq.s32.totalorder %s14, 1
    %p53 = por %p51, %p52
    %p54 = scmp.ne.s32.totalorder %s45, %s46
    %p55 = scmp.eq.s32.totalorder %s14, 0
    %p56 = por %p54, %p55
    %p57 = scmp.ne.s32.totalorder %s45, %s46
    %p58 = scmp.eq.s32.totalorder %s15, 1
    %p59 = por %p57, %p58
    %p61 = scmp.ne.s32.totalorder %s46, %s60
    %p62 = scmp.eq.s32.totalorder %s15, 0
    %p63 = por %p61, %p62
    %s65 = sadd.s32 %s64, 1
    %p68 = scmp.eq.s32.totalorder %s9, 1
    %p69 = scmp.ne.s32.totalorder %s64, %s66
    %p70 = scmp.eq.s32.totalorder %s9, 0
    %p71 = por %p69, %p70
    %p72 = scmp.ne.s32.totalorder %s64, %s66
    %p73 = scmp.eq.s32.totalorder %s14, 1
    %p74 = por %p72, %p73
    %p75 = scmp.ne.s32.totalorder %s66, %s67
    %p76 = scmp.eq.s32.totalorder %s14, 0
    %p77 = por %p75, %p76
    %p78 = scmp.ne.s32.totalorder %s66, %s67
    %p79 = scmp.eq.s32.totalorder %s15, 1
    %p80 = por %p78, %p79
    %p82 = scmp.ne.s32.totalorder %s67, %s81
    %p83 = scmp.eq.s32.totalorder %s15, 0
    %p84 = por %p82, %p83
    %s85 = ssub.s32 %s9, %s16
    %p86 = scmp.eq.s32.totalorder %s85, 0
    %s88 = sadd.s32 %s87, 1
    %s89 = scalar_select %p86, %s87, %s88
    %p92 = pneg %p86
    %p93 = scmp.eq.s32.totalorder %s9, 1
    %p94 = por %p92, %p93
    %p95 = scmp.ne.s32.totalorder %s87, %s90
    %p96 = scmp.eq.s32.totalorder %s9, 0
    %p97 = por %p95, %p96
    %p98 = scmp.ne.s32.totalorder %s87, %s90
    %p99 = scmp.eq.s32.totalorder %s14, 1
    %p100 = por %p98, %p99
    %p101 = scmp.ne.s32.totalorder %s90, %s91
    %p102 = scmp.eq.s32.totalorder %s14, 0
    %p103 = por %p101, %p102
    %p104 = scmp.ne.s32.totalorder %s90, %s91
    %p105 = scmp.eq.s32.totalorder %s15, 1
    %p106 = por %p104, %p105
    %p108 = scmp.ne.s32.totalorder %s91, %s107
    %p109 = scmp.eq.s32.totalorder %s15, 0
    %p110 = por %p108, %p109
    %p111 = scmp.le.s32.totalorder 1, %s9
    %p112 = scmp.lt.s32.totalorder %s9, 3
    %p113 = pnand %p111, %p112
    %p114 = pneg %p113
    // Predicated region
    $region9: #{dense_layer_forward.5} parent=5 // pred_check
      _
    $region10: #{dense_layer_forward.5} parent=5 // pred_check_branch
      %116 = sbr.rel (%p113) target = $region12
    $region11: #{dense_layer_forward.5} parent=5 // pred_region
      %s117 = ssub.s32 %s9, 1
      // Predicated region
      $region13: #{dense_layer_forward.5} parent=11 // pred_check
        %p118 = pneg %p56
      $region14: #{dense_layer_forward.5} parent=11 // pred_check_branch
        %120 = sbr.rel (%p118) target = $region16
      $region15: #{dense_layer_forward.5} parent=11 // pred_region
        _
      $region16: #{dense_layer_forward.5} parent=11 // pred_fallthru
        _
      // Predicated region
      $region17: #{dense_layer_forward.5} parent=11 // pred_check
        %p121 = pneg %p77
      $region18: #{dense_layer_forward.5} parent=11 // pred_check_branch
        %123 = sbr.rel (%p121) target = $region20
      $region19: #{dense_layer_forward.5} parent=11 // pred_region
        _
      $region20: #{dense_layer_forward.5} parent=11 // pred_fallthru
        _
    $region12: #{dense_layer_forward.5} parent=5 // pred_fallthru
      _
    %p124 = scmp.lt.s32.totalorder %s9, 2
    // Predicated region
    $region21: #{dense_layer_forward.5} parent=5 // pred_check
      %p125 = pneg %p124
    $region22: #{dense_layer_forward.5} parent=5 // pred_check_branch
      %127 = sbr.rel (%p125) target = $region24
    $region23: #{dense_layer_forward.5} parent=5 // pred_region
      // Predicated region
      $region25: #{dense_layer_forward.5} parent=23 // pred_check
        %p128 = pneg %p29
      $region26: #{dense_layer_forward.5} parent=23 // pred_check_branch
        %130 = sbr.rel (%p128) target = $region28
      $region27: #{dense_layer_forward.5} parent=23 // pred_region
        %p131 = scmp.lt.s32.totalorder %s9, 1
        %s132 = scalar_select %p131, %s9, 1
        %s133 = smul.addr %s132, 8
        %s134 = smul.addr %s133, 8
        %s135 = scalar_lea.vmem %s0, %s134
      $region28: #{dense_layer_forward.5} parent=23 // pred_fallthru
        _
    $region24: #{dense_layer_forward.5} parent=5 // pred_fallthru
      _
    %p136 = scmp.le.s32.totalorder 1, %s9
    %p137 = scmp.lt.s32.totalorder %s9, 3
    %p138 = pnand %p136, %p137
    %p139 = pneg %p138
    // Predicated region
    $region29: #{dense_layer_forward.5} parent=5 // pred_check
      _
    $region30: #{dense_layer_forward.5} parent=5 // pred_check_branch
      %141 = sbr.rel (%p138) target = $region32
    $region31: #{dense_layer_forward.5} parent=5 // pred_region
      %s142 = ssub.s32 %s9, 1
      %p143 = scmp.lt.s32.totalorder %s14, 1
      %s144 = scalar_select %p143, %s14, 1
      %s145 = smul.addr %s144, 8
      %s146 = smul.addr %s145, 8
      %s147 = scalar_lea.vmem %s0, %s146
      %p148 = pneg %p35
      %p149 = pneg %p32
      %p150 = pneg %p56
      %p151 = pneg %p53
      %p152 = pneg %p77
      %p153 = pneg %p74
      %p154 = pneg %p103
      %p155 = pneg %p100
      %p156 = scmp.lt.s32.totalorder %s14, 1
      %s157 = scalar_select %p156, %s14, 1
      %s158 = smul.addr %s157, 8
      %s159 = smul.addr %s158, 8
      %s160 = scalar_lea.vmem %s3, %s159
      %p161 = scmp.lt.s32.totalorder %s14, 1
      %s162 = scalar_select %p161, %s14, 1
      %s163 = smul.addr %s162, 8
      %s164 = smul.addr %s163, 8
      %s165 = scalar_lea.vmem %s0, %s164
      %p166 = scmp.lt.s32.totalorder %s14, 1
      %s167 = scalar_select %p166, %s14, 1
      %s168 = smul.addr %s167, 8
      %s169 = smul.addr %s168, 8
      %s170 = scalar_lea.vmem %s3, %s169
      %v171 = vld [vmem:[%s165] sm:$0xff]
      %v172 = vld [vmem:[%s165 + $0x8] sm:$0xff]
      %v173 = vld [vmem:[%s165 + $0x10] sm:$0xff]
      %v174 = vld [vmem:[%s165 + $0x18] sm:$0xff]
      %v175 = vld [vmem:[%s165 + $0x20] sm:$0xff]
      %v176 = vld [vmem:[%s165 + $0x28] sm:$0xff]
      %v177 = vld [vmem:[%s165 + $0x30] sm:$0xff]
      %v178 = vld [vmem:[%s165 + $0x38] sm:$0xff]
      %v179 = vld [vmem:[%s1] sm:$0x1]
      %v180 = vlaneseq
      %v181 = vshrl.u32 %v180, 7
      %v182 = vsub.s32 0, %v181
      %v183 = vrot.slane %v179, %v182
      %v184 = vsub.f32 %v171, %v183
      %v185 = vsub.f32 %v172, %v183
      %v186 = vsub.f32 %v173, %v183
      %v187 = vsub.f32 %v174, %v183
      %v188 = vsub.f32 %v175, %v183
      %v189 = vsub.f32 %v176, %v183
      %v190 = vsub.f32 %v177, %v183
      %v191 = vsub.f32 %v178, %v183
      %v192 = vld [vmem:[%s1 + $0x1] sm:$0x1]
      %v193 = vlaneseq
      %v194 = vshrl.u32 %v193, 7
      %v195 = vsub.s32 0, %v194
      %v196 = vrot.slane %v192, %v195
      %198 = vrot.lane.b32.xlu0 %v196, 32
      %v199 = vpop.permute.xlu0 %198
      %v201 = vsub.f32 %v171, %v199
      %v202 = vsub.f32 %v172, %v199
      %v203 = vsub.f32 %v173, %v199
      %v204 = vsub.f32 %v174, %v199
      %v205 = vsub.f32 %v175, %v199
      %v206 = vsub.f32 %v176, %v199
      %v207 = vsub.f32 %v177, %v199
      %v208 = vsub.f32 %v178, %v199
      %v209 = vld [vmem:[%s1 + $0x2] sm:$0x1]
      %v210 = vlaneseq
      %v211 = vshrl.u32 %v210, 7
      %v212 = vsub.s32 0, %v211
      %v213 = vrot.slane %v209, %v212
      %v214 = vmul.f32 %v213, %v184
      %v215 = vmul.f32 %v213, %v185
      %v216 = vmul.f32 %v213, %v186
      %v217 = vmul.f32 %v213, %v187
      %v218 = vmul.f32 %v213, %v188
      %v219 = vmul.f32 %v213, %v189
      %v220 = vmul.f32 %v213, %v190
      %v221 = vmul.f32 %v213, %v191
      %v222 = vld [vmem:[%s1 + $0x3] sm:$0x1]
      %v223 = vlaneseq
      %v224 = vshrl.u32 %v223, 7
      %v225 = vsub.s32 0, %v224
      %v226 = vrot.slane %v222, %v225
      %235 = vrot.lane.b32.xlu0 %v201, 96
      %v236 = vpop.permute.xlu0 %235
      %237 = vrot.lane.b32.xlu0 %v202, 96
      %v238 = vpop.permute.xlu0 %237
      %239 = vrot.lane.b32.xlu0 %v203, 96
      %v240 = vpop.permute.xlu0 %239
      %241 = vrot.lane.b32.xlu0 %v204, 96
      %v242 = vpop.permute.xlu0 %241
      %243 = vrot.lane.b32.xlu0 %v205, 96
      %v244 = vpop.permute.xlu0 %243
      %245 = vrot.lane.b32.xlu0 %v206, 96
      %v246 = vpop.permute.xlu0 %245
      %247 = vrot.lane.b32.xlu0 %v207, 96
      %v248 = vpop.permute.xlu0 %247
      %249 = vrot.lane.b32.xlu0 %v208, 96
      %v250 = vpop.permute.xlu0 %249
      %v259 = vmul.f32 %v226, %v236
      %v260 = vmul.f32 %v226, %v238
      %v261 = vmul.f32 %v226, %v240
      %v262 = vmul.f32 %v226, %v242
      %v263 = vmul.f32 %v226, %v244
      %v264 = vmul.f32 %v226, %v246
      %v265 = vmul.f32 %v226, %v248
      %v266 = vmul.f32 %v226, %v250
      %v267 = vadd.f32 %v214, %v259
      %v268 = vadd.f32 %v215, %v260
      %v269 = vadd.f32 %v216, %v261
      %v270 = vadd.f32 %v217, %v262
      %v271 = vadd.f32 %v218, %v263
      %v272 = vadd.f32 %v219, %v264
      %v273 = vadd.f32 %v220, %v265
      %v274 = vadd.f32 %v221, %v266
      %v275 = vld [vmem:[%s1 + $0x6] sm:$0x1]
      %v276 = vlaneseq
      %v277 = vshrl.u32 %v276, 7
      %v278 = vsub.s32 0, %v277
      %v279 = vrot.slane %v275, %v278
      %v280 = vadd.f32 %v267, %v279
      %v281 = vadd.f32 %v268, %v279
      %v282 = vadd.f32 %v269, %v279
      %v283 = vadd.f32 %v270, %v279
      %v284 = vadd.f32 %v271, %v279
      %v285 = vadd.f32 %v272, %v279
      %v286 = vadd.f32 %v273, %v279
      %v287 = vadd.f32 %v274, %v279
      %v288 = vld [vmem:[%s1 + $0x4] sm:$0x1]
      %v289 = vlaneseq
      %v290 = vshrl.u32 %v289, 7
      %v291 = vsub.s32 0, %v290
      %v292 = vrot.slane %v288, %v291
      %v293 = vmul.f32 %v292, %v184
      %v294 = vmul.f32 %v292, %v185
      %v295 = vmul.f32 %v292, %v186
      %v296 = vmul.f32 %v292, %v187
      %v297 = vmul.f32 %v292, %v188
      %v298 = vmul.f32 %v292, %v189
      %v299 = vmul.f32 %v292, %v190
      %v300 = vmul.f32 %v292, %v191
      %v301 = vld [vmem:[%s1 + $0x5] sm:$0x1]
      %v302 = vlaneseq
      %v303 = vshrl.u32 %v302, 7
      %v304 = vsub.s32 0, %v303
      %v305 = vrot.slane %v301, %v304
      %v306 = vmul.f32 %v305, %v236
      %v307 = vmul.f32 %v305, %v238
      %v308 = vmul.f32 %v305, %v240
      %v309 = vmul.f32 %v305, %v242
      %v310 = vmul.f32 %v305, %v244
      %v311 = vmul.f32 %v305, %v246
      %v312 = vmul.f32 %v305, %v248
      %v313 = vmul.f32 %v305, %v250
      %v314 = vadd.f32 %v293, %v306
      %v315 = vadd.f32 %v294, %v307
      %v316 = vadd.f32 %v295, %v308
      %v317 = vadd.f32 %v296, %v309
      %v318 = vadd.f32 %v297, %v310
      %v319 = vadd.f32 %v298, %v311
      %v320 = vadd.f32 %v299, %v312
      %v321 = vadd.f32 %v300, %v313
      %v322 = vld [vmem:[%s1 + $0x7] sm:$0x1]
      %v323 = vlaneseq
      %v324 = vshrl.u32 %v323, 7
      %v325 = vsub.s32 0, %v324
      %v326 = vrot.slane %v322, %v325
      %v327 = vadd.f32 %v314, %v326
      %v328 = vadd.f32 %v315, %v326
      %v329 = vadd.f32 %v316, %v326
      %v330 = vadd.f32 %v317, %v326
      %v331 = vadd.f32 %v318, %v326
      %v332 = vadd.f32 %v319, %v326
      %v333 = vadd.f32 %v320, %v326
      %v334 = vadd.f32 %v321, %v326
      %v335 = vmul.f32 %v280, 0.5
      %v336 = vmul.f32 %v281, 0.5
      %v337 = vmul.f32 %v282, 0.5
      %v338 = vmul.f32 %v283, 0.5
      %v339 = vmul.f32 %v284, 0.5
      %v340 = vmul.f32 %v285, 0.5
      %v341 = vmul.f32 %v286, 0.5
      %v342 = vmul.f32 %v287, 0.5
      %v343 = vmul.f32 %v280, %v280
      %v344 = vmul.f32 %v281, %v281
      %v345 = vmul.f32 %v282, %v282
      %v346 = vmul.f32 %v283, %v283
      %v347 = vmul.f32 %v284, %v284
      %v348 = vmul.f32 %v285, %v285
      %v349 = vmul.f32 %v286, %v286
      %v350 = vmul.f32 %v287, %v287
      %v351 = vmul.f32 %v327, %v327
      %v352 = vmul.f32 %v328, %v328
      %v353 = vmul.f32 %v329, %v329
      %v354 = vmul.f32 %v330, %v330
      %v355 = vmul.f32 %v331, %v331
      %v356 = vmul.f32 %v332, %v332
      %v357 = vmul.f32 %v333, %v333
      %v358 = vmul.f32 %v334, %v334
      %v359 = vadd.f32 %v343, %v351
      %v360 = vadd.f32 %v344, %v352
      %v361 = vadd.f32 %v345, %v353
      %v362 = vadd.f32 %v346, %v354
      %v363 = vadd.f32 %v347, %v355
      %v364 = vadd.f32 %v348, %v356
      %v365 = vadd.f32 %v349, %v357
      %v366 = vadd.f32 %v350, %v358
      %v367 = vadd.f32 %v359, 1e-12
      %v368 = vadd.f32 %v360, 1e-12
      %v369 = vadd.f32 %v361, 1e-12
      %v370 = vadd.f32 %v362, 1e-12
      %v371 = vadd.f32 %v363, 1e-12
      %v372 = vadd.f32 %v364, 1e-12
      %v373 = vadd.f32 %v365, 1e-12
      %v374 = vadd.f32 %v366, 1e-12
      %v375 = vrsqrt.pop %v367
      %v376 = vrsqrt.pop %v368
      %v377 = vrsqrt.pop %v369
      %v378 = vrsqrt.pop %v370
      %v379 = vrsqrt.pop %v371
      %v380 = vrsqrt.pop %v372
      %v381 = vrsqrt.pop %v373
      %v382 = vrsqrt.pop %v374
      %v383 = vmul.f32 %v335, %v375
      %v384 = vmul.f32 %v336, %v376
      %v385 = vmul.f32 %v337, %v377
      %v386 = vmul.f32 %v338, %v378
      %v387 = vmul.f32 %v339, %v379
      %v388 = vmul.f32 %v340, %v380
      %v389 = vmul.f32 %v341, %v381
      %v390 = vmul.f32 %v342, %v382
      %v391 = vadd.f32 %v383, 0.5
      %v392 = vadd.f32 %v384, 0.5
      %v393 = vadd.f32 %v385, 0.5
      %v394 = vadd.f32 %v386, 0.5
      %v395 = vadd.f32 %v387, 0.5
      %v396 = vadd.f32 %v388, 0.5
      %v397 = vadd.f32 %v389, 0.5
      %v398 = vadd.f32 %v390, 0.5
      %v399 = vmul.f32 %v391, %v280
      %v400 = vmul.f32 %v392, %v281
      %v401 = vmul.f32 %v393, %v282
      %v402 = vmul.f32 %v394, %v283
      %v403 = vmul.f32 %v395, %v284
      %v404 = vmul.f32 %v396, %v285
      %v405 = vmul.f32 %v397, %v286
      %v406 = vmul.f32 %v398, %v287
      %v407 = vmul.f32 %v391, %v327
      %v408 = vmul.f32 %v392, %v328
      %v409 = vmul.f32 %v393, %v329
      %v410 = vmul.f32 %v394, %v330
      %v411 = vmul.f32 %v395, %v331
      %v412 = vmul.f32 %v396, %v332
      %v413 = vmul.f32 %v397, %v333
      %v414 = vmul.f32 %v398, %v334
      %423 = vrot.lane.b32.xlu0 %v407, 32
      %v424 = vpop.permute.xlu0 %423
      %425 = vrot.lane.b32.xlu0 %v408, 32
      %v426 = vpop.permute.xlu0 %425
      %427 = vrot.lane.b32.xlu0 %v409, 32
      %v428 = vpop.permute.xlu0 %427
      %429 = vrot.lane.b32.xlu0 %v410, 32
      %v430 = vpop.permute.xlu0 %429
      %431 = vrot.lane.b32.xlu0 %v411, 32
      %v432 = vpop.permute.xlu0 %431
      %433 = vrot.lane.b32.xlu0 %v412, 32
      %v434 = vpop.permute.xlu0 %433
      %435 = vrot.lane.b32.xlu0 %v413, 32
      %v436 = vpop.permute.xlu0 %435
      %437 = vrot.lane.b32.xlu0 %v414, 32
      %v438 = vpop.permute.xlu0 %437
      %vm447 = vcmask 261120
      %v448 = vsel %vm447, %v399, %v424
      %v449 = vsel %vm447, %v400, %v426
      %v450 = vsel %vm447, %v401, %v428
      %v451 = vsel %vm447, %v402, %v430
      %v452 = vsel %vm447, %v403, %v432
      %v453 = vsel %vm447, %v404, %v434
      %v454 = vsel %vm447, %v405, %v436
      %v455 = vsel %vm447, %v406, %v438
      %v464 = vrot.slane %v448, 7
      %v465 = vrot.slane %v449, 7
      %v466 = vrot.slane %v450, 7
      %v467 = vrot.slane %v451, 7
      %v468 = vrot.slane %v452, 7
      %v469 = vrot.slane %v453, 7
      %v470 = vrot.slane %v454, 7
      %v471 = vrot.slane %v455, 7
      %vm480 = vcmask 1040384
      %v481 = vsel %vm480, 0.0, %v464
      %v482 = vsel %vm480, 0.0, %v465
      %v483 = vsel %vm480, 0.0, %v466
      %v484 = vsel %vm480, 0.0, %v467
      %v485 = vsel %vm480, 0.0, %v468
      %v486 = vsel %vm480, 0.0, %v469
      %v487 = vsel %vm480, 0.0, %v470
      %v488 = vsel %vm480, 0.0, %v471
      %v489 = vsel %vm480, %v464, 0.0
      %v490 = vsel %vm480, %v465, 0.0
      %v491 = vsel %vm480, %v466, 0.0
      %v492 = vsel %vm480, %v467, 0.0
      %v493 = vsel %vm480, %v468, 0.0
      %v494 = vsel %vm480, %v469, 0.0
      %v495 = vsel %vm480, %v470, 0.0
      %v496 = vsel %vm480, %v471, 0.0
      %v497 = vld [vmem:[%s2] sm:$0xff]
      %v498 = vld [vmem:[%s2 + $0x8] sm:$0xff]
      %v499 = vld [vmem:[%s2 + $0x10] sm:$0xff]
      %v500 = vld [vmem:[%s2 + $0x18] sm:$0xff]
      %v501 = vld [vmem:[%s2 + $0x20] sm:$0xff]
      %v502 = vld [vmem:[%s2 + $0x28] sm:$0xff]
      %v503 = vld [vmem:[%s2 + $0x30] sm:$0xff]
      %v504 = vld [vmem:[%s2 + $0x38] sm:$0xff]
      %vm520 = vcmask 1046528
      %v521 = vrot.slane 0.0, 1
      %v522 = vsel %vm520, %v521, %v521
      %v523 = vrot.slane %v481, 1
      %v524 = vrot.slane %v489, 1
      %v525 = vsel %vm520, %v523, %v524
      %v526 = vrot.slane %v482, 1
      %v527 = vrot.slane %v490, 1
      %v528 = vsel %vm520, %v526, %v527
      %v529 = vrot.slane %v483, 1
      %v530 = vrot.slane %v491, 1
      %v531 = vsel %vm520, %v529, %v530
      %v532 = vrot.slane %v484, 1
      %v533 = vrot.slane %v492, 1
      %v534 = vsel %vm520, %v532, %v533
      %v535 = vrot.slane %v485, 1
      %v536 = vrot.slane %v493, 1
      %v537 = vsel %vm520, %v535, %v536
      %v538 = vrot.slane %v486, 1
      %v539 = vrot.slane %v494, 1
      %v540 = vsel %vm520, %v538, %v539
      %v541 = vrot.slane %v487, 1
      %v542 = vrot.slane %v495, 1
      %v543 = vsel %vm520, %v541, %v542
      %s544 = scalar_lea.vmem %s2, 64
      %v545 = vld [vmem:[%s544] sm:$0xff]
      %v546 = vld [vmem:[%s544 + $0x8] sm:$0xff]
      %v547 = vld [vmem:[%s544 + $0x10] sm:$0xff]
      %v548 = vld [vmem:[%s544 + $0x18] sm:$0xff]
      %v549 = vld [vmem:[%s544 + $0x20] sm:$0xff]
      %v550 = vld [vmem:[%s544 + $0x28] sm:$0xff]
      %v551 = vld [vmem:[%s544 + $0x30] sm:$0xff]
      %v552 = vld [vmem:[%s544 + $0x38] sm:$0xff]
      %vm553 = vcmask 523264
      %v554 = vsel %vm553, %v522, 0
      %v556 = vsel %vm553, %v525, 0
      %v558 = vsel %vm553, %v528, 0
      %v560 = vsel %vm553, %v531, 0
      %v562 = vsel %vm553, %v534, 0
      %v564 = vsel %vm553, %v537, 0
      %v566 = vsel %vm553, %v540, 0
      %v568 = vsel %vm553, %v543, 0
      %570 = vmatprep.subr.mxu0 0.0
      %571 = vmatpush1.msra.mxu0 0.0
      %572 = vmatprep.subr.mxu0 0.0
      %573 = vmatpush1.msra.mxu0 0.0
      %574 = vmatprep.subr.mxu0 0.0
      %575 = vmatpush1.msra.mxu0 0.0
      %576 = vmatprep.subr.mxu0 0.0
      %577 = vmatpush1.msra.mxu0 0.0
      %578 = vmatprep.subr.mxu0 0.0
      %579 = vmatpush1.msra.mxu0 0.0
      %580 = vmatprep.subr.mxu0 0.0
      %581 = vmatpush1.msra.mxu0 0.0
      %582 = vmatprep.subr.mxu0 0.0
      %583 = vmatpush1.msra.mxu0 0.0
      %584 = vmatprep.subr.mxu0 0.0
      %585 = vmatpush1.msra.mxu0 0.0
      %586 = vmatprep.subr.mxu0 0.0
      %587 = vmatpush1.msra.mxu0 %v552
      %588 = vmatprep.subr.mxu0 0.0
      %589 = vmatpush1.msra.mxu0 %v551
      %590 = vmatprep.subr.mxu0 0.0
      %591 = vmatpush1.msra.mxu0 %v550
      %592 = vmatprep.subr.mxu0 0.0
      %593 = vmatpush1.msra.mxu0 %v549
      %594 = vmatprep.subr.mxu0 0.0
      %595 = vmatpush1.msra.mxu0 %v548
      %596 = vmatprep.subr.mxu0 0.0
      %597 = vmatpush1.msra.mxu0 %v547
      %598 = vmatprep.subr.mxu0 0.0
      %599 = vmatpush1.msra.mxu0 %v546
      %600 = vmatprep.subr.mxu0 0.0
      %601 = vmatpush1.msra.mxu0 %v545
      %602 = vmatprep.subr.mxu0 0.0
      %603 = vmatpush2.msra.mxu0 0.0
      %604 = vmatprep.subr.mxu0 0.0
      %605 = vmatpush2.msra.mxu0 0.0
      %606 = vmatprep.subr.mxu0 0.0
      %607 = vmatpush2.msra.mxu0 0.0
      %608 = vmatprep.subr.mxu0 0.0
      %609 = vmatpush2.msra.mxu0 0.0
      %610 = vmatprep.subr.mxu0 0.0
      %611 = vmatpush2.msra.mxu0 0.0
      %612 = vmatprep.subr.mxu0 0.0
      %613 = vmatpush2.msra.mxu0 0.0
      %614 = vmatprep.subr.mxu0 0.0
      %615 = vmatpush2.msra.mxu0 0.0
      %616 = vmatprep.subr.mxu0 0.0
      %617 = vmatpush2.msra.mxu0 0.0
      %618 = vmatprep.subr.mxu0 0.0
      %619 = vmatpush2.msra.mxu0 0.0
      %620 = vmatprep.subr.mxu0 0.0
      %621 = vmatpush2.msra.mxu0 0.0
      %622 = vmatprep.subr.mxu0 0.0
      %623 = vmatpush2.msra.mxu0 0.0
      %624 = vmatprep.subr.mxu0 0.0
      %625 = vmatpush2.msra.mxu0 0.0
      %626 = vmatprep.subr.mxu0 0.0
      %627 = vmatpush2.msra.mxu0 0.0
      %628 = vmatprep.subr.mxu0 0.0
      %629 = vmatpush2.msra.mxu0 0.0
      %630 = vmatprep.subr.mxu0 0.0
      %631 = vmatpush2.msra.mxu0 0.0
      %632 = vmatprep.subr.mxu0 0.0
      %633 = vmatpush2.msra.mxu0 0.0
      %634 = vmatprep.mubr.f32.mxu0 0.0
      %635 = vmatmul.mubr.f32.gmra.mxu0 %v554
      %v636 = vpop.f32.mrf.mxu0
      %v637 = vadd.f32 0.0, %v636
      %v638 = vpop.f32.mrf.mxu0
      %639 = vmatprep.mubr.f32.mxu0 0.0
      %640 = vmatmul.mubr.f32.gmra.mxu0 %v556
      %v641 = vpop.f32.mrf.mxu0
      %v642 = vadd.f32 0.0, %v641
      %v643 = vpop.f32.mrf.mxu0
      %644 = vmatprep.mubr.f32.mxu0 0.0
      %645 = vmatmul.mubr.f32.gmra.mxu0 %v558
      %v646 = vpop.f32.mrf.mxu0
      %v647 = vadd.f32 0.0, %v646
      %v648 = vpop.f32.mrf.mxu0
      %649 = vmatprep.mubr.f32.mxu0 0.0
      %650 = vmatmul.mubr.f32.gmra.mxu0 %v560
      %v651 = vpop.f32.mrf.mxu0
      %v652 = vadd.f32 0.0, %v651
      %v653 = vpop.f32.mrf.mxu0
      %654 = vmatprep.mubr.f32.mxu0 0.0
      %655 = vmatmul.mubr.f32.gmra.mxu0 %v562
      %v656 = vpop.f32.mrf.mxu0
      %v657 = vadd.f32 0.0, %v656
      %v658 = vpop.f32.mrf.mxu0
      %659 = vmatprep.mubr.f32.mxu0 0.0
      %660 = vmatmul.mubr.f32.gmra.mxu0 %v564
      %v661 = vpop.f32.mrf.mxu0
      %v662 = vadd.f32 0.0, %v661
      %v663 = vpop.f32.mrf.mxu0
      %664 = vmatprep.mubr.f32.mxu0 0.0
      %665 = vmatmul.mubr.f32.gmra.mxu0 %v566
      %v666 = vpop.f32.mrf.mxu0
      %v667 = vadd.f32 0.0, %v666
      %v668 = vpop.f32.mrf.mxu0
      %669 = vmatprep.mubr.f32.mxu0 0.0
      %670 = vmatmul.mubr.f32.gmra.mxu0 %v568
      %v671 = vpop.f32.mrf.mxu0
      %v672 = vadd.f32 0.0, %v671
      %v673 = vpop.f32.mrf.mxu0
      %674 = vdwg.mxu0
      %v675 = vsel %vm553, 0.0, 0
      %v677 = vsel %vm553, %v481, 0
      %v679 = vsel %vm553, %v482, 0
      %v681 = vsel %vm553, %v483, 0
      %v683 = vsel %vm553, %v484, 0
      %v685 = vsel %vm553, %v485, 0
      %v687 = vsel %vm553, %v486, 0
      %v689 = vsel %vm553, %v487, 0
      %691 = vmatprep.subr.mxu0 0.0
      %692 = vmatpush1.msra.mxu0 0.0
      %693 = vmatprep.subr.mxu0 0.0
      %694 = vmatpush1.msra.mxu0 0.0
      %695 = vmatprep.subr.mxu0 0.0
      %696 = vmatpush1.msra.mxu0 0.0
      %697 = vmatprep.subr.mxu0 0.0
      %698 = vmatpush1.msra.mxu0 0.0
      %699 = vmatprep.subr.mxu0 0.0
      %700 = vmatpush1.msra.mxu0 0.0
      %701 = vmatprep.subr.mxu0 0.0
      %702 = vmatpush1.msra.mxu0 0.0
      %703 = vmatprep.subr.mxu0 0.0
      %704 = vmatpush1.msra.mxu0 0.0
      %705 = vmatprep.subr.mxu0 0.0
      %706 = vmatpush1.msra.mxu0 0.0
      %707 = vmatprep.subr.mxu0 0.0
      %708 = vmatpush1.msra.mxu0 %v504
      %709 = vmatprep.subr.mxu0 0.0
      %710 = vmatpush1.msra.mxu0 %v503
      %711 = vmatprep.subr.mxu0 0.0
      %712 = vmatpush1.msra.mxu0 %v502
      %713 = vmatprep.subr.mxu0 0.0
      %714 = vmatpush1.msra.mxu0 %v501
      %715 = vmatprep.subr.mxu0 0.0
      %716 = vmatpush1.msra.mxu0 %v500
      %717 = vmatprep.subr.mxu0 0.0
      %718 = vmatpush1.msra.mxu0 %v499
      %719 = vmatprep.subr.mxu0 0.0
      %720 = vmatpush1.msra.mxu0 %v498
      %721 = vmatprep.subr.mxu0 0.0
      %722 = vmatpush1.msra.mxu0 %v497
      %723 = vmatprep.subr.mxu0 0.0
      %724 = vmatpush2.msra.mxu0 0.0
      %725 = vmatprep.subr.mxu0 0.0
      %726 = vmatpush2.msra.mxu0 0.0
      %727 = vmatprep.subr.mxu0 0.0
      %728 = vmatpush2.msra.mxu0 0.0
      %729 = vmatprep.subr.mxu0 0.0
      %730 = vmatpush2.msra.mxu0 0.0
      %731 = vmatprep.subr.mxu0 0.0
      %732 = vmatpush2.msra.mxu0 0.0
      %733 = vmatprep.subr.mxu0 0.0
      %734 = vmatpush2.msra.mxu0 0.0
      %735 = vmatprep.subr.mxu0 0.0
      %736 = vmatpush2.msra.mxu0 0.0
      %737 = vmatprep.subr.mxu0 0.0
      %738 = vmatpush2.msra.mxu0 0.0
      %739 = vmatprep.subr.mxu0 0.0
      %740 = vmatpush2.msra.mxu0 0.0
      %741 = vmatprep.subr.mxu0 0.0
      %742 = vmatpush2.msra.mxu0 0.0
      %743 = vmatprep.subr.mxu0 0.0
      %744 = vmatpush2.msra.mxu0 0.0
      %745 = vmatprep.subr.mxu0 0.0
      %746 = vmatpush2.msra.mxu0 0.0
      %747 = vmatprep.subr.mxu0 0.0
      %748 = vmatpush2.msra.mxu0 0.0
      %749 = vmatprep.subr.mxu0 0.0
      %750 = vmatpush2.msra.mxu0 0.0
      %751 = vmatprep.subr.mxu0 0.0
      %752 = vmatpush2.msra.mxu0 0.0
      %753 = vmatprep.subr.mxu0 0.0
      %754 = vmatpush2.msra.mxu0 0.0
      %755 = vmatprep.mubr.f32.mxu0 0.0
      %756 = vmatmul.mubr.f32.gmra.mxu0 %v675
      %v757 = vpop.f32.mrf.mxu0
      %v758 = vadd.f32 %v637, %v757
      %v759 = vpop.f32.mrf.mxu0
      %760 = vmatprep.mubr.f32.mxu0 0.0
      %761 = vmatmul.mubr.f32.gmra.mxu0 %v677
      %v762 = vpop.f32.mrf.mxu0
      %v763 = vadd.f32 %v642, %v762
      %v764 = vpop.f32.mrf.mxu0
      %765 = vmatprep.mubr.f32.mxu0 0.0
      %766 = vmatmul.mubr.f32.gmra.mxu0 %v679
      %v767 = vpop.f32.mrf.mxu0
      %v768 = vadd.f32 %v647, %v767
      %v769 = vpop.f32.mrf.mxu0
      %770 = vmatprep.mubr.f32.mxu0 0.0
      %771 = vmatmul.mubr.f32.gmra.mxu0 %v681
      %v772 = vpop.f32.mrf.mxu0
      %v773 = vadd.f32 %v652, %v772
      %v774 = vpop.f32.mrf.mxu0
      %775 = vmatprep.mubr.f32.mxu0 0.0
      %776 = vmatmul.mubr.f32.gmra.mxu0 %v683
      %v777 = vpop.f32.mrf.mxu0
      %v778 = vadd.f32 %v657, %v777
      %v779 = vpop.f32.mrf.mxu0
      %780 = vmatprep.mubr.f32.mxu0 0.0
      %781 = vmatmul.mubr.f32.gmra.mxu0 %v685
      %v782 = vpop.f32.mrf.mxu0
      %v783 = vadd.f32 %v662, %v782
      %v784 = vpop.f32.mrf.mxu0
      %785 = vmatprep.mubr.f32.mxu0 0.0
      %786 = vmatmul.mubr.f32.gmra.mxu0 %v687
      %v787 = vpop.f32.mrf.mxu0
      %v788 = vadd.f32 %v667, %v787
      %v789 = vpop.f32.mrf.mxu0
      %790 = vmatprep.mubr.f32.mxu0 0.0
      %791 = vmatmul.mubr.f32.gmra.mxu0 %v689
      %v792 = vpop.f32.mrf.mxu0
      %v793 = vadd.f32 %v672, %v792
      %v794 = vpop.f32.mrf.mxu0
      %795 = vdwg.mxu0
      %vm796 = vcmask 1045504
      %v797 = vrot.slane 0.0, 2
      %v798 = vsel %vm796, %v797, %v797
      %v799 = vrot.slane %v481, 2
      %v800 = vrot.slane %v489, 2
      %v801 = vsel %vm796, %v799, %v800
      %v802 = vrot.slane %v482, 2
      %v803 = vrot.slane %v490, 2
      %v804 = vsel %vm796, %v802, %v803
      %v805 = vrot.slane %v483, 2
      %v806 = vrot.slane %v491, 2
      %v807 = vsel %vm796, %v805, %v806
      %v808 = vrot.slane %v484, 2
      %v809 = vrot.slane %v492, 2
      %v810 = vsel %vm796, %v808, %v809
      %v811 = vrot.slane %v485, 2
      %v812 = vrot.slane %v493, 2
      %v813 = vsel %vm796, %v811, %v812
      %v814 = vrot.slane %v486, 2
      %v815 = vrot.slane %v494, 2
      %v816 = vsel %vm796, %v814, %v815
      %v817 = vrot.slane %v487, 2
      %v818 = vrot.slane %v495, 2
      %v819 = vsel %vm796, %v817, %v818
      %s820 = scalar_lea.vmem %s2, 128
      %v821 = vld [vmem:[%s820] sm:$0xff]
      %v822 = vld [vmem:[%s820 + $0x8] sm:$0xff]
      %v823 = vld [vmem:[%s820 + $0x10] sm:$0xff]
      %v824 = vld [vmem:[%s820 + $0x18] sm:$0xff]
      %v825 = vld [vmem:[%s820 + $0x20] sm:$0xff]
      %v826 = vld [vmem:[%s820 + $0x28] sm:$0xff]
      %v827 = vld [vmem:[%s820 + $0x30] sm:$0xff]
      %v828 = vld [vmem:[%s820 + $0x38] sm:$0xff]
      %v829 = vsel %vm553, %v798, 0
      %v831 = vsel %vm553, %v801, 0
      %v833 = vsel %vm553, %v804, 0
      %v835 = vsel %vm553, %v807, 0
      %v837 = vsel %vm553, %v810, 0
      %v839 = vsel %vm553, %v813, 0
      %v841 = vsel %vm553, %v816, 0
      %v843 = vsel %vm553, %v819, 0
      %845 = vmatprep.subr.mxu0 0.0
      %846 = vmatpush1.msra.mxu0 0.0
      %847 = vmatprep.subr.mxu0 0.0
      %848 = vmatpush1.msra.mxu0 0.0
      %849 = vmatprep.subr.mxu0 0.0
      %850 = vmatpush1.msra.mxu0 0.0
      %851 = vmatprep.subr.mxu0 0.0
      %852 = vmatpush1.msra.mxu0 0.0
      %853 = vmatprep.subr.mxu0 0.0
      %854 = vmatpush1.msra.mxu0 0.0
      %855 = vmatprep.subr.mxu0 0.0
      %856 = vmatpush1.msra.mxu0 0.0
      %857 = vmatprep.subr.mxu0 0.0
      %858 = vmatpush1.msra.mxu0 0.0
      %859 = vmatprep.subr.mxu0 0.0
      %860 = vmatpush1.msra.mxu0 0.0
      %861 = vmatprep.subr.mxu0 0.0
      %862 = vmatpush1.msra.mxu0 %v828
      %863 = vmatprep.subr.mxu0 0.0
      %864 = vmatpush1.msra.mxu0 %v827
      %865 = vmatprep.subr.mxu0 0.0
      %866 = vmatpush1.msra.mxu0 %v826
      %867 = vmatprep.subr.mxu0 0.0
      %868 = vmatpush1.msra.mxu0 %v825
      %869 = vmatprep.subr.mxu0 0.0
      %870 = vmatpush1.msra.mxu0 %v824
      %871 = vmatprep.subr.mxu0 0.0
      %872 = vmatpush1.msra.mxu0 %v823
      %873 = vmatprep.subr.mxu0 0.0
      %874 = vmatpush1.msra.mxu0 %v822
      %875 = vmatprep.subr.mxu0 0.0
      %876 = vmatpush1.msra.mxu0 %v821
      %877 = vmatprep.subr.mxu0 0.0
      %878 = vmatpush2.msra.mxu0 0.0
      %879 = vmatprep.subr.mxu0 0.0
      %880 = vmatpush2.msra.mxu0 0.0
      %881 = vmatprep.subr.mxu0 0.0
      %882 = vmatpush2.msra.mxu0 0.0
      %883 = vmatprep.subr.mxu0 0.0
      %884 = vmatpush2.msra.mxu0 0.0
      %885 = vmatprep.subr.mxu0 0.0
      %886 = vmatpush2.msra.mxu0 0.0
      %887 = vmatprep.subr.mxu0 0.0
      %888 = vmatpush2.msra.mxu0 0.0
      %889 = vmatprep.subr.mxu0 0.0
      %890 = vmatpush2.msra.mxu0 0.0
      %891 = vmatprep.subr.mxu0 0.0
      %892 = vmatpush2.msra.mxu0 0.0
      %893 = vmatprep.subr.mxu0 0.0
      %894 = vmatpush2.msra.mxu0 0.0
      %895 = vmatprep.subr.mxu0 0.0
      %896 = vmatpush2.msra.mxu0 0.0
      %897 = vmatprep.subr.mxu0 0.0
      %898 = vmatpush2.msra.mxu0 0.0
      %899 = vmatprep.subr.mxu0 0.0
      %900 = vmatpush2.msra.mxu0 0.0
      %901 = vmatprep.subr.mxu0 0.0
      %902 = vmatpush2.msra.mxu0 0.0
      %903 = vmatprep.subr.mxu0 0.0
      %904 = vmatpush2.msra.mxu0 0.0
      %905 = vmatprep.subr.mxu0 0.0
      %906 = vmatpush2.msra.mxu0 0.0
      %907 = vmatprep.subr.mxu0 0.0
      %908 = vmatpush2.msra.mxu0 0.0
      %909 = vmatprep.mubr.f32.mxu0 0.0
      %910 = vmatmul.mubr.f32.gmra.mxu0 %v829
      %v911 = vpop.f32.mrf.mxu0
      %v912 = vadd.f32 0.0, %v911
      %v913 = vpop.f32.mrf.mxu0
      %914 = vmatprep.mubr.f32.mxu0 0.0
      %915 = vmatmul.mubr.f32.gmra.mxu0 %v831
      %v916 = vpop.f32.mrf.mxu0
      %v917 = vadd.f32 0.0, %v916
      %v918 = vpop.f32.mrf.mxu0
      %919 = vmatprep.mubr.f32.mxu0 0.0
      %920 = vmatmul.mubr.f32.gmra.mxu0 %v833
      %v921 = vpop.f32.mrf.mxu0
      %v922 = vadd.f32 0.0, %v921
      %v923 = vpop.f32.mrf.mxu0
      %924 = vmatprep.mubr.f32.mxu0 0.0
      %925 = vmatmul.mubr.f32.gmra.mxu0 %v835
      %v926 = vpop.f32.mrf.mxu0
      %v927 = vadd.f32 0.0, %v926
      %v928 = vpop.f32.mrf.mxu0
      %929 = vmatprep.mubr.f32.mxu0 0.0
      %930 = vmatmul.mubr.f32.gmra.mxu0 %v837
      %v931 = vpop.f32.mrf.mxu0
      %v932 = vadd.f32 0.0, %v931
      %v933 = vpop.f32.mrf.mxu0
      %934 = vmatprep.mubr.f32.mxu0 0.0
      %935 = vmatmul.mubr.f32.gmra.mxu0 %v839
      %v936 = vpop.f32.mrf.mxu0
      %v937 = vadd.f32 0.0, %v936
      %v938 = vpop.f32.mrf.mxu0
      %939 = vmatprep.mubr.f32.mxu0 0.0
      %940 = vmatmul.mubr.f32.gmra.mxu0 %v841
      %v941 = vpop.f32.mrf.mxu0
      %v942 = vadd.f32 0.0, %v941
      %v943 = vpop.f32.mrf.mxu0
      %944 = vmatprep.mubr.f32.mxu0 0.0
      %945 = vmatmul.mubr.f32.gmra.mxu0 %v843
      %v946 = vpop.f32.mrf.mxu0
      %v947 = vadd.f32 0.0, %v946
      %v948 = vpop.f32.mrf.mxu0
      %949 = vdwg.mxu0
      %v950 = vadd.f32 %v758, %v912
      %v951 = vadd.f32 %v763, %v917
      %v952 = vadd.f32 %v768, %v922
      %v953 = vadd.f32 %v773, %v927
      %v954 = vadd.f32 %v778, %v932
      %v955 = vadd.f32 %v783, %v937
      %v956 = vadd.f32 %v788, %v942
      %v957 = vadd.f32 %v793, %v947
      %s958 = scalar_lea.vmem %s2, 192
      %v959 = vld [vmem:[%s958] sm:$0xff]
      %v960 = vld [vmem:[%s958 + $0x8] sm:$0xff]
      %v961 = vld [vmem:[%s958 + $0x10] sm:$0xff]
      %v962 = vld [vmem:[%s958 + $0x18] sm:$0xff]
      %v963 = vld [vmem:[%s958 + $0x20] sm:$0xff]
      %v964 = vld [vmem:[%s958 + $0x28] sm:$0xff]
      %v965 = vld [vmem:[%s958 + $0x30] sm:$0xff]
      %v966 = vld [vmem:[%s958 + $0x38] sm:$0xff]
      %v968 = vsel %vm553, %v488, 0
      %970 = vmatprep.subr.mxu0 0.0
      %971 = vmatpush1.msra.mxu0 0.0
      %972 = vmatprep.subr.mxu0 0.0
      %973 = vmatpush1.msra.mxu0 0.0
      %974 = vmatprep.subr.mxu0 0.0
      %975 = vmatpush1.msra.mxu0 0.0
      %976 = vmatprep.subr.mxu0 0.0
      %977 = vmatpush1.msra.mxu0 0.0
      %978 = vmatprep.subr.mxu0 0.0
      %979 = vmatpush1.msra.mxu0 0.0
      %980 = vmatprep.subr.mxu0 0.0
      %981 = vmatpush1.msra.mxu0 0.0
      %982 = vmatprep.subr.mxu0 0.0
      %983 = vmatpush1.msra.mxu0 0.0
      %984 = vmatprep.subr.mxu0 0.0
      %985 = vmatpush1.msra.mxu0 0.0
      %986 = vmatprep.subr.mxu0 0.0
      %987 = vmatpush1.msra.mxu0 %v966
      %988 = vmatprep.subr.mxu0 0.0
      %989 = vmatpush1.msra.mxu0 %v965
      %990 = vmatprep.subr.mxu0 0.0
      %991 = vmatpush1.msra.mxu0 %v964
      %992 = vmatprep.subr.mxu0 0.0
      %993 = vmatpush1.msra.mxu0 %v963
      %994 = vmatprep.subr.mxu0 0.0
      %995 = vmatpush1.msra.mxu0 %v962
      %996 = vmatprep.subr.mxu0 0.0
      %997 = vmatpush1.msra.mxu0 %v961
      %998 = vmatprep.subr.mxu0 0.0
      %999 = vmatpush1.msra.mxu0 %v960
      %1000 = vmatprep.subr.mxu0 0.0
      %1001 = vmatpush1.msra.mxu0 %v959
      %1002 = vmatprep.subr.mxu0 0.0
      %1003 = vmatpush2.msra.mxu0 0.0
      %1004 = vmatprep.subr.mxu0 0.0
      %1005 = vmatpush2.msra.mxu0 0.0
      %1006 = vmatprep.subr.mxu0 0.0
      %1007 = vmatpush2.msra.mxu0 0.0
      %1008 = vmatprep.subr.mxu0 0.0
      %1009 = vmatpush2.msra.mxu0 0.0
      %1010 = vmatprep.subr.mxu0 0.0
      %1011 = vmatpush2.msra.mxu0 0.0
      %1012 = vmatprep.subr.mxu0 0.0
      %1013 = vmatpush2.msra.mxu0 0.0
      %1014 = vmatprep.subr.mxu0 0.0
      %1015 = vmatpush2.msra.mxu0 0.0
      %1016 = vmatprep.subr.mxu0 0.0
      %1017 = vmatpush2.msra.mxu0 0.0
      %1018 = vmatprep.subr.mxu0 0.0
      %1019 = vmatpush2.msra.mxu0 0.0
      %1020 = vmatprep.subr.mxu0 0.0
      %1021 = vmatpush2.msra.mxu0 0.0
      %1022 = vmatprep.subr.mxu0 0.0
      %1023 = vmatpush2.msra.mxu0 0.0
      %1024 = vmatprep.subr.mxu0 0.0
      %1025 = vmatpush2.msra.mxu0 0.0
      %1026 = vmatprep.subr.mxu0 0.0
      %1027 = vmatpush2.msra.mxu0 0.0
      %1028 = vmatprep.subr.mxu0 0.0
      %1029 = vmatpush2.msra.mxu0 0.0
      %1030 = vmatprep.subr.mxu0 0.0
      %1031 = vmatpush2.msra.mxu0 0.0
      %1032 = vmatprep.subr.mxu0 0.0
      %1033 = vmatpush2.msra.mxu0 0.0
      %1034 = vmatprep.mubr.f32.mxu0 0.0
      %1035 = vmatmul.mubr.f32.gmra.mxu0 %v677
      %v1036 = vpop.f32.mrf.mxu0
      %v1037 = vadd.f32 0.0, %v1036
      %v1038 = vpop.f32.mrf.mxu0
      %1039 = vmatprep.mubr.f32.mxu0 0.0
      %1040 = vmatmul.mubr.f32.gmra.mxu0 %v679
      %v1041 = vpop.f32.mrf.mxu0
      %v1042 = vadd.f32 0.0, %v1041
      %v1043 = vpop.f32.mrf.mxu0
      %1044 = vmatprep.mubr.f32.mxu0 0.0
      %1045 = vmatmul.mubr.f32.gmra.mxu0 %v681
      %v1046 = vpop.f32.mrf.mxu0
      %v1047 = vadd.f32 0.0, %v1046
      %v1048 = vpop.f32.mrf.mxu0
      %1049 = vmatprep.mubr.f32.mxu0 0.0
      %1050 = vmatmul.mubr.f32.gmra.mxu0 %v683
      %v1051 = vpop.f32.mrf.mxu0
      %v1052 = vadd.f32 0.0, %v1051
      %v1053 = vpop.f32.mrf.mxu0
      %1054 = vmatprep.mubr.f32.mxu0 0.0
      %1055 = vmatmul.mubr.f32.gmra.mxu0 %v685
      %v1056 = vpop.f32.mrf.mxu0
      %v1057 = vadd.f32 0.0, %v1056
      %v1058 = vpop.f32.mrf.mxu0
      %1059 = vmatprep.mubr.f32.mxu0 0.0
      %1060 = vmatmul.mubr.f32.gmra.mxu0 %v687
      %v1061 = vpop.f32.mrf.mxu0
      %v1062 = vadd.f32 0.0, %v1061
      %v1063 = vpop.f32.mrf.mxu0
      %1064 = vmatprep.mubr.f32.mxu0 0.0
      %1065 = vmatmul.mubr.f32.gmra.mxu0 %v689
      %v1066 = vpop.f32.mrf.mxu0
      %v1067 = vadd.f32 0.0, %v1066
      %v1068 = vpop.f32.mrf.mxu0
      %1069 = vmatprep.mubr.f32.mxu0 0.0
      %1070 = vmatmul.mubr.f32.gmra.mxu0 %v968
      %v1071 = vpop.f32.mrf.mxu0
      %v1072 = vadd.f32 0.0, %v1071
      %v1073 = vpop.f32.mrf.mxu0
      %1074 = vdwg.mxu0
      %v1075 = vadd.f32 %v950, %v1037
      %v1076 = vadd.f32 %v951, %v1042
      %v1077 = vadd.f32 %v952, %v1047
      %v1078 = vadd.f32 %v953, %v1052
      %v1079 = vadd.f32 %v954, %v1057
      %v1080 = vadd.f32 %v955, %v1062
      %v1081 = vadd.f32 %v956, %v1067
      %v1082 = vadd.f32 %v957, %v1072
      %v1084 = vrot.slane %v488, 1
      %v1085 = vrot.slane %v496, 1
      %v1086 = vsel %vm520, %v1084, %v1085
      %s1087 = scalar_lea.vmem %s2, 256
      %v1088 = vld [vmem:[%s1087] sm:$0xff]
      %v1089 = vld [vmem:[%s1087 + $0x8] sm:$0xff]
      %v1090 = vld [vmem:[%s1087 + $0x10] sm:$0xff]
      %v1091 = vld [vmem:[%s1087 + $0x18] sm:$0xff]
      %v1092 = vld [vmem:[%s1087 + $0x20] sm:$0xff]
      %v1093 = vld [vmem:[%s1087 + $0x28] sm:$0xff]
      %v1094 = vld [vmem:[%s1087 + $0x30] sm:$0xff]
      %v1095 = vld [vmem:[%s1087 + $0x38] sm:$0xff]
      %v1096 = vsel %vm553, %v1086, 0
      %1098 = vmatprep.subr.mxu0 0.0
      %1099 = vmatpush1.msra.mxu0 0.0
      %1100 = vmatprep.subr.mxu0 0.0
      %1101 = vmatpush1.msra.mxu0 0.0
      %1102 = vmatprep.subr.mxu0 0.0
      %1103 = vmatpush1.msra.mxu0 0.0
      %1104 = vmatprep.subr.mxu0 0.0
      %1105 = vmatpush1.msra.mxu0 0.0
      %1106 = vmatprep.subr.mxu0 0.0
      %1107 = vmatpush1.msra.mxu0 0.0
      %1108 = vmatprep.subr.mxu0 0.0
      %1109 = vmatpush1.msra.mxu0 0.0
      %1110 = vmatprep.subr.mxu0 0.0
      %1111 = vmatpush1.msra.mxu0 0.0
      %1112 = vmatprep.subr.mxu0 0.0
      %1113 = vmatpush1.msra.mxu0 0.0
      %1114 = vmatprep.subr.mxu0 0.0
      %1115 = vmatpush1.msra.mxu0 %v1095
      %1116 = vmatprep.subr.mxu0 0.0
      %1117 = vmatpush1.msra.mxu0 %v1094
      %1118 = vmatprep.subr.mxu0 0.0
      %1119 = vmatpush1.msra.mxu0 %v1093
      %1120 = vmatprep.subr.mxu0 0.0
      %1121 = vmatpush1.msra.mxu0 %v1092
      %1122 = vmatprep.subr.mxu0 0.0
      %1123 = vmatpush1.msra.mxu0 %v1091
      %1124 = vmatprep.subr.mxu0 0.0
      %1125 = vmatpush1.msra.mxu0 %v1090
      %1126 = vmatprep.subr.mxu0 0.0
      %1127 = vmatpush1.msra.mxu0 %v1089
      %1128 = vmatprep.subr.mxu0 0.0
      %1129 = vmatpush1.msra.mxu0 %v1088
      %1130 = vmatprep.subr.mxu0 0.0
      %1131 = vmatpush2.msra.mxu0 0.0
      %1132 = vmatprep.subr.mxu0 0.0
      %1133 = vmatpush2.msra.mxu0 0.0
      %1134 = vmatprep.subr.mxu0 0.0
      %1135 = vmatpush2.msra.mxu0 0.0
      %1136 = vmatprep.subr.mxu0 0.0
      %1137 = vmatpush2.msra.mxu0 0.0
      %1138 = vmatprep.subr.mxu0 0.0
      %1139 = vmatpush2.msra.mxu0 0.0
      %1140 = vmatprep.subr.mxu0 0.0
      %1141 = vmatpush2.msra.mxu0 0.0
      %1142 = vmatprep.subr.mxu0 0.0
      %1143 = vmatpush2.msra.mxu0 0.0
      %1144 = vmatprep.subr.mxu0 0.0
      %1145 = vmatpush2.msra.mxu0 0.0
      %1146 = vmatprep.subr.mxu0 0.0
      %1147 = vmatpush2.msra.mxu0 0.0
      %1148 = vmatprep.subr.mxu0 0.0
      %1149 = vmatpush2.msra.mxu0 0.0
      %1150 = vmatprep.subr.mxu0 0.0
      %1151 = vmatpush2.msra.mxu0 0.0
      %1152 = vmatprep.subr.mxu0 0.0
      %1153 = vmatpush2.msra.mxu0 0.0
      %1154 = vmatprep.subr.mxu0 0.0
      %1155 = vmatpush2.msra.mxu0 0.0
      %1156 = vmatprep.subr.mxu0 0.0
      %1157 = vmatpush2.msra.mxu0 0.0
      %1158 = vmatprep.subr.mxu0 0.0
      %1159 = vmatpush2.msra.mxu0 0.0
      %1160 = vmatprep.subr.mxu0 0.0
      %1161 = vmatpush2.msra.mxu0 0.0
      %1162 = vmatprep.mubr.f32.mxu0 0.0
      %1163 = vmatmul.mubr.f32.gmra.mxu0 %v556
      %v1164 = vpop.f32.mrf.mxu0
      %v1165 = vadd.f32 0.0, %v1164
      %v1166 = vpop.f32.mrf.mxu0
      %1167 = vmatprep.mubr.f32.mxu0 0.0
      %1168 = vmatmul.mubr.f32.gmra.mxu0 %v558
      %v1169 = vpop.f32.mrf.mxu0
      %v1170 = vadd.f32 0.0, %v1169
      %v1171 = vpop.f32.mrf.mxu0
      %1172 = vmatprep.mubr.f32.mxu0 0.0
      %1173 = vmatmul.mubr.f32.gmra.mxu0 %v560
      %v1174 = vpop.f32.mrf.mxu0
      %v1175 = vadd.f32 0.0, %v1174
      %v1176 = vpop.f32.mrf.mxu0
      %1177 = vmatprep.mubr.f32.mxu0 0.0
      %1178 = vmatmul.mubr.f32.gmra.mxu0 %v562
      %v1179 = vpop.f32.mrf.mxu0
      %v1180 = vadd.f32 0.0, %v1179
      %v1181 = vpop.f32.mrf.mxu0
      %1182 = vmatprep.mubr.f32.mxu0 0.0
      %1183 = vmatmul.mubr.f32.gmra.mxu0 %v564
      %v1184 = vpop.f32.mrf.mxu0
      %v1185 = vadd.f32 0.0, %v1184
      %v1186 = vpop.f32.mrf.mxu0
      %1187 = vmatprep.mubr.f32.mxu0 0.0
      %1188 = vmatmul.mubr.f32.gmra.mxu0 %v566
      %v1189 = vpop.f32.mrf.mxu0
      %v1190 = vadd.f32 0.0, %v1189
      %v1191 = vpop.f32.mrf.mxu0
      %1192 = vmatprep.mubr.f32.mxu0 0.0
      %1193 = vmatmul.mubr.f32.gmra.mxu0 %v568
      %v1194 = vpop.f32.mrf.mxu0
      %v1195 = vadd.f32 0.0, %v1194
      %v1196 = vpop.f32.mrf.mxu0
      %1197 = vmatprep.mubr.f32.mxu0 0.0
      %1198 = vmatmul.mubr.f32.gmra.mxu0 %v1096
      %v1199 = vpop.f32.mrf.mxu0
      %v1200 = vadd.f32 0.0, %v1199
      %v1201 = vpop.f32.mrf.mxu0
      %1202 = vdwg.mxu0
      %v1203 = vadd.f32 %v1075, %v1165
      %v1204 = vadd.f32 %v1076, %v1170
      %v1205 = vadd.f32 %v1077, %v1175
      %v1206 = vadd.f32 %v1078, %v1180
      %v1207 = vadd.f32 %v1079, %v1185
      %v1208 = vadd.f32 %v1080, %v1190
      %v1209 = vadd.f32 %v1081, %v1195
      %v1210 = vadd.f32 %v1082, %v1200
      %v1211 = vrot.slane %v488, 2
      %v1212 = vrot.slane %v496, 2
      %v1213 = vsel %vm796, %v1211, %v1212
      %s1214 = scalar_lea.vmem %s2, 320
      %v1215 = vld [vmem:[%s1214] sm:$0xff]
      %v1216 = vld [vmem:[%s1214 + $0x8] sm:$0xff]
      %v1217 = vld [vmem:[%s1214 + $0x10] sm:$0xff]
      %v1218 = vld [vmem:[%s1214 + $0x18] sm:$0xff]
      %v1219 = vld [vmem:[%s1214 + $0x20] sm:$0xff]
      %v1220 = vld [vmem:[%s1214 + $0x28] sm:$0xff]
      %v1221 = vld [vmem:[%s1214 + $0x30] sm:$0xff]
      %v1222 = vld [vmem:[%s1214 + $0x38] sm:$0xff]
      %v1223 = vsel %vm553, %v1213, 0
      %1225 = vmatprep.subr.mxu0 0.0
      %1226 = vmatpush1.msra.mxu0 0.0
      %1227 = vmatprep.subr.mxu0 0.0
      %1228 = vmatpush1.msra.mxu0 0.0
      %1229 = vmatprep.subr.mxu0 0.0
      %1230 = vmatpush1.msra.mxu0 0.0
      %1231 = vmatprep.subr.mxu0 0.0
      %1232 = vmatpush1.msra.mxu0 0.0
      %1233 = vmatprep.subr.mxu0 0.0
      %1234 = vmatpush1.msra.mxu0 0.0
      %1235 = vmatprep.subr.mxu0 0.0
      %1236 = vmatpush1.msra.mxu0 0.0
      %1237 = vmatprep.subr.mxu0 0.0
      %1238 = vmatpush1.msra.mxu0 0.0
      %1239 = vmatprep.subr.mxu0 0.0
      %1240 = vmatpush1.msra.mxu0 0.0
      %1241 = vmatprep.subr.mxu0 0.0
      %1242 = vmatpush1.msra.mxu0 %v1222
      %1243 = vmatprep.subr.mxu0 0.0
      %1244 = vmatpush1.msra.mxu0 %v1221
      %1245 = vmatprep.subr.mxu0 0.0
      %1246 = vmatpush1.msra.mxu0 %v1220
      %1247 = vmatprep.subr.mxu0 0.0
      %1248 = vmatpush1.msra.mxu0 %v1219
      %1249 = vmatprep.subr.mxu0 0.0
      %1250 = vmatpush1.msra.mxu0 %v1218
      %1251 = vmatprep.subr.mxu0 0.0
      %1252 = vmatpush1.msra.mxu0 %v1217
      %1253 = vmatprep.subr.mxu0 0.0
      %1254 = vmatpush1.msra.mxu0 %v1216
      %1255 = vmatprep.subr.mxu0 0.0
      %1256 = vmatpush1.msra.mxu0 %v1215
      %1257 = vmatprep.subr.mxu0 0.0
      %1258 = vmatpush2.msra.mxu0 0.0
      %1259 = vmatprep.subr.mxu0 0.0
      %1260 = vmatpush2.msra.mxu0 0.0
      %1261 = vmatprep.subr.mxu0 0.0
      %1262 = vmatpush2.msra.mxu0 0.0
      %1263 = vmatprep.subr.mxu0 0.0
      %1264 = vmatpush2.msra.mxu0 0.0
      %1265 = vmatprep.subr.mxu0 0.0
      %1266 = vmatpush2.msra.mxu0 0.0
      %1267 = vmatprep.subr.mxu0 0.0
      %1268 = vmatpush2.msra.mxu0 0.0
      %1269 = vmatprep.subr.mxu0 0.0
      %1270 = vmatpush2.msra.mxu0 0.0
      %1271 = vmatprep.subr.mxu0 0.0
      %1272 = vmatpush2.msra.mxu0 0.0
      %1273 = vmatprep.subr.mxu0 0.0
      %1274 = vmatpush2.msra.mxu0 0.0
      %1275 = vmatprep.subr.mxu0 0.0
      %1276 = vmatpush2.msra.mxu0 0.0
      %1277 = vmatprep.subr.mxu0 0.0
      %1278 = vmatpush2.msra.mxu0 0.0
      %1279 = vmatprep.subr.mxu0 0.0
      %1280 = vmatpush2.msra.mxu0 0.0
      %1281 = vmatprep.subr.mxu0 0.0
      %1282 = vmatpush2.msra.mxu0 0.0
      %1283 = vmatprep.subr.mxu0 0.0
      %1284 = vmatpush2.msra.mxu0 0.0
      %1285 = vmatprep.subr.mxu0 0.0
      %1286 = vmatpush2.msra.mxu0 0.0
      %1287 = vmatprep.subr.mxu0 0.0
      %1288 = vmatpush2.msra.mxu0 0.0
      %1289 = vmatprep.mubr.f32.mxu0 0.0
      %1290 = vmatmul.mubr.f32.gmra.mxu0 %v831
      %v1291 = vpop.f32.mrf.mxu0
      %v1292 = vadd.f32 0.0, %v1291
      %v1293 = vpop.f32.mrf.mxu0
      %1294 = vmatprep.mubr.f32.mxu0 0.0
      %1295 = vmatmul.mubr.f32.gmra.mxu0 %v833
      %v1296 = vpop.f32.mrf.mxu0
      %v1297 = vadd.f32 0.0, %v1296
      %v1298 = vpop.f32.mrf.mxu0
      %1299 = vmatprep.mubr.f32.mxu0 0.0
      %1300 = vmatmul.mubr.f32.gmra.mxu0 %v835
      %v1301 = vpop.f32.mrf.mxu0
      %v1302 = vadd.f32 0.0, %v1301
      %v1303 = vpop.f32.mrf.mxu0
      %1304 = vmatprep.mubr.f32.mxu0 0.0
      %1305 = vmatmul.mubr.f32.gmra.mxu0 %v837
      %v1306 = vpop.f32.mrf.mxu0
      %v1307 = vadd.f32 0.0, %v1306
      %v1308 = vpop.f32.mrf.mxu0
      %1309 = vmatprep.mubr.f32.mxu0 0.0
      %1310 = vmatmul.mubr.f32.gmra.mxu0 %v839
      %v1311 = vpop.f32.mrf.mxu0
      %v1312 = vadd.f32 0.0, %v1311
      %v1313 = vpop.f32.mrf.mxu0
      %1314 = vmatprep.mubr.f32.mxu0 0.0
      %1315 = vmatmul.mubr.f32.gmra.mxu0 %v841
      %v1316 = vpop.f32.mrf.mxu0
      %v1317 = vadd.f32 0.0, %v1316
      %v1318 = vpop.f32.mrf.mxu0
      %1319 = vmatprep.mubr.f32.mxu0 0.0
      %1320 = vmatmul.mubr.f32.gmra.mxu0 %v843
      %v1321 = vpop.f32.mrf.mxu0
      %v1322 = vadd.f32 0.0, %v1321
      %v1323 = vpop.f32.mrf.mxu0
      %1324 = vmatprep.mubr.f32.mxu0 0.0
      %1325 = vmatmul.mubr.f32.gmra.mxu0 %v1223
      %v1326 = vpop.f32.mrf.mxu0
      %v1327 = vadd.f32 0.0, %v1326
      %v1328 = vpop.f32.mrf.mxu0
      %1329 = vdwg.mxu0
      %v1330 = vadd.f32 %v1203, %v1292
      %v1331 = vadd.f32 %v1204, %v1297
      %v1332 = vadd.f32 %v1205, %v1302
      %v1333 = vadd.f32 %v1206, %v1307
      %v1334 = vadd.f32 %v1207, %v1312
      %v1335 = vadd.f32 %v1208, %v1317
      %v1336 = vadd.f32 %v1209, %v1322
      %v1337 = vadd.f32 %v1210, %v1327
      %s1338 = scalar_lea.vmem %s2, 384
      %v1339 = vld [vmem:[%s1338] sm:$0xff]
      %v1340 = vld [vmem:[%s1338 + $0x8] sm:$0xff]
      %v1341 = vld [vmem:[%s1338 + $0x10] sm:$0xff]
      %v1342 = vld [vmem:[%s1338 + $0x18] sm:$0xff]
      %v1343 = vld [vmem:[%s1338 + $0x20] sm:$0xff]
      %v1344 = vld [vmem:[%s1338 + $0x28] sm:$0xff]
      %v1345 = vld [vmem:[%s1338 + $0x30] sm:$0xff]
      %v1346 = vld [vmem:[%s1338 + $0x38] sm:$0xff]
      %1347 = vmatprep.subr.mxu0 0.0
      %1348 = vmatpush1.msra.mxu0 0.0
      %1349 = vmatprep.subr.mxu0 0.0
      %1350 = vmatpush1.msra.mxu0 0.0
      %1351 = vmatprep.subr.mxu0 0.0
      %1352 = vmatpush1.msra.mxu0 0.0
      %1353 = vmatprep.subr.mxu0 0.0
      %1354 = vmatpush1.msra.mxu0 0.0
      %1355 = vmatprep.subr.mxu0 0.0
      %1356 = vmatpush1.msra.mxu0 0.0
      %1357 = vmatprep.subr.mxu0 0.0
      %1358 = vmatpush1.msra.mxu0 0.0
      %1359 = vmatprep.subr.mxu0 0.0
      %1360 = vmatpush1.msra.mxu0 0.0
      %1361 = vmatprep.subr.mxu0 0.0
      %1362 = vmatpush1.msra.mxu0 0.0
      %1363 = vmatprep.subr.mxu0 0.0
      %1364 = vmatpush1.msra.mxu0 %v1346
      %1365 = vmatprep.subr.mxu0 0.0
      %1366 = vmatpush1.msra.mxu0 %v1345
      %1367 = vmatprep.subr.mxu0 0.0
      %1368 = vmatpush1.msra.mxu0 %v1344
      %1369 = vmatprep.subr.mxu0 0.0
      %1370 = vmatpush1.msra.mxu0 %v1343
      %1371 = vmatprep.subr.mxu0 0.0
      %1372 = vmatpush1.msra.mxu0 %v1342
      %1373 = vmatprep.subr.mxu0 0.0
      %1374 = vmatpush1.msra.mxu0 %v1341
      %1375 = vmatprep.subr.mxu0 0.0
      %1376 = vmatpush1.msra.mxu0 %v1340
      %1377 = vmatprep.subr.mxu0 0.0
      %1378 = vmatpush1.msra.mxu0 %v1339
      %1379 = vmatprep.subr.mxu0 0.0
      %1380 = vmatpush2.msra.mxu0 0.0
      %1381 = vmatprep.subr.mxu0 0.0
      %1382 = vmatpush2.msra.mxu0 0.0
      %1383 = vmatprep.subr.mxu0 0.0
      %1384 = vmatpush2.msra.mxu0 0.0
      %1385 = vmatprep.subr.mxu0 0.0
      %1386 = vmatpush2.msra.mxu0 0.0
      %1387 = vmatprep.subr.mxu0 0.0
      %1388 = vmatpush2.msra.mxu0 0.0
      %1389 = vmatprep.subr.mxu0 0.0
      %1390 = vmatpush2.msra.mxu0 0.0
      %1391 = vmatprep.subr.mxu0 0.0
      %1392 = vmatpush2.msra.mxu0 0.0
      %1393 = vmatprep.subr.mxu0 0.0
      %1394 = vmatpush2.msra.mxu0 0.0
      %1395 = vmatprep.subr.mxu0 0.0
      %1396 = vmatpush2.msra.mxu0 0.0
      %1397 = vmatprep.subr.mxu0 0.0
      %1398 = vmatpush2.msra.mxu0 0.0
      %1399 = vmatprep.subr.mxu0 0.0
      %1400 = vmatpush2.msra.mxu0 0.0
      %1401 = vmatprep.subr.mxu0 0.0
      %1402 = vmatpush2.msra.mxu0 0.0
      %1403 = vmatprep.subr.mxu0 0.0
      %1404 = vmatpush2.msra.mxu0 0.0
      %1405 = vmatprep.subr.mxu0 0.0
      %1406 = vmatpush2.msra.mxu0 0.0
      %1407 = vmatprep.subr.mxu0 0.0
      %1408 = vmatpush2.msra.mxu0 0.0
      %1409 = vmatprep.subr.mxu0 0.0
      %1410 = vmatpush2.msra.mxu0 0.0
      %1411 = vmatprep.mubr.f32.mxu0 0.0
      %1412 = vmatmul.mubr.f32.gmra.mxu0 %v679
      %v1413 = vpop.f32.mrf.mxu0
      %v1414 = vadd.f32 0.0, %v1413
      %v1415 = vpop.f32.mrf.mxu0
      %1416 = vmatprep.mubr.f32.mxu0 0.0
      %1417 = vmatmul.mubr.f32.gmra.mxu0 %v681
      %v1418 = vpop.f32.mrf.mxu0
      %v1419 = vadd.f32 0.0, %v1418
      %v1420 = vpop.f32.mrf.mxu0
      %1421 = vmatprep.mubr.f32.mxu0 0.0
      %1422 = vmatmul.mubr.f32.gmra.mxu0 %v683
      %v1423 = vpop.f32.mrf.mxu0
      %v1424 = vadd.f32 0.0, %v1423
      %v1425 = vpop.f32.mrf.mxu0
      %1426 = vmatprep.mubr.f32.mxu0 0.0
      %1427 = vmatmul.mubr.f32.gmra.mxu0 %v685
      %v1428 = vpop.f32.mrf.mxu0
      %v1429 = vadd.f32 0.0, %v1428
      %v1430 = vpop.f32.mrf.mxu0
      %1431 = vmatprep.mubr.f32.mxu0 0.0
      %1432 = vmatmul.mubr.f32.gmra.mxu0 %v687
      %v1433 = vpop.f32.mrf.mxu0
      %v1434 = vadd.f32 0.0, %v1433
      %v1435 = vpop.f32.mrf.mxu0
      %1436 = vmatprep.mubr.f32.mxu0 0.0
      %1437 = vmatmul.mubr.f32.gmra.mxu0 %v689
      %v1438 = vpop.f32.mrf.mxu0
      %v1439 = vadd.f32 0.0, %v1438
      %v1440 = vpop.f32.mrf.mxu0
      %1441 = vmatprep.mubr.f32.mxu0 0.0
      %1442 = vmatmul.mubr.f32.gmra.mxu0 %v968
      %v1443 = vpop.f32.mrf.mxu0
      %v1444 = vadd.f32 0.0, %v1443
      %v1445 = vpop.f32.mrf.mxu0
      %1446 = vmatprep.mubr.f32.mxu0 0.0
      %1447 = vmatmul.mubr.f32.gmra.mxu0 %v675
      %v1448 = vpop.f32.mrf.mxu0
      %v1449 = vadd.f32 0.0, %v1448
      %v1450 = vpop.f32.mrf.mxu0
      %1451 = vdwg.mxu0
      %v1452 = vadd.f32 %v1330, %v1414
      %v1453 = vadd.f32 %v1331, %v1419
      %v1454 = vadd.f32 %v1332, %v1424
      %v1455 = vadd.f32 %v1333, %v1429
      %v1456 = vadd.f32 %v1334, %v1434
      %v1457 = vadd.f32 %v1335, %v1439
      %v1458 = vadd.f32 %v1336, %v1444
      %v1459 = vadd.f32 %v1337, %v1449
      %s1460 = scalar_lea.vmem %s2, 448
      %v1461 = vld [vmem:[%s1460] sm:$0xff]
      %v1462 = vld [vmem:[%s1460 + $0x8] sm:$0xff]
      %v1463 = vld [vmem:[%s1460 + $0x10] sm:$0xff]
      %v1464 = vld [vmem:[%s1460 + $0x18] sm:$0xff]
      %v1465 = vld [vmem:[%s1460 + $0x20] sm:$0xff]
      %v1466 = vld [vmem:[%s1460 + $0x28] sm:$0xff]
      %v1467 = vld [vmem:[%s1460 + $0x30] sm:$0xff]
      %v1468 = vld [vmem:[%s1460 + $0x38] sm:$0xff]
      %1469 = vmatprep.subr.mxu0 0.0
      %1470 = vmatpush1.msra.mxu0 0.0
      %1471 = vmatprep.subr.mxu0 0.0
      %1472 = vmatpush1.msra.mxu0 0.0
      %1473 = vmatprep.subr.mxu0 0.0
      %1474 = vmatpush1.msra.mxu0 0.0
      %1475 = vmatprep.subr.mxu0 0.0
      %1476 = vmatpush1.msra.mxu0 0.0
      %1477 = vmatprep.subr.mxu0 0.0
      %1478 = vmatpush1.msra.mxu0 0.0
      %1479 = vmatprep.subr.mxu0 0.0
      %1480 = vmatpush1.msra.mxu0 0.0
      %1481 = vmatprep.subr.mxu0 0.0
      %1482 = vmatpush1.msra.mxu0 0.0
      %1483 = vmatprep.subr.mxu0 0.0
      %1484 = vmatpush1.msra.mxu0 0.0
      %1485 = vmatprep.subr.mxu0 0.0
      %1486 = vmatpush1.msra.mxu0 %v1468
      %1487 = vmatprep.subr.mxu0 0.0
      %1488 = vmatpush1.msra.mxu0 %v1467
      %1489 = vmatprep.subr.mxu0 0.0
      %1490 = vmatpush1.msra.mxu0 %v1466
      %1491 = vmatprep.subr.mxu0 0.0
      %1492 = vmatpush1.msra.mxu0 %v1465
      %1493 = vmatprep.subr.mxu0 0.0
      %1494 = vmatpush1.msra.mxu0 %v1464
      %1495 = vmatprep.subr.mxu0 0.0
      %1496 = vmatpush1.msra.mxu0 %v1463
      %1497 = vmatprep.subr.mxu0 0.0
      %1498 = vmatpush1.msra.mxu0 %v1462
      %1499 = vmatprep.subr.mxu0 0.0
      %1500 = vmatpush1.msra.mxu0 %v1461
      %1501 = vmatprep.subr.mxu0 0.0
      %1502 = vmatpush2.msra.mxu0 0.0
      %1503 = vmatprep.subr.mxu0 0.0
      %1504 = vmatpush2.msra.mxu0 0.0
      %1505 = vmatprep.subr.mxu0 0.0
      %1506 = vmatpush2.msra.mxu0 0.0
      %1507 = vmatprep.subr.mxu0 0.0
      %1508 = vmatpush2.msra.mxu0 0.0
      %1509 = vmatprep.subr.mxu0 0.0
      %1510 = vmatpush2.msra.mxu0 0.0
      %1511 = vmatprep.subr.mxu0 0.0
      %1512 = vmatpush2.msra.mxu0 0.0
      %1513 = vmatprep.subr.mxu0 0.0
      %1514 = vmatpush2.msra.mxu0 0.0
      %1515 = vmatprep.subr.mxu0 0.0
      %1516 = vmatpush2.msra.mxu0 0.0
      %1517 = vmatprep.subr.mxu0 0.0
      %1518 = vmatpush2.msra.mxu0 0.0
      %1519 = vmatprep.subr.mxu0 0.0
      %1520 = vmatpush2.msra.mxu0 0.0
      %1521 = vmatprep.subr.mxu0 0.0
      %1522 = vmatpush2.msra.mxu0 0.0
      %1523 = vmatprep.subr.mxu0 0.0
      %1524 = vmatpush2.msra.mxu0 0.0
      %1525 = vmatprep.subr.mxu0 0.0
      %1526 = vmatpush2.msra.mxu0 0.0
      %1527 = vmatprep.subr.mxu0 0.0
      %1528 = vmatpush2.msra.mxu0 0.0
      %1529 = vmatprep.subr.mxu0 0.0
      %1530 = vmatpush2.msra.mxu0 0.0
      %1531 = vmatprep.subr.mxu0 0.0
      %1532 = vmatpush2.msra.mxu0 0.0
      %1533 = vmatprep.mubr.f32.mxu0 0.0
      %1534 = vmatmul.mubr.f32.gmra.mxu0 %v558
      %v1535 = vpop.f32.mrf.mxu0
      %v1536 = vadd.f32 0.0, %v1535
      %v1537 = vpop.f32.mrf.mxu0
      %1538 = vmatprep.mubr.f32.mxu0 0.0
      %1539 = vmatmul.mubr.f32.gmra.mxu0 %v560
      %v1540 = vpop.f32.mrf.mxu0
      %v1541 = vadd.f32 0.0, %v1540
      %v1542 = vpop.f32.mrf.mxu0
      %1543 = vmatprep.mubr.f32.mxu0 0.0
      %1544 = vmatmul.mubr.f32.gmra.mxu0 %v562
      %v1545 = vpop.f32.mrf.mxu0
      %v1546 = vadd.f32 0.0, %v1545
      %v1547 = vpop.f32.mrf.mxu0
      %1548 = vmatprep.mubr.f32.mxu0 0.0
      %1549 = vmatmul.mubr.f32.gmra.mxu0 %v564
      %v1550 = vpop.f32.mrf.mxu0
      %v1551 = vadd.f32 0.0, %v1550
      %v1552 = vpop.f32.mrf.mxu0
      %1553 = vmatprep.mubr.f32.mxu0 0.0
      %1554 = vmatmul.mubr.f32.gmra.mxu0 %v566
      %v1555 = vpop.f32.mrf.mxu0
      %v1556 = vadd.f32 0.0, %v1555
      %v1557 = vpop.f32.mrf.mxu0
      %1558 = vmatprep.mubr.f32.mxu0 0.0
      %1559 = vmatmul.mubr.f32.gmra.mxu0 %v568
      %v1560 = vpop.f32.mrf.mxu0
      %v1561 = vadd.f32 0.0, %v1560
      %v1562 = vpop.f32.mrf.mxu0
      %1563 = vmatprep.mubr.f32.mxu0 0.0
      %1564 = vmatmul.mubr.f32.gmra.mxu0 %v1096
      %v1565 = vpop.f32.mrf.mxu0
      %v1566 = vadd.f32 0.0, %v1565
      %v1567 = vpop.f32.mrf.mxu0
      %1568 = vmatprep.mubr.f32.mxu0 0.0
      %1569 = vmatmul.mubr.f32.gmra.mxu0 %v554
      %v1570 = vpop.f32.mrf.mxu0
      %v1571 = vadd.f32 0.0, %v1570
      %v1572 = vpop.f32.mrf.mxu0
      %1573 = vdwg.mxu0
      %v1574 = vadd.f32 %v1452, %v1536
      %v1575 = vadd.f32 %v1453, %v1541
      %v1576 = vadd.f32 %v1454, %v1546
      %v1577 = vadd.f32 %v1455, %v1551
      %v1578 = vadd.f32 %v1456, %v1556
      %v1579 = vadd.f32 %v1457, %v1561
      %v1580 = vadd.f32 %v1458, %v1566
      %v1581 = vadd.f32 %v1459, %v1571
      %s1582 = scalar_lea.vmem %s2, 512
      %v1583 = vld [vmem:[%s1582] sm:$0xff]
      %v1584 = vld [vmem:[%s1582 + $0x8] sm:$0xff]
      %v1585 = vld [vmem:[%s1582 + $0x10] sm:$0xff]
      %v1586 = vld [vmem:[%s1582 + $0x18] sm:$0xff]
      %v1587 = vld [vmem:[%s1582 + $0x20] sm:$0xff]
      %v1588 = vld [vmem:[%s1582 + $0x28] sm:$0xff]
      %v1589 = vld [vmem:[%s1582 + $0x30] sm:$0xff]
      %v1590 = vld [vmem:[%s1582 + $0x38] sm:$0xff]
      %1591 = vmatprep.subr.mxu0 0.0
      %1592 = vmatpush1.msra.mxu0 0.0
      %1593 = vmatprep.subr.mxu0 0.0
      %1594 = vmatpush1.msra.mxu0 0.0
      %1595 = vmatprep.subr.mxu0 0.0
      %1596 = vmatpush1.msra.mxu0 0.0
      %1597 = vmatprep.subr.mxu0 0.0
      %1598 = vmatpush1.msra.mxu0 0.0
      %1599 = vmatprep.subr.mxu0 0.0
      %1600 = vmatpush1.msra.mxu0 0.0
      %1601 = vmatprep.subr.mxu0 0.0
      %1602 = vmatpush1.msra.mxu0 0.0
      %1603 = vmatprep.subr.mxu0 0.0
      %1604 = vmatpush1.msra.mxu0 0.0
      %1605 = vmatprep.subr.mxu0 0.0
      %1606 = vmatpush1.msra.mxu0 0.0
      %1607 = vmatprep.subr.mxu0 0.0
      %1608 = vmatpush1.msra.mxu0 %v1590
      %1609 = vmatprep.subr.mxu0 0.0
      %1610 = vmatpush1.msra.mxu0 %v1589
      %1611 = vmatprep.subr.mxu0 0.0
      %1612 = vmatpush1.msra.mxu0 %v1588
      %1613 = vmatprep.subr.mxu0 0.0
      %1614 = vmatpush1.msra.mxu0 %v1587
      %1615 = vmatprep.subr.mxu0 0.0
      %1616 = vmatpush1.msra.mxu0 %v1586
      %1617 = vmatprep.subr.mxu0 0.0
      %1618 = vmatpush1.msra.mxu0 %v1585
      %1619 = vmatprep.subr.mxu0 0.0
      %1620 = vmatpush1.msra.mxu0 %v1584
      %1621 = vmatprep.subr.mxu0 0.0
      %1622 = vmatpush1.msra.mxu0 %v1583
      %1623 = vmatprep.subr.mxu0 0.0
      %1624 = vmatpush2.msra.mxu0 0.0
      %1625 = vmatprep.subr.mxu0 0.0
      %1626 = vmatpush2.msra.mxu0 0.0
      %1627 = vmatprep.subr.mxu0 0.0
      %1628 = vmatpush2.msra.mxu0 0.0
      %1629 = vmatprep.subr.mxu0 0.0
      %1630 = vmatpush2.msra.mxu0 0.0
      %1631 = vmatprep.subr.mxu0 0.0
      %1632 = vmatpush2.msra.mxu0 0.0
      %1633 = vmatprep.subr.mxu0 0.0
      %1634 = vmatpush2.msra.mxu0 0.0
      %1635 = vmatprep.subr.mxu0 0.0
      %1636 = vmatpush2.msra.mxu0 0.0
      %1637 = vmatprep.subr.mxu0 0.0
      %1638 = vmatpush2.msra.mxu0 0.0
      %1639 = vmatprep.subr.mxu0 0.0
      %1640 = vmatpush2.msra.mxu0 0.0
      %1641 = vmatprep.subr.mxu0 0.0
      %1642 = vmatpush2.msra.mxu0 0.0
      %1643 = vmatprep.subr.mxu0 0.0
      %1644 = vmatpush2.msra.mxu0 0.0
      %1645 = vmatprep.subr.mxu0 0.0
      %1646 = vmatpush2.msra.mxu0 0.0
      %1647 = vmatprep.subr.mxu0 0.0
      %1648 = vmatpush2.msra.mxu0 0.0
      %1649 = vmatprep.subr.mxu0 0.0
      %1650 = vmatpush2.msra.mxu0 0.0
      %1651 = vmatprep.subr.mxu0 0.0
      %1652 = vmatpush2.msra.mxu0 0.0
      %1653 = vmatprep.subr.mxu0 0.0
      %1654 = vmatpush2.msra.mxu0 0.0
      %1655 = vmatprep.mubr.f32.mxu0 0.0
      %1656 = vmatmul.mubr.f32.gmra.mxu0 %v833
      %v1657 = vpop.f32.mrf.mxu0
      %v1658 = vadd.f32 0.0, %v1657
      %v1659 = vpop.f32.mrf.mxu0
      %1660 = vmatprep.mubr.f32.mxu0 0.0
      %1661 = vmatmul.mubr.f32.gmra.mxu0 %v835
      %v1662 = vpop.f32.mrf.mxu0
      %v1663 = vadd.f32 0.0, %v1662
      %v1664 = vpop.f32.mrf.mxu0
      %1665 = vmatprep.mubr.f32.mxu0 0.0
      %1666 = vmatmul.mubr.f32.gmra.mxu0 %v837
      %v1667 = vpop.f32.mrf.mxu0
      %v1668 = vadd.f32 0.0, %v1667
      %v1669 = vpop.f32.mrf.mxu0
      %1670 = vmatprep.mubr.f32.mxu0 0.0
      %1671 = vmatmul.mubr.f32.gmra.mxu0 %v839
      %v1672 = vpop.f32.mrf.mxu0
      %v1673 = vadd.f32 0.0, %v1672
      %v1674 = vpop.f32.mrf.mxu0
      %1675 = vmatprep.mubr.f32.mxu0 0.0
      %1676 = vmatmul.mubr.f32.gmra.mxu0 %v841
      %v1677 = vpop.f32.mrf.mxu0
      %v1678 = vadd.f32 0.0, %v1677
      %v1679 = vpop.f32.mrf.mxu0
      %1680 = vmatprep.mubr.f32.mxu0 0.0
      %1681 = vmatmul.mubr.f32.gmra.mxu0 %v843
      %v1682 = vpop.f32.mrf.mxu0
      %v1683 = vadd.f32 0.0, %v1682
      %v1684 = vpop.f32.mrf.mxu0
      %1685 = vmatprep.mubr.f32.mxu0 0.0
      %1686 = vmatmul.mubr.f32.gmra.mxu0 %v1223
      %v1687 = vpop.f32.mrf.mxu0
      %v1688 = vadd.f32 0.0, %v1687
      %v1689 = vpop.f32.mrf.mxu0
      %1690 = vmatprep.mubr.f32.mxu0 0.0
      %1691 = vmatmul.mubr.f32.gmra.mxu0 %v829
      %v1692 = vpop.f32.mrf.mxu0
      %v1693 = vadd.f32 0.0, %v1692
      %v1694 = vpop.f32.mrf.mxu0
      %1695 = vdwg.mxu0
      %v1696 = vadd.f32 %v1574, %v1658
      %v1697 = vadd.f32 %v1575, %v1663
      %v1698 = vadd.f32 %v1576, %v1668
      %v1699 = vadd.f32 %v1577, %v1673
      %v1700 = vadd.f32 %v1578, %v1678
      %v1701 = vadd.f32 %v1579, %v1683
      %v1702 = vadd.f32 %v1580, %v1688
      %v1703 = vadd.f32 %v1581, %v1693
      %vm1704 = vcmask 130048
      %1705 = vst.msk [vmem:[%s170] sm:$0xff] %vm1704, %v1696
      %1706 = vst.msk [vmem:[%s170 + $0x8] sm:$0xff] %vm1704, %v1697
      %1707 = vst.msk [vmem:[%s170 + $0x10] sm:$0xff] %vm1704, %v1698
      %1708 = vst.msk [vmem:[%s170 + $0x18] sm:$0xff] %vm1704, %v1699
      %1709 = vst.msk [vmem:[%s170 + $0x20] sm:$0xff] %vm1704, %v1700
      %1710 = vst.msk [vmem:[%s170 + $0x28] sm:$0xff] %vm1704, %v1701
      %1711 = vst.msk [vmem:[%s170 + $0x30] sm:$0xff] %vm1704, %v1702
      %1712 = vst.msk [vmem:[%s170 + $0x38] sm:$0xff] %vm1704, %v1703
      %p1713 = scmp.lt.s32.totalorder %s14, 1
      %s1714 = scalar_select %p1713, %s14, 1
      %s1715 = smul.addr %s1714, 8
      %s1716 = smul.addr %s1715, 8
      %s1717 = scalar_lea.vmem %s3, %s1716
      // Predicated region
      $region33: #{dense_layer_forward.5} parent=31 // pred_check
        %p1718 = pneg %p100
      $region34: #{dense_layer_forward.5} parent=31 // pred_check_branch
        %1720 = sbr.rel (%p1718) target = $region36
      $region35: #{dense_layer_forward.5} parent=31 // pred_region
        _
      $region36: #{dense_layer_forward.5} parent=31 // pred_fallthru
        _
    $region32: #{dense_layer_forward.5} parent=5 // pred_fallthru
      _
    %p1721 = scmp.le.s32.totalorder 2, %s9
    // Predicated region
    $region37: #{dense_layer_forward.5} parent=5 // pred_check
      %p1722 = pneg %p1721
    $region38: #{dense_layer_forward.5} parent=5 // pred_check_branch
      %1724 = sbr.rel (%p1722) target = $region40
    $region39: #{dense_layer_forward.5} parent=5 // pred_region
      %s1725 = ssub.s32 %s9, 2
      // Predicated region
      $region41: #{dense_layer_forward.5} parent=39 // pred_check
        %p1726 = pneg %p106
      $region42: #{dense_layer_forward.5} parent=39 // pred_check_branch
        %1728 = sbr.rel (%p1726) target = $region44
      $region43: #{dense_layer_forward.5} parent=39 // pred_region
        %p1729 = scmp.lt.s32.totalorder %s15, 1
        %s1730 = scalar_select %p1729, %s15, 1
        %s1731 = smul.addr %s1730, 8
        %s1732 = smul.addr %s1731, 8
        %s1733 = scalar_lea.vmem %s3, %s1732
      $region44: #{dense_layer_forward.5} parent=39 // pred_fallthru
        _
    $region40: #{dense_layer_forward.5} parent=5 // pred_fallthru
      _
  $region6: #{dense_layer_forward.5} parent=0 // loop_footer
    %s13 = sadd.s32 1, %s9
  $region7: #{dense_layer_forward.5} parent=0 // loop_footer_branch
    %8 = sbr.rel target = $region3
  $region8: #{dense_layer_forward.5} parent=0 // loop_exit
    _

</llo_original>
